<compile_context>
chip_gen: v6e
topology: v6e:2x2x1
jax: 0.10.0
libtpu: 0.0.40
codegen_flags: <defaults>
</compile_context>

<pallas_src>
import math
import jax
import jax.numpy as jnp
from jax.experimental import pallas as pl
from jax.experimental.pallas import tpu as pltpu

# ----------------------------- config ---------------------------------------
B = 2              # batch
S = 8              # sequence length
D_MODEL = 128      # d_model (lane-dense)
N_HEADS = 4        # num_heads
HEAD_DIM = D_MODEL // N_HEADS
FFN_HIDDEN = 256   # ffn_hidden
EPS = 1e-5


# ----------------------------- kernel ---------------------------------------
def _layer_norm(x, gamma, beta):
    # x: (T, D); gamma/beta: (1, D). Biased variance, eps inside sqrt — matches
    # the tutorial LayerNormalization exactly.
    mean = jnp.mean(x, axis=-1, keepdims=True)
    xc = x - mean
    var = jnp.mean(xc * xc, axis=-1, keepdims=True)
    return gamma * (xc * jax.lax.rsqrt(var + EPS)) + beta


def encoder_layer_kernel(
    x_ref, xh_ref, mask_ref,
    wq_ref, bq_ref, wk_ref, bk_ref, wv_ref, bv_ref,
    wo_ref, bo_ref,
    g1_ref, be1_ref,
    w1_ref, b1_ref, w2_ref, b2_ref,
    g2_ref, be2_ref,
    out_ref,
):
    x = x_ref[...]        # (T, D)    flattened activations, T = B*S
    xh = xh_ref[...]      # (G, S, D) activations replicated per head, G = B*H

    # ---- Multi-head attention as batched contractions over (batch, head) groups ----
    # Per-head weights are (G, hd, D): contraction over the model dim (minor dim of
    # both operands -> no operand transposes). 1/sqrt(hd) is folded into wq/bq.
    q = jnp.einsum("gsd,ged->gse", xh, wq_ref[...],
                   preferred_element_type=jnp.float32) + bq_ref[...]   # (G, S, hd)
    k = jnp.einsum("gsd,ged->gse", xh, wk_ref[...],
                   preferred_element_type=jnp.float32) + bk_ref[...]
    v = jnp.einsum("gsd,ged->gse", xh, wv_ref[...],
                   preferred_element_type=jnp.float32) + bv_ref[...]

    # Scores: contract head_dim directly (no explicit k.T). Additive mask.
    s = jnp.einsum("gse,gte->gst", q, k,
                   preferred_element_type=jnp.float32) + mask_ref[...]  # (G, S, S)
    # NOTE: a fully -inf masked row yields NaN, same as the PyTorch reference softmax.
    s = s - jnp.max(s, axis=-1, keepdims=True)
    p = jnp.exp(s)
    p = p * pl.reciprocal(jnp.sum(p, axis=-1, keepdims=True), approx=True)

    ctx = jnp.einsum("gst,gte->gse", p, v,
                     preferred_element_type=jnp.float32)                # (G, S, hd)
    # Output projection per head (wo pre-sliced per head in the wrapper); heads are
    # summed below instead of lane-concatenated.
    proj = jnp.einsum("gse,ged->gsd", ctx, wo_ref[...],
                      preferred_element_type=jnp.float32)               # (G, S, D)

    # Sum heads per batch, restack batches along rows -> (T, D).
    # Trace-time unrolled: only leading-dim slices + vreg adds (no relayouts).
    nb = proj.shape[0] // N_HEADS
    rows = []
    for b in range(nb):
        acc = proj[b * N_HEADS]
        for h in range(1, N_HEADS):
            acc = acc + proj[b * N_HEADS + h]
        rows.append(acc)
    attn = jnp.concatenate(rows, axis=0) + bo_ref[...]                  # (T, D)

    # ---- add & norm 1 (dropout1 = identity in eval) --------------------------
    x1 = _layer_norm(attn + x, g1_ref[...], be1_ref[...])

    # ---- position-wise feed forward on the flat lane-dense (T, D) slab --------
    h1 = jnp.dot(x1, w1_ref[...], preferred_element_type=jnp.float32) + b1_ref[...]
    h1 = jnp.maximum(h1, 0.0)                                           # ReLU
    ffn = jnp.dot(h1, w2_ref[...], preferred_element_type=jnp.float32) + b2_ref[...]

    # ---- add & norm 2 (dropout2 = identity in eval) ---------------------------
    out_ref[...] = _layer_norm(ffn + x1, g2_ref[...], be2_ref[...])


# ----------------------------- wrapper ---------------------------------------
def _encoder_layer_impl(x, mask, params):
    """x: (B, S, D) f32; mask: (S, S) additive mask; params: dict of weights."""
    Bb, Ss, Dd = x.shape
    H, hd = N_HEADS, HEAD_DIM
    G = Bb * H
    T = Bb * Ss
    scale = 1.0 / math.sqrt(hd)

    # --- trace-time weight re-layout (runs in XLA outside the kernel) ----------
    # wqkv columns are packed per head as [q_h | k_h | v_h] (base = h*3*hd).
    wqkv4 = params["wqkv"].reshape(Dd, H, 3, hd)          # (D, H, 3, hd)
    bqkv3 = params["bqkv"].reshape(H, 3, hd)              # (H, 3, hd)

    def w_heads(idx, s=1.0):
        w = jnp.transpose(wqkv4[:, :, idx, :], (1, 2, 0)) * s     # (H, hd, D)
        return jnp.tile(w, (Bb, 1, 1))                            # (G, hd, D), g = b*H + h

    def b_heads(idx, s=1.0):
        bvec = bqkv3[:, idx, :] * s                               # (H, hd)
        return jnp.tile(bvec[:, None, :], (Bb, Ss, 1))            # (G, S, hd)

    wq_g, bq_g = w_heads(0, scale), b_heads(0, scale)   # fold 1/sqrt(hd) into Q
    wk_g, bk_g = w_heads(1), b_heads(1)
    wv_g, bv_g = w_heads(2), b_heads(2)
    wo_g = jnp.tile(params["wo"].reshape(H, hd, Dd), (Bb, 1, 1))  # (G, hd, D)

    x_flat = x.reshape(T, Dd)                                     # (T, D) lane-dense slab
    x_heads = jnp.repeat(x.reshape(Bb, Ss, Dd), H, axis=0)        # (G, S, D)
    mask_g = jnp.broadcast_to(mask[None, :, :], (G, Ss, Ss))      # (G, S, S)

    vmem = pl.BlockSpec(memory_space=pltpu.MemorySpace.VMEM)      # whole array in VMEM
    n_inputs = 19

    out_flat = pl.pallas_call(
        encoder_layer_kernel,
        out_shape=jax.ShapeDtypeStruct((T, Dd), jnp.float32),
        in_specs=[vmem] * n_inputs,
        out_specs=vmem,
        # Single invocation, no grid: total VMEM footprint is ~1 MiB, so nothing is
        # re-staged and there is no per-step pipelining overhead.
    )(
        x_flat, x_heads, mask_g,
        wq_g, bq_g, wk_g, bk_g, wv_g, bv_g,
        wo_g, params["bo"],
        params["g1"], params["be1"],
        params["w1"], params["b1"], params["w2"], params["b2"],
        params["g2"], params["be2"],
    )
    return out_flat.reshape(Bb, Ss, Dd)


encoder_layer = jax.jit(_encoder_layer_impl)


# ----------------------------- reference (plain JAX) -------------------------
def encoder_layer_ref(x, mask, p):
    def ln(v, g, b):
        m = jnp.mean(v, axis=-1, keepdims=True)
        var = jnp.mean((v - m) ** 2, axis=-1, keepdims=True)
        return g * (v - m) / jnp.sqrt(var + EPS) + b

    Bb, Ss, Dd = x.shape
    qkv = x @ p["wqkv"] + p["bqkv"]                          # (B, S, 3D)
    qkv = qkv.reshape(Bb, Ss, N_HEADS, 3 * HEAD_DIM).transpose(0, 2, 1, 3)
    q, k, v = jnp.split(qkv, 3, axis=-1)                     # (B, H, S, hd)
    sc = jnp.einsum("bhqd,bhkd->bhqk", q, k) / math.sqrt(HEAD_DIM) + mask
    a = jax.nn.softmax(sc, axis=-1)
    val = jnp.einsum("bhqk,bhkd->bhqd", a, v).transpose(0, 2, 1, 3).reshape(Bb, Ss, Dd)
    attn = val @ p["wo"] + p["bo"]
    x1 = ln(attn + x, p["g1"], p["be1"])
    h = jnp.maximum(x1 @ p["w1"] + p["b1"], 0.0)
    f = h @ p["w2"] + p["b2"]
    return ln(f + x1, p["g2"], p["be2"])


# ----------------------------- main ------------------------------------------
def init_params(key):
    ks = jax.random.split(key, 8)
    s = 0.05
    return {
        "wqkv": jax.random.normal(ks[0], (D_MODEL, 3 * D_MODEL), jnp.float32) * s,
        "bqkv": jax.random.normal(ks[1], (1, 3 * D_MODEL), jnp.float32) * s,
        "wo":   jax.random.normal(ks[2], (D_MODEL, D_MODEL), jnp.float32) * s,
        "bo":   jax.random.normal(ks[3], (1, D_MODEL), jnp.float32) * s,
        "g1":   jnp.ones((1, D_MODEL), jnp.float32),
        "be1":  jnp.zeros((1, D_MODEL), jnp.float32),
        "w1":   jax.random.normal(ks[4], (D_MODEL, FFN_HIDDEN), jnp.float32) * s,
        "b1":   jax.random.normal(ks[5], (1, FFN_HIDDEN), jnp.float32) * s,
        "w2":   jax.random.normal(ks[6], (FFN_HIDDEN, D_MODEL), jnp.float32) * s,
        "b2":   jax.random.normal(ks[7], (1, D_MODEL), jnp.float32) * s,
        "g2":   jnp.ones((1, D_MODEL), jnp.float32),
        "be2":  jnp.zeros((1, D_MODEL), jnp.float32),
    }


if __name__ == "__main__":
    key = jax.random.PRNGKey(0)
    kx, kp = jax.random.split(key)
    x = jax.random.normal(kx, (B, S, D_MODEL), jnp.float32)
    mask = jnp.zeros((S, S), jnp.float32)   # additive mask (0 = unmasked)
    params = init_params(kp)

    out = encoder_layer(x, mask, params)
    out = jax.block_until_ready(out)

    ref = encoder_layer_ref(x, mask, params)
    assert out.shape == (B, S, D_MODEL)
    # Slightly loose tolerance: pl.reciprocal(approx=True) on the EUP trades a few
    # low-order bits in the softmax normalization.
    assert jnp.allclose(out, ref, atol=2e-3, rtol=2e-3), "mismatch vs reference"

    # TODO(synk): nn.Dropout (train mode) is not implemented; layers are identity
    # as in eval/inference, which matches the forward-pass semantics being tested.
    print("KERNEL_OK")
</pallas_src>

<mosaic_0001>
module attributes {stable_mosaic.version = 11 : i64} {
  func.func @encoder_layer_kernel(%arg0: memref<16x128xf32, #tpu.memory_space<vmem>>, %arg1: memref<8x8x128xf32, #tpu.memory_space<vmem>>, %arg2: memref<8x8x8xf32, #tpu.memory_space<vmem>>, %arg3: memref<8x32x128xf32, #tpu.memory_space<vmem>>, %arg4: memref<8x8x32xf32, #tpu.memory_space<vmem>>, %arg5: memref<8x32x128xf32, #tpu.memory_space<vmem>>, %arg6: memref<8x8x32xf32, #tpu.memory_space<vmem>>, %arg7: memref<8x32x128xf32, #tpu.memory_space<vmem>>, %arg8: memref<8x8x32xf32, #tpu.memory_space<vmem>>, %arg9: memref<8x32x128xf32, #tpu.memory_space<vmem>>, %arg10: memref<1x128xf32, #tpu.memory_space<vmem>>, %arg11: memref<1x128xf32, #tpu.memory_space<vmem>>, %arg12: memref<1x128xf32, #tpu.memory_space<vmem>>, %arg13: memref<128x256xf32, #tpu.memory_space<vmem>>, %arg14: memref<1x256xf32, #tpu.memory_space<vmem>>, %arg15: memref<256x128xf32, #tpu.memory_space<vmem>>, %arg16: memref<1x128xf32, #tpu.memory_space<vmem>>, %arg17: memref<1x128xf32, #tpu.memory_space<vmem>>, %arg18: memref<1x128xf32, #tpu.memory_space<vmem>>, %arg19: memref<16x128xf32, #tpu.memory_space<vmem>>) attributes {dimension_semantics = [], scalar_prefetch = 0 : i64, scratch_operands = 0 : i64, tpu.core_type = #tpu.core_type<tc>} {
    %c0 = arith.constant 0 : index
    %c0_0 = arith.constant 0 : index
    %0 = vector.load %arg0[%c0, %c0_0] : memref<16x128xf32, #tpu.memory_space<vmem>>, vector<16x128xf32>
    %c0_1 = arith.constant 0 : index
    %c0_2 = arith.constant 0 : index
    %c0_3 = arith.constant 0 : index
    %1 = vector.load %arg1[%c0_1, %c0_2, %c0_3] : memref<8x8x128xf32, #tpu.memory_space<vmem>>, vector<8x8x128xf32>
    %c0_4 = arith.constant 0 : index
    %c0_5 = arith.constant 0 : index
    %c0_6 = arith.constant 0 : index
    %2 = vector.load %arg3[%c0_4, %c0_5, %c0_6] : memref<8x32x128xf32, #tpu.memory_space<vmem>>, vector<8x32x128xf32>
    "tpu.trace_start"() <{level = 10 : i32, message = "gsd,ged->gse"}> : () -> ()
    %cst = arith.constant dense<0.000000e+00> : vector<8x8x32xf32>
    %3 = tpu.matmul %1, %2, %cst {dimension_numbers = #tpu.dot_dimension_numbers<[2], [2], [1], [1], [0, 0, 0, 1, 1, 1], [0], [0]>} : vector<8x8x128xf32>, vector<8x32x128xf32>, vector<8x8x32xf32> -> vector<8x8x32xf32>
    "tpu.trace_stop"() : () -> ()
    %c0_7 = arith.constant 0 : index
    %c0_8 = arith.constant 0 : index
    %c0_9 = arith.constant 0 : index
    %4 = vector.load %arg4[%c0_7, %c0_8, %c0_9] : memref<8x8x32xf32, #tpu.memory_space<vmem>>, vector<8x8x32xf32>
    %5 = arith.addf %3, %4 : vector<8x8x32xf32>
    %c0_10 = arith.constant 0 : index
    %c0_11 = arith.constant 0 : index
    %c0_12 = arith.constant 0 : index
    %6 = vector.load %arg5[%c0_10, %c0_11, %c0_12] : memref<8x32x128xf32, #tpu.memory_space<vmem>>, vector<8x32x128xf32>
    "tpu.trace_start"() <{level = 10 : i32, message = "gsd,ged->gse"}> : () -> ()
    %cst_13 = arith.constant dense<0.000000e+00> : vector<8x8x32xf32>
    %7 = tpu.matmul %1, %6, %cst_13 {dimension_numbers = #tpu.dot_dimension_numbers<[2], [2], [1], [1], [0, 0, 0, 1, 1, 1], [0], [0]>} : vector<8x8x128xf32>, vector<8x32x128xf32>, vector<8x8x32xf32> -> vector<8x8x32xf32>
    "tpu.trace_stop"() : () -> ()
    %c0_14 = arith.constant 0 : index
    %c0_15 = arith.constant 0 : index
    %c0_16 = arith.constant 0 : index
    %8 = vector.load %arg6[%c0_14, %c0_15, %c0_16] : memref<8x8x32xf32, #tpu.memory_space<vmem>>, vector<8x8x32xf32>
    %9 = arith.addf %7, %8 : vector<8x8x32xf32>
    %c0_17 = arith.constant 0 : index
    %c0_18 = arith.constant 0 : index
    %c0_19 = arith.constant 0 : index
    %10 = vector.load %arg7[%c0_17, %c0_18, %c0_19] : memref<8x32x128xf32, #tpu.memory_space<vmem>>, vector<8x32x128xf32>
    "tpu.trace_start"() <{level = 10 : i32, message = "gsd,ged->gse"}> : () -> ()
    %cst_20 = arith.constant dense<0.000000e+00> : vector<8x8x32xf32>
    %11 = tpu.matmul %1, %10, %cst_20 {dimension_numbers = #tpu.dot_dimension_numbers<[2], [2], [1], [1], [0, 0, 0, 1, 1, 1], [0], [0]>} : vector<8x8x128xf32>, vector<8x32x128xf32>, vector<8x8x32xf32> -> vector<8x8x32xf32>
    "tpu.trace_stop"() : () -> ()
    %c0_21 = arith.constant 0 : index
    %c0_22 = arith.constant 0 : index
    %c0_23 = arith.constant 0 : index
    %12 = vector.load %arg8[%c0_21, %c0_22, %c0_23] : memref<8x8x32xf32, #tpu.memory_space<vmem>>, vector<8x8x32xf32>
    %13 = arith.addf %11, %12 : vector<8x8x32xf32>
    "tpu.trace_start"() <{level = 10 : i32, message = "gse,gte->gst"}> : () -> ()
    %cst_24 = arith.constant dense<0.000000e+00> : vector<8x8x8xf32>
    %14 = tpu.matmul %5, %9, %cst_24 {dimension_numbers = #tpu.dot_dimension_numbers<[2], [2], [1], [1], [0, 0, 0, 1, 1, 1], [0], [0]>} : vector<8x8x32xf32>, vector<8x8x32xf32>, vector<8x8x8xf32> -> vector<8x8x8xf32>
    "tpu.trace_stop"() : () -> ()
    %c0_25 = arith.constant 0 : index
    %c0_26 = arith.constant 0 : index
    %c0_27 = arith.constant 0 : index
    %15 = vector.load %arg2[%c0_25, %c0_26, %c0_27] : memref<8x8x8xf32, #tpu.memory_space<vmem>>, vector<8x8x8xf32>
    %16 = arith.addf %14, %15 : vector<8x8x8xf32>
    %cst_28 = arith.constant dense<0xFF800000> : vector<8x8xf32>
    %17 = vector.multi_reduction <maximumf>, %16, %cst_28 [2] : vector<8x8x8xf32> to vector<8x8xf32>
    %18 = vector.shape_cast %17 : vector<8x8xf32> to vector<8x8x1xf32>
    %19 = vector.broadcast %18 : vector<8x8x1xf32> to vector<8x8x8xf32>
    %20 = arith.subf %16, %19 : vector<8x8x8xf32>
    %21 = math.exp %20 : vector<8x8x8xf32>
    %cst_29 = arith.constant dense<0.000000e+00> : vector<8x8xf32>
    %22 = vector.multi_reduction <add>, %21, %cst_29 [2] : vector<8x8x8xf32> to vector<8x8xf32>
    %23 = vector.shape_cast %22 : vector<8x8xf32> to vector<8x8x1xf32>
    %24 = tpu.reciprocal %23 {approx = true} : vector<8x8x1xf32> -> vector<8x8x1xf32>
    %25 = vector.broadcast %24 : vector<8x8x1xf32> to vector<8x8x8xf32>
    %26 = arith.mulf %21, %25 : vector<8x8x8xf32>
    "tpu.trace_start"() <{level = 10 : i32, message = "gst,gte->gse"}> : () -> ()
    %cst_30 = arith.constant dense<0.000000e+00> : vector<8x8x32xf32>
    %27 = tpu.matmul %26, %13, %cst_30 {dimension_numbers = #tpu.dot_dimension_numbers<[2], [1], [1], [2], [0, 0, 0, 1, 1, 2], [0], [0]>} : vector<8x8x8xf32>, vector<8x8x32xf32>, vector<8x8x32xf32> -> vector<8x8x32xf32>
    "tpu.trace_stop"() : () -> ()
    %c0_31 = arith.constant 0 : index
    %c0_32 = arith.constant 0 : index
    %c0_33 = arith.constant 0 : index
    %28 = vector.load %arg9[%c0_31, %c0_32, %c0_33] : memref<8x32x128xf32, #tpu.memory_space<vmem>>, vector<8x32x128xf32>
    "tpu.trace_start"() <{level = 10 : i32, message = "gse,ged->gsd"}> : () -> ()
    %cst_34 = arith.constant dense<0.000000e+00> : vector<8x8x128xf32>
    %29 = tpu.matmul %27, %28, %cst_34 {dimension_numbers = #tpu.dot_dimension_numbers<[2], [1], [1], [2], [0, 0, 0, 1, 1, 2], [0], [0]>} : vector<8x8x32xf32>, vector<8x32x128xf32>, vector<8x8x128xf32> -> vector<8x8x128xf32>
    "tpu.trace_stop"() : () -> ()
    %30 = vector.extract_strided_slice %29 {offsets = [0, 0, 0], sizes = [1, 8, 128], strides = [1, 1, 1]} : vector<8x8x128xf32> to vector<1x8x128xf32>
    %31 = vector.shape_cast %30 : vector<1x8x128xf32> to vector<8x128xf32>
    %32 = vector.extract_strided_slice %29 {offsets = [1, 0, 0], sizes = [1, 8, 128], strides = [1, 1, 1]} : vector<8x8x128xf32> to vector<1x8x128xf32>
    %33 = vector.shape_cast %32 : vector<1x8x128xf32> to vector<8x128xf32>
    %34 = arith.addf %31, %33 : vector<8x128xf32>
    %35 = vector.extract_strided_slice %29 {offsets = [2, 0, 0], sizes = [1, 8, 128], strides = [1, 1, 1]} : vector<8x8x128xf32> to vector<1x8x128xf32>
    %36 = vector.shape_cast %35 : vector<1x8x128xf32> to vector<8x128xf32>
    %37 = arith.addf %34, %36 : vector<8x128xf32>
    %38 = vector.extract_strided_slice %29 {offsets = [3, 0, 0], sizes = [1, 8, 128], strides = [1, 1, 1]} : vector<8x8x128xf32> to vector<1x8x128xf32>
    %39 = vector.shape_cast %38 : vector<1x8x128xf32> to vector<8x128xf32>
    %40 = arith.addf %37, %39 : vector<8x128xf32>
    %41 = vector.extract_strided_slice %29 {offsets = [4, 0, 0], sizes = [1, 8, 128], strides = [1, 1, 1]} : vector<8x8x128xf32> to vector<1x8x128xf32>
    %42 = vector.shape_cast %41 : vector<1x8x128xf32> to vector<8x128xf32>
    %43 = vector.extract_strided_slice %29 {offsets = [5, 0, 0], sizes = [1, 8, 128], strides = [1, 1, 1]} : vector<8x8x128xf32> to vector<1x8x128xf32>
    %44 = vector.shape_cast %43 : vector<1x8x128xf32> to vector<8x128xf32>
    %45 = arith.addf %42, %44 : vector<8x128xf32>
    %46 = vector.extract_strided_slice %29 {offsets = [6, 0, 0], sizes = [1, 8, 128], strides = [1, 1, 1]} : vector<8x8x128xf32> to vector<1x8x128xf32>
    %47 = vector.shape_cast %46 : vector<1x8x128xf32> to vector<8x128xf32>
    %48 = arith.addf %45, %47 : vector<8x128xf32>
    %49 = vector.extract_strided_slice %29 {offsets = [7, 0, 0], sizes = [1, 8, 128], strides = [1, 1, 1]} : vector<8x8x128xf32> to vector<1x8x128xf32>
    %50 = vector.shape_cast %49 : vector<1x8x128xf32> to vector<8x128xf32>
    %51 = arith.addf %48, %50 : vector<8x128xf32>
    %52 = tpu.concatenate %40, %51 in 0 : vector<8x128xf32>, vector<8x128xf32> -> vector<16x128xf32>
    %c0_35 = arith.constant 0 : index
    %c0_36 = arith.constant 0 : index
    %53 = vector.load %arg10[%c0_35, %c0_36] : memref<1x128xf32, #tpu.memory_space<vmem>>, vector<1x128xf32>
    %54 = vector.broadcast %53 : vector<1x128xf32> to vector<16x128xf32>
    %55 = arith.addf %52, %54 : vector<16x128xf32>
    %56 = arith.addf %55, %0 : vector<16x128xf32>
    %c0_37 = arith.constant 0 : index
    %c0_38 = arith.constant 0 : index
    %57 = vector.load %arg11[%c0_37, %c0_38] : memref<1x128xf32, #tpu.memory_space<vmem>>, vector<1x128xf32>
    %c0_39 = arith.constant 0 : index
    %c0_40 = arith.constant 0 : index
    %58 = vector.load %arg12[%c0_39, %c0_40] : memref<1x128xf32, #tpu.memory_space<vmem>>, vector<1x128xf32>
    %cst_41 = arith.constant dense<0.000000e+00> : vector<16xf32>
    %59 = vector.multi_reduction <add>, %56, %cst_41 [1] : vector<16x128xf32> to vector<16xf32>
    %60 = vector.shape_cast %59 : vector<16xf32> to vector<16x1xf32>
    %cst_42 = arith.constant 1.280000e+02 : f32
    %61 = vector.broadcast %cst_42 : f32 to vector<16x1xf32>
    %62 = arith.divf %60, %61 : vector<16x1xf32>
    %63 = vector.broadcast %62 : vector<16x1xf32> to vector<16x128xf32>
    %64 = arith.subf %56, %63 : vector<16x128xf32>
    %65 = arith.mulf %64, %64 : vector<16x128xf32>
    %cst_43 = arith.constant dense<0.000000e+00> : vector<16xf32>
    %66 = vector.multi_reduction <add>, %65, %cst_43 [1] : vector<16x128xf32> to vector<16xf32>
    %67 = vector.shape_cast %66 : vector<16xf32> to vector<16x1xf32>
    %cst_44 = arith.constant 1.280000e+02 : f32
    %68 = vector.broadcast %cst_44 : f32 to vector<16x1xf32>
    %69 = arith.divf %67, %68 : vector<16x1xf32>
    %cst_45 = arith.constant 9.99999974E-6 : f32
    %70 = vector.broadcast %cst_45 : f32 to vector<16x1xf32>
    %71 = arith.addf %69, %70 : vector<16x1xf32>
    %72 = math.rsqrt %71 : vector<16x1xf32>
    %73 = vector.broadcast %72 : vector<16x1xf32> to vector<16x128xf32>
    %74 = arith.mulf %64, %73 : vector<16x128xf32>
    %75 = vector.broadcast %57 : vector<1x128xf32> to vector<16x128xf32>
    %76 = arith.mulf %75, %74 : vector<16x128xf32>
    %77 = vector.broadcast %58 : vector<1x128xf32> to vector<16x128xf32>
    %78 = arith.addf %76, %77 : vector<16x128xf32>
    %c0_46 = arith.constant 0 : index
    %c0_47 = arith.constant 0 : index
    %79 = vector.load %arg13[%c0_46, %c0_47] : memref<128x256xf32, #tpu.memory_space<vmem>>, vector<128x256xf32>
    %cst_48 = arith.constant dense<0.000000e+00> : vector<16x256xf32>
    %80 = tpu.matmul %78, %79, %cst_48 {dimension_numbers = #tpu.dot_dimension_numbers<[1], [0], [0], [1], [0, 0, 1, 1], [], []>} : vector<16x128xf32>, vector<128x256xf32>, vector<16x256xf32> -> vector<16x256xf32>
    %c0_49 = arith.constant 0 : index
    %c0_50 = arith.constant 0 : index
    %81 = vector.load %arg14[%c0_49, %c0_50] : memref<1x256xf32, #tpu.memory_space<vmem>>, vector<1x256xf32>
    %82 = vector.broadcast %81 : vector<1x256xf32> to vector<16x256xf32>
    %83 = arith.addf %80, %82 : vector<16x256xf32>
    %cst_51 = arith.constant 0.000000e+00 : f32
    %84 = vector.broadcast %cst_51 : f32 to vector<16x256xf32>
    %85 = arith.maximumf %83, %84 : vector<16x256xf32>
    %c0_52 = arith.constant 0 : index
    %c0_53 = arith.constant 0 : index
    %86 = vector.load %arg15[%c0_52, %c0_53] : memref<256x128xf32, #tpu.memory_space<vmem>>, vector<256x128xf32>
    %cst_54 = arith.constant dense<0.000000e+00> : vector<16x128xf32>
    %87 = tpu.matmul %85, %86, %cst_54 {dimension_numbers = #tpu.dot_dimension_numbers<[1], [0], [0], [1], [0, 0, 1, 1], [], []>} : vector<16x256xf32>, vector<256x128xf32>, vector<16x128xf32> -> vector<16x128xf32>
    %c0_55 = arith.constant 0 : index
    %c0_56 = arith.constant 0 : index
    %88 = vector.load %arg16[%c0_55, %c0_56] : memref<1x128xf32, #tpu.memory_space<vmem>>, vector<1x128xf32>
    %89 = vector.broadcast %88 : vector<1x128xf32> to vector<16x128xf32>
    %90 = arith.addf %87, %89 : vector<16x128xf32>
    %91 = arith.addf %90, %78 : vector<16x128xf32>
    %c0_57 = arith.constant 0 : index
    %c0_58 = arith.constant 0 : index
    %92 = vector.load %arg17[%c0_57, %c0_58] : memref<1x128xf32, #tpu.memory_space<vmem>>, vector<1x128xf32>
    %c0_59 = arith.constant 0 : index
    %c0_60 = arith.constant 0 : index
    %93 = vector.load %arg18[%c0_59, %c0_60] : memref<1x128xf32, #tpu.memory_space<vmem>>, vector<1x128xf32>
    %cst_61 = arith.constant dense<0.000000e+00> : vector<16xf32>
    %94 = vector.multi_reduction <add>, %91, %cst_61 [1] : vector<16x128xf32> to vector<16xf32>
    %95 = vector.shape_cast %94 : vector<16xf32> to vector<16x1xf32>
    %cst_62 = arith.constant 1.280000e+02 : f32
    %96 = vector.broadcast %cst_62 : f32 to vector<16x1xf32>
    %97 = arith.divf %95, %96 : vector<16x1xf32>
    %98 = vector.broadcast %97 : vector<16x1xf32> to vector<16x128xf32>
    %99 = arith.subf %91, %98 : vector<16x128xf32>
    %100 = arith.mulf %99, %99 : vector<16x128xf32>
    %cst_63 = arith.constant dense<0.000000e+00> : vector<16xf32>
    %101 = vector.multi_reduction <add>, %100, %cst_63 [1] : vector<16x128xf32> to vector<16xf32>
    %102 = vector.shape_cast %101 : vector<16xf32> to vector<16x1xf32>
    %cst_64 = arith.constant 1.280000e+02 : f32
    %103 = vector.broadcast %cst_64 : f32 to vector<16x1xf32>
    %104 = arith.divf %102, %103 : vector<16x1xf32>
    %cst_65 = arith.constant 9.99999974E-6 : f32
    %105 = vector.broadcast %cst_65 : f32 to vector<16x1xf32>
    %106 = arith.addf %104, %105 : vector<16x1xf32>
    %107 = math.rsqrt %106 : vector<16x1xf32>
    %108 = vector.broadcast %107 : vector<16x1xf32> to vector<16x128xf32>
    %109 = arith.mulf %99, %108 : vector<16x128xf32>
    %110 = vector.broadcast %92 : vector<1x128xf32> to vector<16x128xf32>
    %111 = arith.mulf %110, %109 : vector<16x128xf32>
    %112 = vector.broadcast %93 : vector<1x128xf32> to vector<16x128xf32>
    %113 = arith.addf %111, %112 : vector<16x128xf32>
    %c0_66 = arith.constant 0 : index
    %c0_67 = arith.constant 0 : index
    %114 = vector.load %arg19[%c0_66, %c0_67] : memref<16x128xf32, #tpu.memory_space<vmem>>, vector<16x128xf32>
    tpu.vector_store %arg19[%c0_66, %c0_67], %113 {strides = array<i32>} : memref<16x128xf32, #tpu.memory_space<vmem>>, vector<16x128xf32>,
    return
  }
}

</mosaic_0001>

<llo_original>
// kernel: _encoder_layer_impl.1
$region0: #{_encoder_layer_impl.1}
  #allocation0 [shape = 'u32[]', space=smem, size = 0x4, offset = 0x4, fixed_abs, tag = 'smem constant byte address 0x4 - core index']
  #allocation1 [shape = 'u32[144,128]{1,0:T(1,128)}', space=vmem, size = 0x12000, scoped, tag = 'internal scratch']
  %s0 = inlined_call_operand.vmem [shape: f32[16,128], index: 0, kind: input, shape index: {}]
  %s1 = inlined_call_operand.vmem [shape: f32[8,8,128], index: 1, kind: input, shape index: {}]
  %s2 = inlined_call_operand.vmem [shape: f32[8,8,8], index: 2, kind: input, shape index: {}]
  %s3 = inlined_call_operand.vmem [shape: f32[8,32,128], index: 3, kind: input, shape index: {}]
  %s4 = inlined_call_operand.vmem [shape: f32[8,8,32], index: 4, kind: input, shape index: {}]
  %s5 = inlined_call_operand.vmem [shape: f32[8,32,128], index: 5, kind: input, shape index: {}]
  %s6 = inlined_call_operand.vmem [shape: f32[8,8,32], index: 6, kind: input, shape index: {}]
  %s7 = inlined_call_operand.vmem [shape: f32[8,32,128], index: 7, kind: input, shape index: {}]
  %s8 = inlined_call_operand.vmem [shape: f32[8,8,32], index: 8, kind: input, shape index: {}]
  %s9 = inlined_call_operand.vmem [shape: f32[8,32,128], index: 9, kind: input, shape index: {}]
  %s10 = inlined_call_operand.vmem [shape: f32[1,128], index: 10, kind: input, shape index: {}]
  %s11 = inlined_call_operand.vmem [shape: f32[1,128], index: 11, kind: input, shape index: {}]
  %s12 = inlined_call_operand.vmem [shape: f32[1,128], index: 12, kind: input, shape index: {}]
  %s13 = inlined_call_operand.vmem [shape: f32[128,256], index: 13, kind: input, shape index: {}]
  %s14 = inlined_call_operand.vmem [shape: f32[1,256], index: 14, kind: input, shape index: {}]
  %s15 = inlined_call_operand.vmem [shape: f32[256,128], index: 15, kind: input, shape index: {}]
  %s16 = inlined_call_operand.vmem [shape: f32[1,128], index: 16, kind: input, shape index: {}]
  %s17 = inlined_call_operand.vmem [shape: f32[1,128], index: 17, kind: input, shape index: {}]
  %s18 = inlined_call_operand.vmem [shape: f32[1,128], index: 18, kind: input, shape index: {}]
  %s19 = inlined_call_operand.hbm [shape: f32[16,128], index: 19, kind: output, shape index: {}]
  %s20 = sld [smem:[#allocation0]]
  $region86: #{_encoder_layer_impl.1} parent=0
    _
  %s22 = ssub.s32 1, %s20
  %s23 = scalar_select 0, %s22, %s20
  $region1: #{_encoder_layer_impl.1} parent=0
    #allocation2 [shape = 'u8[8192]{0}', space=vmem, size = 0x2000, scoped, tag = 'output window, operand 0, single buffered']
    #allocation3 [shape = 's32[1]{0}', space=sflag, size = 0x4, scoped, tag = 'scoped memory for _encoder_layer_impl.1']
    %24 = vsyncpa [#allocation3], 0
    // Predicated region
    $region2: #{_encoder_layer_impl.1} parent=1 // pred_check
      _
    $region3: #{_encoder_layer_impl.1} parent=1 // pred_check_branch
      %26 = sbr.rel (0) target = $region5
    $region4: #{_encoder_layer_impl.1} parent=1 // pred_region
      _
    $region5: #{_encoder_layer_impl.1} parent=1 // pred_fallthru
      _
    // Predicated region
    $region6: #{_encoder_layer_impl.1} parent=1 // pred_check
      _
    $region7: #{_encoder_layer_impl.1} parent=1 // pred_check_branch
      %28 = sbr.rel (0) target = $region9
    $region8: #{_encoder_layer_impl.1} parent=1 // pred_region
      _
    $region9: #{_encoder_layer_impl.1} parent=1 // pred_fallthru
      _
    // Predicated region
    $region10: #{_encoder_layer_impl.1} parent=1 // pred_check
      _
    $region11: #{_encoder_layer_impl.1} parent=1 // pred_check_branch
      %30 = sbr.rel (0) target = $region13
    $region12: #{_encoder_layer_impl.1} parent=1 // pred_region
      _
    $region13: #{_encoder_layer_impl.1} parent=1 // pred_fallthru
      _
    // Predicated region
    $region14: #{_encoder_layer_impl.1} parent=1 // pred_check
      _
    $region15: #{_encoder_layer_impl.1} parent=1 // pred_check_branch
      %32 = sbr.rel (0) target = $region17
    $region16: #{_encoder_layer_impl.1} parent=1 // pred_region
      _
    $region17: #{_encoder_layer_impl.1} parent=1 // pred_fallthru
      _
    // Predicated region
    $region18: #{_encoder_layer_impl.1} parent=1 // pred_check
      _
    $region19: #{_encoder_layer_impl.1} parent=1 // pred_check_branch
      %34 = sbr.rel (0) target = $region21
    $region20: #{_encoder_layer_impl.1} parent=1 // pred_region
      _
    $region21: #{_encoder_layer_impl.1} parent=1 // pred_fallthru
      _
    // Predicated region
    $region22: #{_encoder_layer_impl.1} parent=1 // pred_check
      _
    $region23: #{_encoder_layer_impl.1} parent=1 // pred_check_branch
      %36 = sbr.rel (0) target = $region25
    $region24: #{_encoder_layer_impl.1} parent=1 // pred_region
      _
    $region25: #{_encoder_layer_impl.1} parent=1 // pred_fallthru
      _
    // Predicated region
    $region26: #{_encoder_layer_impl.1} parent=1 // pred_check
      _
    $region27: #{_encoder_layer_impl.1} parent=1 // pred_check_branch
      %38 = sbr.rel (0) target = $region29
    $region28: #{_encoder_layer_impl.1} parent=1 // pred_region
      _
    $region29: #{_encoder_layer_impl.1} parent=1 // pred_fallthru
      _
    // Predicated region
    $region30: #{_encoder_layer_impl.1} parent=1 // pred_check
      _
    $region31: #{_encoder_layer_impl.1} parent=1 // pred_check_branch
      %40 = sbr.rel (0) target = $region33
    $region32: #{_encoder_layer_impl.1} parent=1 // pred_region
      _
    $region33: #{_encoder_layer_impl.1} parent=1 // pred_fallthru
      _
    // Predicated region
    $region34: #{_encoder_layer_impl.1} parent=1 // pred_check
      _
    $region35: #{_encoder_layer_impl.1} parent=1 // pred_check_branch
      %42 = sbr.rel (0) target = $region37
    $region36: #{_encoder_layer_impl.1} parent=1 // pred_region
      _
    $region37: #{_encoder_layer_impl.1} parent=1 // pred_fallthru
      _
    // Predicated region
    $region38: #{_encoder_layer_impl.1} parent=1 // pred_check
      _
    $region39: #{_encoder_layer_impl.1} parent=1 // pred_check_branch
      %44 = sbr.rel (0) target = $region41
    $region40: #{_encoder_layer_impl.1} parent=1 // pred_region
      _
    $region41: #{_encoder_layer_impl.1} parent=1 // pred_fallthru
      _
    // Predicated region
    $region42: #{_encoder_layer_impl.1} parent=1 // pred_check
      _
    $region43: #{_encoder_layer_impl.1} parent=1 // pred_check_branch
      %46 = sbr.rel (0) target = $region45
    $region44: #{_encoder_layer_impl.1} parent=1 // pred_region
      _
    $region45: #{_encoder_layer_impl.1} parent=1 // pred_fallthru
      _
    // Predicated region
    $region46: #{_encoder_layer_impl.1} parent=1 // pred_check
      _
    $region47: #{_encoder_layer_impl.1} parent=1 // pred_check_branch
      %48 = sbr.rel (0) target = $region49
    $region48: #{_encoder_layer_impl.1} parent=1 // pred_region
      _
    $region49: #{_encoder_layer_impl.1} parent=1 // pred_fallthru
      _
    // Predicated region
    $region50: #{_encoder_layer_impl.1} parent=1 // pred_check
      _
    $region51: #{_encoder_layer_impl.1} parent=1 // pred_check_branch
      %50 = sbr.rel (0) target = $region53
    $region52: #{_encoder_layer_impl.1} parent=1 // pred_region
      _
    $region53: #{_encoder_layer_impl.1} parent=1 // pred_fallthru
      _
    // Predicated region
    $region54: #{_encoder_layer_impl.1} parent=1 // pred_check
      _
    $region55: #{_encoder_layer_impl.1} parent=1 // pred_check_branch
      %52 = sbr.rel (0) target = $region57
    $region56: #{_encoder_layer_impl.1} parent=1 // pred_region
      _
    $region57: #{_encoder_layer_impl.1} parent=1 // pred_fallthru
      _
    // Predicated region
    $region58: #{_encoder_layer_impl.1} parent=1 // pred_check
      _
    $region59: #{_encoder_layer_impl.1} parent=1 // pred_check_branch
      %54 = sbr.rel (0) target = $region61
    $region60: #{_encoder_layer_impl.1} parent=1 // pred_region
      _
    $region61: #{_encoder_layer_impl.1} parent=1 // pred_fallthru
      _
    // Predicated region
    $region62: #{_encoder_layer_impl.1} parent=1 // pred_check
      _
    $region63: #{_encoder_layer_impl.1} parent=1 // pred_check_branch
      %56 = sbr.rel (0) target = $region65
    $region64: #{_encoder_layer_impl.1} parent=1 // pred_region
      _
    $region65: #{_encoder_layer_impl.1} parent=1 // pred_fallthru
      _
    // Predicated region
    $region66: #{_encoder_layer_impl.1} parent=1 // pred_check
      _
    $region67: #{_encoder_layer_impl.1} parent=1 // pred_check_branch
      %58 = sbr.rel (0) target = $region69
    $region68: #{_encoder_layer_impl.1} parent=1 // pred_region
      _
    $region69: #{_encoder_layer_impl.1} parent=1 // pred_fallthru
      _
    // Predicated region
    $region70: #{_encoder_layer_impl.1} parent=1 // pred_check
      _
    $region71: #{_encoder_layer_impl.1} parent=1 // pred_check_branch
      %60 = sbr.rel (0) target = $region73
    $region72: #{_encoder_layer_impl.1} parent=1 // pred_region
      _
    $region73: #{_encoder_layer_impl.1} parent=1 // pred_fallthru
      _
    // Predicated region
    $region74: #{_encoder_layer_impl.1} parent=1 // pred_check
      _
    $region75: #{_encoder_layer_impl.1} parent=1 // pred_check_branch
      %62 = sbr.rel (0) target = $region77
    $region76: #{_encoder_layer_impl.1} parent=1 // pred_region
      _
    $region77: #{_encoder_layer_impl.1} parent=1 // pred_fallthru
      _
    %v63 = vld [vmem:[%s0] sm:$0xff]
    %v64 = vld [vmem:[%s0 + $0x8] sm:$0xff]
    %v65 = vld [vmem:[%s1] sm:$0xff]
    %v66 = vld [vmem:[%s1 + $0x8] sm:$0xff]
    %v67 = vld [vmem:[%s1 + $0x10] sm:$0xff]
    %v68 = vld [vmem:[%s1 + $0x18] sm:$0xff]
    %v69 = vld [vmem:[%s1 + $0x20] sm:$0xff]
    %v70 = vld [vmem:[%s1 + $0x28] sm:$0xff]
    %v71 = vld [vmem:[%s1 + $0x30] sm:$0xff]
    %v72 = vld [vmem:[%s1 + $0x38] sm:$0xff]
    %v73 = vld [vmem:[%s3] sm:$0xff]
    %v74 = vld [vmem:[%s3 + $0x8] sm:$0xff]
    %v75 = vld [vmem:[%s3 + $0x10] sm:$0xff]
    %v76 = vld [vmem:[%s3 + $0x18] sm:$0xff]
    %v77 = vld [vmem:[%s3 + $0x20] sm:$0xff]
    %v78 = vld [vmem:[%s3 + $0x28] sm:$0xff]
    %v79 = vld [vmem:[%s3 + $0x30] sm:$0xff]
    %v80 = vld [vmem:[%s3 + $0x38] sm:$0xff]
    %v81 = vld [vmem:[%s3 + $0x40] sm:$0xff]
    %v82 = vld [vmem:[%s3 + $0x48] sm:$0xff]
    %v83 = vld [vmem:[%s3 + $0x50] sm:$0xff]
    %v84 = vld [vmem:[%s3 + $0x58] sm:$0xff]
    %v85 = vld [vmem:[%s3 + $0x60] sm:$0xff]
    %v86 = vld [vmem:[%s3 + $0x68] sm:$0xff]
    %v87 = vld [vmem:[%s3 + $0x70] sm:$0xff]
    %v88 = vld [vmem:[%s3 + $0x78] sm:$0xff]
    %v89 = vld [vmem:[%s3 + $0x80] sm:$0xff]
    %v90 = vld [vmem:[%s3 + $0x88] sm:$0xff]
    %v91 = vld [vmem:[%s3 + $0x90] sm:$0xff]
    %v92 = vld [vmem:[%s3 + $0x98] sm:$0xff]
    %v93 = vld [vmem:[%s3 + $0xa0] sm:$0xff]
    %v94 = vld [vmem:[%s3 + $0xa8] sm:$0xff]
    %v95 = vld [vmem:[%s3 + $0xb0] sm:$0xff]
    %v96 = vld [vmem:[%s3 + $0xb8] sm:$0xff]
    %v97 = vld [vmem:[%s3 + $0xc0] sm:$0xff]
    %v98 = vld [vmem:[%s3 + $0xc8] sm:$0xff]
    %v99 = vld [vmem:[%s3 + $0xd0] sm:$0xff]
    %v100 = vld [vmem:[%s3 + $0xd8] sm:$0xff]
    %v101 = vld [vmem:[%s3 + $0xe0] sm:$0xff]
    %v102 = vld [vmem:[%s3 + $0xe8] sm:$0xff]
    %v103 = vld [vmem:[%s3 + $0xf0] sm:$0xff]
    %v104 = vld [vmem:[%s3 + $0xf8] sm:$0xff]
    %v105 = vld [vmem:[%s4] sm:$0xff]
    %v106 = vld [vmem:[%s4 + $0x8] sm:$0xff]
    %v107 = vld [vmem:[%s4 + $0x10] sm:$0xff]
    %v108 = vld [vmem:[%s4 + $0x18] sm:$0xff]
    %v109 = vld [vmem:[%s4 + $0x20] sm:$0xff]
    %v110 = vld [vmem:[%s4 + $0x28] sm:$0xff]
    %v111 = vld [vmem:[%s4 + $0x30] sm:$0xff]
    %v112 = vld [vmem:[%s4 + $0x38] sm:$0xff]
    %113 = vmatprep.subr.mxu0 0.0
    %114 = vmatpush1.xpose.msra.mxu0 0.0
    %115 = vmatprep.subr.mxu0 0.0
    %116 = vmatpush1.xpose.msra.mxu0 0.0
    %117 = vmatprep.subr.mxu0 0.0
    %118 = vmatpush1.xpose.msra.mxu0 0.0
    %119 = vmatprep.subr.mxu0 0.0
    %120 = vmatpush1.xpose.msra.mxu0 0.0
    %121 = vmatprep.subr.mxu0 0.0
    %122 = vmatpush1.xpose.msra.mxu0 0.0
    %123 = vmatprep.subr.mxu0 0.0
    %124 = vmatpush1.xpose.msra.mxu0 0.0
    %125 = vmatprep.subr.mxu0 0.0
    %126 = vmatpush1.xpose.msra.mxu0 0.0
    %127 = vmatprep.subr.mxu0 0.0
    %128 = vmatpush1.xpose.msra.mxu0 0.0
    %129 = vmatprep.subr.mxu0 0.0
    %130 = vmatpush1.xpose.msra.mxu0 0.0
    %131 = vmatprep.subr.mxu0 0.0
    %132 = vmatpush1.xpose.msra.mxu0 0.0
    %133 = vmatprep.subr.mxu0 0.0
    %134 = vmatpush1.xpose.msra.mxu0 0.0
    %135 = vmatprep.subr.mxu0 0.0
    %136 = vmatpush1.xpose.msra.mxu0 0.0
    %137 = vmatprep.subr.mxu0 0.0
    %138 = vmatpush1.xpose.msra.mxu0 %v76
    %139 = vmatprep.subr.mxu0 0.0
    %140 = vmatpush1.xpose.msra.mxu0 %v75
    %141 = vmatprep.subr.mxu0 0.0
    %142 = vmatpush1.xpose.msra.mxu0 %v74
    %143 = vmatprep.subr.mxu0 0.0
    %144 = vmatpush1.xpose.msra.mxu0 %v73
    %145 = vmatprep.subr.mxu0 0.0
    %146 = vmatpush2.xpose.msra.mxu0 0.0
    %147 = vmatprep.subr.mxu0 0.0
    %148 = vmatpush2.xpose.msra.mxu0 0.0
    %149 = vmatprep.subr.mxu0 0.0
    %150 = vmatpush2.xpose.msra.mxu0 0.0
    %151 = vmatprep.subr.mxu0 0.0
    %152 = vmatpush2.xpose.msra.mxu0 0.0
    %153 = vmatprep.subr.mxu0 0.0
    %154 = vmatpush2.xpose.msra.mxu0 0.0
    %155 = vmatprep.subr.mxu0 0.0
    %156 = vmatpush2.xpose.msra.mxu0 0.0
    %157 = vmatprep.subr.mxu0 0.0
    %158 = vmatpush2.xpose.msra.mxu0 0.0
    %159 = vmatprep.subr.mxu0 0.0
    %160 = vmatpush2.xpose.msra.mxu0 0.0
    %161 = vmatprep.subr.mxu0 0.0
    %162 = vmatpush2.xpose.msra.mxu0 0.0
    %163 = vmatprep.subr.mxu0 0.0
    %164 = vmatpush2.xpose.msra.mxu0 0.0
    %165 = vmatprep.subr.mxu0 0.0
    %166 = vmatpush2.xpose.msra.mxu0 0.0
    %167 = vmatprep.subr.mxu0 0.0
    %168 = vmatpush2.xpose.msra.mxu0 0.0
    %169 = vmatprep.subr.mxu0 0.0
    %170 = vmatpush2.xpose.msra.mxu0 0.0
    %171 = vmatprep.subr.mxu0 0.0
    %172 = vmatpush2.xpose.msra.mxu0 0.0
    %173 = vmatprep.subr.mxu0 0.0
    %174 = vmatpush2.xpose.msra.mxu0 0.0
    %175 = vmatprep.subr.mxu0 0.0
    %176 = vmatpush2.xpose.msra.mxu0 0.0
    %177 = vmatprep.mubr.f32.mxu0 0.0
    %178 = vmatmul.mubr.f32.gmra.mxu0 %v65
    %v179 = vpop.f32.mrf.mxu0
    %v180 = vadd.f32 %v105, %v179
    %v181 = vpop.f32.mrf.mxu0
    %182 = vdwg.mxu0
    %183 = vmatprep.subr.mxu0 0.0
    %184 = vmatpush1.xpose.msra.mxu0 0.0
    %185 = vmatprep.subr.mxu0 0.0
    %186 = vmatpush1.xpose.msra.mxu0 0.0
    %187 = vmatprep.subr.mxu0 0.0
    %188 = vmatpush1.xpose.msra.mxu0 0.0
    %189 = vmatprep.subr.mxu0 0.0
    %190 = vmatpush1.xpose.msra.mxu0 0.0
    %191 = vmatprep.subr.mxu0 0.0
    %192 = vmatpush1.xpose.msra.mxu0 0.0
    %193 = vmatprep.subr.mxu0 0.0
    %194 = vmatpush1.xpose.msra.mxu0 0.0
    %195 = vmatprep.subr.mxu0 0.0
    %196 = vmatpush1.xpose.msra.mxu0 0.0
    %197 = vmatprep.subr.mxu0 0.0
    %198 = vmatpush1.xpose.msra.mxu0 0.0
    %199 = vmatprep.subr.mxu0 0.0
    %200 = vmatpush1.xpose.msra.mxu0 0.0
    %201 = vmatprep.subr.mxu0 0.0
    %202 = vmatpush1.xpose.msra.mxu0 0.0
    %203 = vmatprep.subr.mxu0 0.0
    %204 = vmatpush1.xpose.msra.mxu0 0.0
    %205 = vmatprep.subr.mxu0 0.0
    %206 = vmatpush1.xpose.msra.mxu0 0.0
    %207 = vmatprep.subr.mxu0 0.0
    %208 = vmatpush1.xpose.msra.mxu0 %v80
    %209 = vmatprep.subr.mxu0 0.0
    %210 = vmatpush1.xpose.msra.mxu0 %v79
    %211 = vmatprep.subr.mxu0 0.0
    %212 = vmatpush1.xpose.msra.mxu0 %v78
    %213 = vmatprep.subr.mxu0 0.0
    %214 = vmatpush1.xpose.msra.mxu0 %v77
    %215 = vmatprep.subr.mxu0 0.0
    %216 = vmatpush2.xpose.msra.mxu0 0.0
    %217 = vmatprep.subr.mxu0 0.0
    %218 = vmatpush2.xpose.msra.mxu0 0.0
    %219 = vmatprep.subr.mxu0 0.0
    %220 = vmatpush2.xpose.msra.mxu0 0.0
    %221 = vmatprep.subr.mxu0 0.0
    %222 = vmatpush2.xpose.msra.mxu0 0.0
    %223 = vmatprep.subr.mxu0 0.0
    %224 = vmatpush2.xpose.msra.mxu0 0.0
    %225 = vmatprep.subr.mxu0 0.0
    %226 = vmatpush2.xpose.msra.mxu0 0.0
    %227 = vmatprep.subr.mxu0 0.0
    %228 = vmatpush2.xpose.msra.mxu0 0.0
    %229 = vmatprep.subr.mxu0 0.0
    %230 = vmatpush2.xpose.msra.mxu0 0.0
    %231 = vmatprep.subr.mxu0 0.0
    %232 = vmatpush2.xpose.msra.mxu0 0.0
    %233 = vmatprep.subr.mxu0 0.0
    %234 = vmatpush2.xpose.msra.mxu0 0.0
    %235 = vmatprep.subr.mxu0 0.0
    %236 = vmatpush2.xpose.msra.mxu0 0.0
    %237 = vmatprep.subr.mxu0 0.0
    %238 = vmatpush2.xpose.msra.mxu0 0.0
    %239 = vmatprep.subr.mxu0 0.0
    %240 = vmatpush2.xpose.msra.mxu0 0.0
    %241 = vmatprep.subr.mxu0 0.0
    %242 = vmatpush2.xpose.msra.mxu0 0.0
    %243 = vmatprep.subr.mxu0 0.0
    %244 = vmatpush2.xpose.msra.mxu0 0.0
    %245 = vmatprep.subr.mxu0 0.0
    %246 = vmatpush2.xpose.msra.mxu0 0.0
    %247 = vmatprep.mubr.f32.mxu0 0.0
    %248 = vmatmul.mubr.f32.gmra.mxu0 %v66
    %v249 = vpop.f32.mrf.mxu0
    %v250 = vadd.f32 %v106, %v249
    %v251 = vpop.f32.mrf.mxu0
    %252 = vdwg.mxu0
    %253 = vmatprep.subr.mxu0 0.0
    %254 = vmatpush1.xpose.msra.mxu0 0.0
    %255 = vmatprep.subr.mxu0 0.0
    %256 = vmatpush1.xpose.msra.mxu0 0.0
    %257 = vmatprep.subr.mxu0 0.0
    %258 = vmatpush1.xpose.msra.mxu0 0.0
    %259 = vmatprep.subr.mxu0 0.0
    %260 = vmatpush1.xpose.msra.mxu0 0.0
    %261 = vmatprep.subr.mxu0 0.0
    %262 = vmatpush1.xpose.msra.mxu0 0.0
    %263 = vmatprep.subr.mxu0 0.0
    %264 = vmatpush1.xpose.msra.mxu0 0.0
    %265 = vmatprep.subr.mxu0 0.0
    %266 = vmatpush1.xpose.msra.mxu0 0.0
    %267 = vmatprep.subr.mxu0 0.0
    %268 = vmatpush1.xpose.msra.mxu0 0.0
    %269 = vmatprep.subr.mxu0 0.0
    %270 = vmatpush1.xpose.msra.mxu0 0.0
    %271 = vmatprep.subr.mxu0 0.0
    %272 = vmatpush1.xpose.msra.mxu0 0.0
    %273 = vmatprep.subr.mxu0 0.0
    %274 = vmatpush1.xpose.msra.mxu0 0.0
    %275 = vmatprep.subr.mxu0 0.0
    %276 = vmatpush1.xpose.msra.mxu0 0.0
    %277 = vmatprep.subr.mxu0 0.0
    %278 = vmatpush1.xpose.msra.mxu0 %v84
    %279 = vmatprep.subr.mxu0 0.0
    %280 = vmatpush1.xpose.msra.mxu0 %v83
    %281 = vmatprep.subr.mxu0 0.0
    %282 = vmatpush1.xpose.msra.mxu0 %v82
    %283 = vmatprep.subr.mxu0 0.0
    %284 = vmatpush1.xpose.msra.mxu0 %v81
    %285 = vmatprep.subr.mxu0 0.0
    %286 = vmatpush2.xpose.msra.mxu0 0.0
    %287 = vmatprep.subr.mxu0 0.0
    %288 = vmatpush2.xpose.msra.mxu0 0.0
    %289 = vmatprep.subr.mxu0 0.0
    %290 = vmatpush2.xpose.msra.mxu0 0.0
    %291 = vmatprep.subr.mxu0 0.0
    %292 = vmatpush2.xpose.msra.mxu0 0.0
    %293 = vmatprep.subr.mxu0 0.0
    %294 = vmatpush2.xpose.msra.mxu0 0.0
    %295 = vmatprep.subr.mxu0 0.0
    %296 = vmatpush2.xpose.msra.mxu0 0.0
    %297 = vmatprep.subr.mxu0 0.0
    %298 = vmatpush2.xpose.msra.mxu0 0.0
    %299 = vmatprep.subr.mxu0 0.0
    %300 = vmatpush2.xpose.msra.mxu0 0.0
    %301 = vmatprep.subr.mxu0 0.0
    %302 = vmatpush2.xpose.msra.mxu0 0.0
    %303 = vmatprep.subr.mxu0 0.0
    %304 = vmatpush2.xpose.msra.mxu0 0.0
    %305 = vmatprep.subr.mxu0 0.0
    %306 = vmatpush2.xpose.msra.mxu0 0.0
    %307 = vmatprep.subr.mxu0 0.0
    %308 = vmatpush2.xpose.msra.mxu0 0.0
    %309 = vmatprep.subr.mxu0 0.0
    %310 = vmatpush2.xpose.msra.mxu0 0.0
    %311 = vmatprep.subr.mxu0 0.0
    %312 = vmatpush2.xpose.msra.mxu0 0.0
    %313 = vmatprep.subr.mxu0 0.0
    %314 = vmatpush2.xpose.msra.mxu0 0.0
    %315 = vmatprep.subr.mxu0 0.0
    %316 = vmatpush2.xpose.msra.mxu0 0.0
    %317 = vmatprep.mubr.f32.mxu0 0.0
    %318 = vmatmul.mubr.f32.gmra.mxu0 %v67
    %v319 = vpop.f32.mrf.mxu0
    %v320 = vadd.f32 %v107, %v319
    %v321 = vpop.f32.mrf.mxu0
    %322 = vdwg.mxu0
    %323 = vmatprep.subr.mxu0 0.0
    %324 = vmatpush1.xpose.msra.mxu0 0.0
    %325 = vmatprep.subr.mxu0 0.0
    %326 = vmatpush1.xpose.msra.mxu0 0.0
    %327 = vmatprep.subr.mxu0 0.0
    %328 = vmatpush1.xpose.msra.mxu0 0.0
    %329 = vmatprep.subr.mxu0 0.0
    %330 = vmatpush1.xpose.msra.mxu0 0.0
    %331 = vmatprep.subr.mxu0 0.0
    %332 = vmatpush1.xpose.msra.mxu0 0.0
    %333 = vmatprep.subr.mxu0 0.0
    %334 = vmatpush1.xpose.msra.mxu0 0.0
    %335 = vmatprep.subr.mxu0 0.0
    %336 = vmatpush1.xpose.msra.mxu0 0.0
    %337 = vmatprep.subr.mxu0 0.0
    %338 = vmatpush1.xpose.msra.mxu0 0.0
    %339 = vmatprep.subr.mxu0 0.0
    %340 = vmatpush1.xpose.msra.mxu0 0.0
    %341 = vmatprep.subr.mxu0 0.0
    %342 = vmatpush1.xpose.msra.mxu0 0.0
    %343 = vmatprep.subr.mxu0 0.0
    %344 = vmatpush1.xpose.msra.mxu0 0.0
    %345 = vmatprep.subr.mxu0 0.0
    %346 = vmatpush1.xpose.msra.mxu0 0.0
    %347 = vmatprep.subr.mxu0 0.0
    %348 = vmatpush1.xpose.msra.mxu0 %v88
    %349 = vmatprep.subr.mxu0 0.0
    %350 = vmatpush1.xpose.msra.mxu0 %v87
    %351 = vmatprep.subr.mxu0 0.0
    %352 = vmatpush1.xpose.msra.mxu0 %v86
    %353 = vmatprep.subr.mxu0 0.0
    %354 = vmatpush1.xpose.msra.mxu0 %v85
    %355 = vmatprep.subr.mxu0 0.0
    %356 = vmatpush2.xpose.msra.mxu0 0.0
    %357 = vmatprep.subr.mxu0 0.0
    %358 = vmatpush2.xpose.msra.mxu0 0.0
    %359 = vmatprep.subr.mxu0 0.0
    %360 = vmatpush2.xpose.msra.mxu0 0.0
    %361 = vmatprep.subr.mxu0 0.0
    %362 = vmatpush2.xpose.msra.mxu0 0.0
    %363 = vmatprep.subr.mxu0 0.0
    %364 = vmatpush2.xpose.msra.mxu0 0.0
    %365 = vmatprep.subr.mxu0 0.0
    %366 = vmatpush2.xpose.msra.mxu0 0.0
    %367 = vmatprep.subr.mxu0 0.0
    %368 = vmatpush2.xpose.msra.mxu0 0.0
    %369 = vmatprep.subr.mxu0 0.0
    %370 = vmatpush2.xpose.msra.mxu0 0.0
    %371 = vmatprep.subr.mxu0 0.0
    %372 = vmatpush2.xpose.msra.mxu0 0.0
    %373 = vmatprep.subr.mxu0 0.0
    %374 = vmatpush2.xpose.msra.mxu0 0.0
    %375 = vmatprep.subr.mxu0 0.0
    %376 = vmatpush2.xpose.msra.mxu0 0.0
    %377 = vmatprep.subr.mxu0 0.0
    %378 = vmatpush2.xpose.msra.mxu0 0.0
    %379 = vmatprep.subr.mxu0 0.0
    %380 = vmatpush2.xpose.msra.mxu0 0.0
    %381 = vmatprep.subr.mxu0 0.0
    %382 = vmatpush2.xpose.msra.mxu0 0.0
    %383 = vmatprep.subr.mxu0 0.0
    %384 = vmatpush2.xpose.msra.mxu0 0.0
    %385 = vmatprep.subr.mxu0 0.0
    %386 = vmatpush2.xpose.msra.mxu0 0.0
    %387 = vmatprep.mubr.f32.mxu0 0.0
    %388 = vmatmul.mubr.f32.gmra.mxu0 %v68
    %v389 = vpop.f32.mrf.mxu0
    %v390 = vadd.f32 %v108, %v389
    %v391 = vpop.f32.mrf.mxu0
    %392 = vdwg.mxu0
    %393 = vmatprep.subr.mxu0 0.0
    %394 = vmatpush1.xpose.msra.mxu0 0.0
    %395 = vmatprep.subr.mxu0 0.0
    %396 = vmatpush1.xpose.msra.mxu0 0.0
    %397 = vmatprep.subr.mxu0 0.0
    %398 = vmatpush1.xpose.msra.mxu0 0.0
    %399 = vmatprep.subr.mxu0 0.0
    %400 = vmatpush1.xpose.msra.mxu0 0.0
    %401 = vmatprep.subr.mxu0 0.0
    %402 = vmatpush1.xpose.msra.mxu0 0.0
    %403 = vmatprep.subr.mxu0 0.0
    %404 = vmatpush1.xpose.msra.mxu0 0.0
    %405 = vmatprep.subr.mxu0 0.0
    %406 = vmatpush1.xpose.msra.mxu0 0.0
    %407 = vmatprep.subr.mxu0 0.0
    %408 = vmatpush1.xpose.msra.mxu0 0.0
    %409 = vmatprep.subr.mxu0 0.0
    %410 = vmatpush1.xpose.msra.mxu0 0.0
    %411 = vmatprep.subr.mxu0 0.0
    %412 = vmatpush1.xpose.msra.mxu0 0.0
    %413 = vmatprep.subr.mxu0 0.0
    %414 = vmatpush1.xpose.msra.mxu0 0.0
    %415 = vmatprep.subr.mxu0 0.0
    %416 = vmatpush1.xpose.msra.mxu0 0.0
    %417 = vmatprep.subr.mxu0 0.0
    %418 = vmatpush1.xpose.msra.mxu0 %v92
    %419 = vmatprep.subr.mxu0 0.0
    %420 = vmatpush1.xpose.msra.mxu0 %v91
    %421 = vmatprep.subr.mxu0 0.0
    %422 = vmatpush1.xpose.msra.mxu0 %v90
    %423 = vmatprep.subr.mxu0 0.0
    %424 = vmatpush1.xpose.msra.mxu0 %v89
    %425 = vmatprep.subr.mxu0 0.0
    %426 = vmatpush2.xpose.msra.mxu0 0.0
    %427 = vmatprep.subr.mxu0 0.0
    %428 = vmatpush2.xpose.msra.mxu0 0.0
    %429 = vmatprep.subr.mxu0 0.0
    %430 = vmatpush2.xpose.msra.mxu0 0.0
    %431 = vmatprep.subr.mxu0 0.0
    %432 = vmatpush2.xpose.msra.mxu0 0.0
    %433 = vmatprep.subr.mxu0 0.0
    %434 = vmatpush2.xpose.msra.mxu0 0.0
    %435 = vmatprep.subr.mxu0 0.0
    %436 = vmatpush2.xpose.msra.mxu0 0.0
    %437 = vmatprep.subr.mxu0 0.0
    %438 = vmatpush2.xpose.msra.mxu0 0.0
    %439 = vmatprep.subr.mxu0 0.0
    %440 = vmatpush2.xpose.msra.mxu0 0.0
    %441 = vmatprep.subr.mxu0 0.0
    %442 = vmatpush2.xpose.msra.mxu0 0.0
    %443 = vmatprep.subr.mxu0 0.0
    %444 = vmatpush2.xpose.msra.mxu0 0.0
    %445 = vmatprep.subr.mxu0 0.0
    %446 = vmatpush2.xpose.msra.mxu0 0.0
    %447 = vmatprep.subr.mxu0 0.0
    %448 = vmatpush2.xpose.msra.mxu0 0.0
    %449 = vmatprep.subr.mxu0 0.0
    %450 = vmatpush2.xpose.msra.mxu0 0.0
    %451 = vmatprep.subr.mxu0 0.0
    %452 = vmatpush2.xpose.msra.mxu0 0.0
    %453 = vmatprep.subr.mxu0 0.0
    %454 = vmatpush2.xpose.msra.mxu0 0.0
    %455 = vmatprep.subr.mxu0 0.0
    %456 = vmatpush2.xpose.msra.mxu0 0.0
    %457 = vmatprep.mubr.f32.mxu0 0.0
    %458 = vmatmul.mubr.f32.gmra.mxu0 %v69
    %v459 = vpop.f32.mrf.mxu0
    %v460 = vadd.f32 %v109, %v459
    %v461 = vpop.f32.mrf.mxu0
    %462 = vdwg.mxu0
    %463 = vmatprep.subr.mxu0 0.0
    %464 = vmatpush1.xpose.msra.mxu0 0.0
    %465 = vmatprep.subr.mxu0 0.0
    %466 = vmatpush1.xpose.msra.mxu0 0.0
    %467 = vmatprep.subr.mxu0 0.0
    %468 = vmatpush1.xpose.msra.mxu0 0.0
    %469 = vmatprep.subr.mxu0 0.0
    %470 = vmatpush1.xpose.msra.mxu0 0.0
    %471 = vmatprep.subr.mxu0 0.0
    %472 = vmatpush1.xpose.msra.mxu0 0.0
    %473 = vmatprep.subr.mxu0 0.0
    %474 = vmatpush1.xpose.msra.mxu0 0.0
    %475 = vmatprep.subr.mxu0 0.0
    %476 = vmatpush1.xpose.msra.mxu0 0.0
    %477 = vmatprep.subr.mxu0 0.0
    %478 = vmatpush1.xpose.msra.mxu0 0.0
    %479 = vmatprep.subr.mxu0 0.0
    %480 = vmatpush1.xpose.msra.mxu0 0.0
    %481 = vmatprep.subr.mxu0 0.0
    %482 = vmatpush1.xpose.msra.mxu0 0.0
    %483 = vmatprep.subr.mxu0 0.0
    %484 = vmatpush1.xpose.msra.mxu0 0.0
    %485 = vmatprep.subr.mxu0 0.0
    %486 = vmatpush1.xpose.msra.mxu0 0.0
    %487 = vmatprep.subr.mxu0 0.0
    %488 = vmatpush1.xpose.msra.mxu0 %v96
    %489 = vmatprep.subr.mxu0 0.0
    %490 = vmatpush1.xpose.msra.mxu0 %v95
    %491 = vmatprep.subr.mxu0 0.0
    %492 = vmatpush1.xpose.msra.mxu0 %v94
    %493 = vmatprep.subr.mxu0 0.0
    %494 = vmatpush1.xpose.msra.mxu0 %v93
    %495 = vmatprep.subr.mxu0 0.0
    %496 = vmatpush2.xpose.msra.mxu0 0.0
    %497 = vmatprep.subr.mxu0 0.0
    %498 = vmatpush2.xpose.msra.mxu0 0.0
    %499 = vmatprep.subr.mxu0 0.0
    %500 = vmatpush2.xpose.msra.mxu0 0.0
    %501 = vmatprep.subr.mxu0 0.0
    %502 = vmatpush2.xpose.msra.mxu0 0.0
    %503 = vmatprep.subr.mxu0 0.0
    %504 = vmatpush2.xpose.msra.mxu0 0.0
    %505 = vmatprep.subr.mxu0 0.0
    %506 = vmatpush2.xpose.msra.mxu0 0.0
    %507 = vmatprep.subr.mxu0 0.0
    %508 = vmatpush2.xpose.msra.mxu0 0.0
    %509 = vmatprep.subr.mxu0 0.0
    %510 = vmatpush2.xpose.msra.mxu0 0.0
    %511 = vmatprep.subr.mxu0 0.0
    %512 = vmatpush2.xpose.msra.mxu0 0.0
    %513 = vmatprep.subr.mxu0 0.0
    %514 = vmatpush2.xpose.msra.mxu0 0.0
    %515 = vmatprep.subr.mxu0 0.0
    %516 = vmatpush2.xpose.msra.mxu0 0.0
    %517 = vmatprep.subr.mxu0 0.0
    %518 = vmatpush2.xpose.msra.mxu0 0.0
    %519 = vmatprep.subr.mxu0 0.0
    %520 = vmatpush2.xpose.msra.mxu0 0.0
    %521 = vmatprep.subr.mxu0 0.0
    %522 = vmatpush2.xpose.msra.mxu0 0.0
    %523 = vmatprep.subr.mxu0 0.0
    %524 = vmatpush2.xpose.msra.mxu0 0.0
    %525 = vmatprep.subr.mxu0 0.0
    %526 = vmatpush2.xpose.msra.mxu0 0.0
    %527 = vmatprep.mubr.f32.mxu0 0.0
    %528 = vmatmul.mubr.f32.gmra.mxu0 %v70
    %v529 = vpop.f32.mrf.mxu0
    %v530 = vadd.f32 %v110, %v529
    %v531 = vpop.f32.mrf.mxu0
    %532 = vdwg.mxu0
    %533 = vmatprep.subr.mxu0 0.0
    %534 = vmatpush1.xpose.msra.mxu0 0.0
    %535 = vmatprep.subr.mxu0 0.0
    %536 = vmatpush1.xpose.msra.mxu0 0.0
    %537 = vmatprep.subr.mxu0 0.0
    %538 = vmatpush1.xpose.msra.mxu0 0.0
    %539 = vmatprep.subr.mxu0 0.0
    %540 = vmatpush1.xpose.msra.mxu0 0.0
    %541 = vmatprep.subr.mxu0 0.0
    %542 = vmatpush1.xpose.msra.mxu0 0.0
    %543 = vmatprep.subr.mxu0 0.0
    %544 = vmatpush1.xpose.msra.mxu0 0.0
    %545 = vmatprep.subr.mxu0 0.0
    %546 = vmatpush1.xpose.msra.mxu0 0.0
    %547 = vmatprep.subr.mxu0 0.0
    %548 = vmatpush1.xpose.msra.mxu0 0.0
    %549 = vmatprep.subr.mxu0 0.0
    %550 = vmatpush1.xpose.msra.mxu0 0.0
    %551 = vmatprep.subr.mxu0 0.0
    %552 = vmatpush1.xpose.msra.mxu0 0.0
    %553 = vmatprep.subr.mxu0 0.0
    %554 = vmatpush1.xpose.msra.mxu0 0.0
    %555 = vmatprep.subr.mxu0 0.0
    %556 = vmatpush1.xpose.msra.mxu0 0.0
    %557 = vmatprep.subr.mxu0 0.0
    %558 = vmatpush1.xpose.msra.mxu0 %v100
    %559 = vmatprep.subr.mxu0 0.0
    %560 = vmatpush1.xpose.msra.mxu0 %v99
    %561 = vmatprep.subr.mxu0 0.0
    %562 = vmatpush1.xpose.msra.mxu0 %v98
    %563 = vmatprep.subr.mxu0 0.0
    %564 = vmatpush1.xpose.msra.mxu0 %v97
    %565 = vmatprep.subr.mxu0 0.0
    %566 = vmatpush2.xpose.msra.mxu0 0.0
    %567 = vmatprep.subr.mxu0 0.0
    %568 = vmatpush2.xpose.msra.mxu0 0.0
    %569 = vmatprep.subr.mxu0 0.0
    %570 = vmatpush2.xpose.msra.mxu0 0.0
    %571 = vmatprep.subr.mxu0 0.0
    %572 = vmatpush2.xpose.msra.mxu0 0.0
    %573 = vmatprep.subr.mxu0 0.0
    %574 = vmatpush2.xpose.msra.mxu0 0.0
    %575 = vmatprep.subr.mxu0 0.0
    %576 = vmatpush2.xpose.msra.mxu0 0.0
    %577 = vmatprep.subr.mxu0 0.0
    %578 = vmatpush2.xpose.msra.mxu0 0.0
    %579 = vmatprep.subr.mxu0 0.0
    %580 = vmatpush2.xpose.msra.mxu0 0.0
    %581 = vmatprep.subr.mxu0 0.0
    %582 = vmatpush2.xpose.msra.mxu0 0.0
    %583 = vmatprep.subr.mxu0 0.0
    %584 = vmatpush2.xpose.msra.mxu0 0.0
    %585 = vmatprep.subr.mxu0 0.0
    %586 = vmatpush2.xpose.msra.mxu0 0.0
    %587 = vmatprep.subr.mxu0 0.0
    %588 = vmatpush2.xpose.msra.mxu0 0.0
    %589 = vmatprep.subr.mxu0 0.0
    %590 = vmatpush2.xpose.msra.mxu0 0.0
    %591 = vmatprep.subr.mxu0 0.0
    %592 = vmatpush2.xpose.msra.mxu0 0.0
    %593 = vmatprep.subr.mxu0 0.0
    %594 = vmatpush2.xpose.msra.mxu0 0.0
    %595 = vmatprep.subr.mxu0 0.0
    %596 = vmatpush2.xpose.msra.mxu0 0.0
    %597 = vmatprep.mubr.f32.mxu0 0.0
    %598 = vmatmul.mubr.f32.gmra.mxu0 %v71
    %v599 = vpop.f32.mrf.mxu0
    %v600 = vadd.f32 %v111, %v599
    %v601 = vpop.f32.mrf.mxu0
    %602 = vdwg.mxu0
    %603 = vmatprep.subr.mxu0 0.0
    %604 = vmatpush1.xpose.msra.mxu0 0.0
    %605 = vmatprep.subr.mxu0 0.0
    %606 = vmatpush1.xpose.msra.mxu0 0.0
    %607 = vmatprep.subr.mxu0 0.0
    %608 = vmatpush1.xpose.msra.mxu0 0.0
    %609 = vmatprep.subr.mxu0 0.0
    %610 = vmatpush1.xpose.msra.mxu0 0.0
    %611 = vmatprep.subr.mxu0 0.0
    %612 = vmatpush1.xpose.msra.mxu0 0.0
    %613 = vmatprep.subr.mxu0 0.0
    %614 = vmatpush1.xpose.msra.mxu0 0.0
    %615 = vmatprep.subr.mxu0 0.0
    %616 = vmatpush1.xpose.msra.mxu0 0.0
    %617 = vmatprep.subr.mxu0 0.0
    %618 = vmatpush1.xpose.msra.mxu0 0.0
    %619 = vmatprep.subr.mxu0 0.0
    %620 = vmatpush1.xpose.msra.mxu0 0.0
    %621 = vmatprep.subr.mxu0 0.0
    %622 = vmatpush1.xpose.msra.mxu0 0.0
    %623 = vmatprep.subr.mxu0 0.0
    %624 = vmatpush1.xpose.msra.mxu0 0.0
    %625 = vmatprep.subr.mxu0 0.0
    %626 = vmatpush1.xpose.msra.mxu0 0.0
    %627 = vmatprep.subr.mxu0 0.0
    %628 = vmatpush1.xpose.msra.mxu0 %v104
    %629 = vmatprep.subr.mxu0 0.0
    %630 = vmatpush1.xpose.msra.mxu0 %v103
    %631 = vmatprep.subr.mxu0 0.0
    %632 = vmatpush1.xpose.msra.mxu0 %v102
    %633 = vmatprep.subr.mxu0 0.0
    %634 = vmatpush1.xpose.msra.mxu0 %v101
    %635 = vmatprep.subr.mxu0 0.0
    %636 = vmatpush2.xpose.msra.mxu0 0.0
    %637 = vmatprep.subr.mxu0 0.0
    %638 = vmatpush2.xpose.msra.mxu0 0.0
    %639 = vmatprep.subr.mxu0 0.0
    %640 = vmatpush2.xpose.msra.mxu0 0.0
    %641 = vmatprep.subr.mxu0 0.0
    %642 = vmatpush2.xpose.msra.mxu0 0.0
    %643 = vmatprep.subr.mxu0 0.0
    %644 = vmatpush2.xpose.msra.mxu0 0.0
    %645 = vmatprep.subr.mxu0 0.0
    %646 = vmatpush2.xpose.msra.mxu0 0.0
    %647 = vmatprep.subr.mxu0 0.0
    %648 = vmatpush2.xpose.msra.mxu0 0.0
    %649 = vmatprep.subr.mxu0 0.0
    %650 = vmatpush2.xpose.msra.mxu0 0.0
    %651 = vmatprep.subr.mxu0 0.0
    %652 = vmatpush2.xpose.msra.mxu0 0.0
    %653 = vmatprep.subr.mxu0 0.0
    %654 = vmatpush2.xpose.msra.mxu0 0.0
    %655 = vmatprep.subr.mxu0 0.0
    %656 = vmatpush2.xpose.msra.mxu0 0.0
    %657 = vmatprep.subr.mxu0 0.0
    %658 = vmatpush2.xpose.msra.mxu0 0.0
    %659 = vmatprep.subr.mxu0 0.0
    %660 = vmatpush2.xpose.msra.mxu0 0.0
    %661 = vmatprep.subr.mxu0 0.0
    %662 = vmatpush2.xpose.msra.mxu0 0.0
    %663 = vmatprep.subr.mxu0 0.0
    %664 = vmatpush2.xpose.msra.mxu0 0.0
    %665 = vmatprep.subr.mxu0 0.0
    %666 = vmatpush2.xpose.msra.mxu0 0.0
    %667 = vmatprep.mubr.f32.mxu0 0.0
    %668 = vmatmul.mubr.f32.gmra.mxu0 %v72
    %v669 = vpop.f32.mrf.mxu0
    %v670 = vadd.f32 %v112, %v669
    %v671 = vpop.f32.mrf.mxu0
    %672 = vdwg.mxu0
    %v673 = vld [vmem:[%s5] sm:$0xff]
    %v674 = vld [vmem:[%s5 + $0x8] sm:$0xff]
    %v675 = vld [vmem:[%s5 + $0x10] sm:$0xff]
    %v676 = vld [vmem:[%s5 + $0x18] sm:$0xff]
    %v677 = vld [vmem:[%s5 + $0x20] sm:$0xff]
    %v678 = vld [vmem:[%s5 + $0x28] sm:$0xff]
    %v679 = vld [vmem:[%s5 + $0x30] sm:$0xff]
    %v680 = vld [vmem:[%s5 + $0x38] sm:$0xff]
    %v681 = vld [vmem:[%s5 + $0x40] sm:$0xff]
    %v682 = vld [vmem:[%s5 + $0x48] sm:$0xff]
    %v683 = vld [vmem:[%s5 + $0x50] sm:$0xff]
    %v684 = vld [vmem:[%s5 + $0x58] sm:$0xff]
    %v685 = vld [vmem:[%s5 + $0x60] sm:$0xff]
    %v686 = vld [vmem:[%s5 + $0x68] sm:$0xff]
    %v687 = vld [vmem:[%s5 + $0x70] sm:$0xff]
    %v688 = vld [vmem:[%s5 + $0x78] sm:$0xff]
    %v689 = vld [vmem:[%s5 + $0x80] sm:$0xff]
    %v690 = vld [vmem:[%s5 + $0x88] sm:$0xff]
    %v691 = vld [vmem:[%s5 + $0x90] sm:$0xff]
    %v692 = vld [vmem:[%s5 + $0x98] sm:$0xff]
    %v693 = vld [vmem:[%s5 + $0xa0] sm:$0xff]
    %v694 = vld [vmem:[%s5 + $0xa8] sm:$0xff]
    %v695 = vld [vmem:[%s5 + $0xb0] sm:$0xff]
    %v696 = vld [vmem:[%s5 + $0xb8] sm:$0xff]
    %v697 = vld [vmem:[%s5 + $0xc0] sm:$0xff]
    %v698 = vld [vmem:[%s5 + $0xc8] sm:$0xff]
    %v699 = vld [vmem:[%s5 + $0xd0] sm:$0xff]
    %v700 = vld [vmem:[%s5 + $0xd8] sm:$0xff]
    %v701 = vld [vmem:[%s5 + $0xe0] sm:$0xff]
    %v702 = vld [vmem:[%s5 + $0xe8] sm:$0xff]
    %v703 = vld [vmem:[%s5 + $0xf0] sm:$0xff]
    %v704 = vld [vmem:[%s5 + $0xf8] sm:$0xff]
    %v705 = vld [vmem:[%s6] sm:$0xff]
    %v706 = vld [vmem:[%s6 + $0x8] sm:$0xff]
    %v707 = vld [vmem:[%s6 + $0x10] sm:$0xff]
    %v708 = vld [vmem:[%s6 + $0x18] sm:$0xff]
    %v709 = vld [vmem:[%s6 + $0x20] sm:$0xff]
    %v710 = vld [vmem:[%s6 + $0x28] sm:$0xff]
    %v711 = vld [vmem:[%s6 + $0x30] sm:$0xff]
    %v712 = vld [vmem:[%s6 + $0x38] sm:$0xff]
    %713 = vmatprep.subr.mxu0 0.0
    %714 = vmatpush1.xpose.msra.mxu0 0.0
    %715 = vmatprep.subr.mxu0 0.0
    %716 = vmatpush1.xpose.msra.mxu0 0.0
    %717 = vmatprep.subr.mxu0 0.0
    %718 = vmatpush1.xpose.msra.mxu0 0.0
    %719 = vmatprep.subr.mxu0 0.0
    %720 = vmatpush1.xpose.msra.mxu0 0.0
    %721 = vmatprep.subr.mxu0 0.0
    %722 = vmatpush1.xpose.msra.mxu0 0.0
    %723 = vmatprep.subr.mxu0 0.0
    %724 = vmatpush1.xpose.msra.mxu0 0.0
    %725 = vmatprep.subr.mxu0 0.0
    %726 = vmatpush1.xpose.msra.mxu0 0.0
    %727 = vmatprep.subr.mxu0 0.0
    %728 = vmatpush1.xpose.msra.mxu0 0.0
    %729 = vmatprep.subr.mxu0 0.0
    %730 = vmatpush1.xpose.msra.mxu0 0.0
    %731 = vmatprep.subr.mxu0 0.0
    %732 = vmatpush1.xpose.msra.mxu0 0.0
    %733 = vmatprep.subr.mxu0 0.0
    %734 = vmatpush1.xpose.msra.mxu0 0.0
    %735 = vmatprep.subr.mxu0 0.0
    %736 = vmatpush1.xpose.msra.mxu0 0.0
    %737 = vmatprep.subr.mxu0 0.0
    %738 = vmatpush1.xpose.msra.mxu0 %v676
    %739 = vmatprep.subr.mxu0 0.0
    %740 = vmatpush1.xpose.msra.mxu0 %v675
    %741 = vmatprep.subr.mxu0 0.0
    %742 = vmatpush1.xpose.msra.mxu0 %v674
    %743 = vmatprep.subr.mxu0 0.0
    %744 = vmatpush1.xpose.msra.mxu0 %v673
    %745 = vmatprep.subr.mxu0 0.0
    %746 = vmatpush2.xpose.msra.mxu0 0.0
    %747 = vmatprep.subr.mxu0 0.0
    %748 = vmatpush2.xpose.msra.mxu0 0.0
    %749 = vmatprep.subr.mxu0 0.0
    %750 = vmatpush2.xpose.msra.mxu0 0.0
    %751 = vmatprep.subr.mxu0 0.0
    %752 = vmatpush2.xpose.msra.mxu0 0.0
    %753 = vmatprep.subr.mxu0 0.0
    %754 = vmatpush2.xpose.msra.mxu0 0.0
    %755 = vmatprep.subr.mxu0 0.0
    %756 = vmatpush2.xpose.msra.mxu0 0.0
    %757 = vmatprep.subr.mxu0 0.0
    %758 = vmatpush2.xpose.msra.mxu0 0.0
    %759 = vmatprep.subr.mxu0 0.0
    %760 = vmatpush2.xpose.msra.mxu0 0.0
    %761 = vmatprep.subr.mxu0 0.0
    %762 = vmatpush2.xpose.msra.mxu0 0.0
    %763 = vmatprep.subr.mxu0 0.0
    %764 = vmatpush2.xpose.msra.mxu0 0.0
    %765 = vmatprep.subr.mxu0 0.0
    %766 = vmatpush2.xpose.msra.mxu0 0.0
    %767 = vmatprep.subr.mxu0 0.0
    %768 = vmatpush2.xpose.msra.mxu0 0.0
    %769 = vmatprep.subr.mxu0 0.0
    %770 = vmatpush2.xpose.msra.mxu0 0.0
    %771 = vmatprep.subr.mxu0 0.0
    %772 = vmatpush2.xpose.msra.mxu0 0.0
    %773 = vmatprep.subr.mxu0 0.0
    %774 = vmatpush2.xpose.msra.mxu0 0.0
    %775 = vmatprep.subr.mxu0 0.0
    %776 = vmatpush2.xpose.msra.mxu0 0.0
    %777 = vmatprep.mubr.f32.mxu0 0.0
    %778 = vmatmul.mubr.f32.gmra.mxu0 %v65
    %v779 = vpop.f32.mrf.mxu0
    %v780 = vadd.f32 %v705, %v779
    %v781 = vpop.f32.mrf.mxu0
    %782 = vdwg.mxu0
    %783 = vmatprep.subr.mxu0 0.0
    %784 = vmatpush1.xpose.msra.mxu0 0.0
    %785 = vmatprep.subr.mxu0 0.0
    %786 = vmatpush1.xpose.msra.mxu0 0.0
    %787 = vmatprep.subr.mxu0 0.0
    %788 = vmatpush1.xpose.msra.mxu0 0.0
    %789 = vmatprep.subr.mxu0 0.0
    %790 = vmatpush1.xpose.msra.mxu0 0.0
    %791 = vmatprep.subr.mxu0 0.0
    %792 = vmatpush1.xpose.msra.mxu0 0.0
    %793 = vmatprep.subr.mxu0 0.0
    %794 = vmatpush1.xpose.msra.mxu0 0.0
    %795 = vmatprep.subr.mxu0 0.0
    %796 = vmatpush1.xpose.msra.mxu0 0.0
    %797 = vmatprep.subr.mxu0 0.0
    %798 = vmatpush1.xpose.msra.mxu0 0.0
    %799 = vmatprep.subr.mxu0 0.0
    %800 = vmatpush1.xpose.msra.mxu0 0.0
    %801 = vmatprep.subr.mxu0 0.0
    %802 = vmatpush1.xpose.msra.mxu0 0.0
    %803 = vmatprep.subr.mxu0 0.0
    %804 = vmatpush1.xpose.msra.mxu0 0.0
    %805 = vmatprep.subr.mxu0 0.0
    %806 = vmatpush1.xpose.msra.mxu0 0.0
    %807 = vmatprep.subr.mxu0 0.0
    %808 = vmatpush1.xpose.msra.mxu0 %v680
    %809 = vmatprep.subr.mxu0 0.0
    %810 = vmatpush1.xpose.msra.mxu0 %v679
    %811 = vmatprep.subr.mxu0 0.0
    %812 = vmatpush1.xpose.msra.mxu0 %v678
    %813 = vmatprep.subr.mxu0 0.0
    %814 = vmatpush1.xpose.msra.mxu0 %v677
    %815 = vmatprep.subr.mxu0 0.0
    %816 = vmatpush2.xpose.msra.mxu0 0.0
    %817 = vmatprep.subr.mxu0 0.0
    %818 = vmatpush2.xpose.msra.mxu0 0.0
    %819 = vmatprep.subr.mxu0 0.0
    %820 = vmatpush2.xpose.msra.mxu0 0.0
    %821 = vmatprep.subr.mxu0 0.0
    %822 = vmatpush2.xpose.msra.mxu0 0.0
    %823 = vmatprep.subr.mxu0 0.0
    %824 = vmatpush2.xpose.msra.mxu0 0.0
    %825 = vmatprep.subr.mxu0 0.0
    %826 = vmatpush2.xpose.msra.mxu0 0.0
    %827 = vmatprep.subr.mxu0 0.0
    %828 = vmatpush2.xpose.msra.mxu0 0.0
    %829 = vmatprep.subr.mxu0 0.0
    %830 = vmatpush2.xpose.msra.mxu0 0.0
    %831 = vmatprep.subr.mxu0 0.0
    %832 = vmatpush2.xpose.msra.mxu0 0.0
    %833 = vmatprep.subr.mxu0 0.0
    %834 = vmatpush2.xpose.msra.mxu0 0.0
    %835 = vmatprep.subr.mxu0 0.0
    %836 = vmatpush2.xpose.msra.mxu0 0.0
    %837 = vmatprep.subr.mxu0 0.0
    %838 = vmatpush2.xpose.msra.mxu0 0.0
    %839 = vmatprep.subr.mxu0 0.0
    %840 = vmatpush2.xpose.msra.mxu0 0.0
    %841 = vmatprep.subr.mxu0 0.0
    %842 = vmatpush2.xpose.msra.mxu0 0.0
    %843 = vmatprep.subr.mxu0 0.0
    %844 = vmatpush2.xpose.msra.mxu0 0.0
    %845 = vmatprep.subr.mxu0 0.0
    %846 = vmatpush2.xpose.msra.mxu0 0.0
    %847 = vmatprep.mubr.f32.mxu0 0.0
    %848 = vmatmul.mubr.f32.gmra.mxu0 %v66
    %v849 = vpop.f32.mrf.mxu0
    %v850 = vadd.f32 %v706, %v849
    %v851 = vpop.f32.mrf.mxu0
    %852 = vdwg.mxu0
    %853 = vmatprep.subr.mxu0 0.0
    %854 = vmatpush1.xpose.msra.mxu0 0.0
    %855 = vmatprep.subr.mxu0 0.0
    %856 = vmatpush1.xpose.msra.mxu0 0.0
    %857 = vmatprep.subr.mxu0 0.0
    %858 = vmatpush1.xpose.msra.mxu0 0.0
    %859 = vmatprep.subr.mxu0 0.0
    %860 = vmatpush1.xpose.msra.mxu0 0.0
    %861 = vmatprep.subr.mxu0 0.0
    %862 = vmatpush1.xpose.msra.mxu0 0.0
    %863 = vmatprep.subr.mxu0 0.0
    %864 = vmatpush1.xpose.msra.mxu0 0.0
    %865 = vmatprep.subr.mxu0 0.0
    %866 = vmatpush1.xpose.msra.mxu0 0.0
    %867 = vmatprep.subr.mxu0 0.0
    %868 = vmatpush1.xpose.msra.mxu0 0.0
    %869 = vmatprep.subr.mxu0 0.0
    %870 = vmatpush1.xpose.msra.mxu0 0.0
    %871 = vmatprep.subr.mxu0 0.0
    %872 = vmatpush1.xpose.msra.mxu0 0.0
    %873 = vmatprep.subr.mxu0 0.0
    %874 = vmatpush1.xpose.msra.mxu0 0.0
    %875 = vmatprep.subr.mxu0 0.0
    %876 = vmatpush1.xpose.msra.mxu0 0.0
    %877 = vmatprep.subr.mxu0 0.0
    %878 = vmatpush1.xpose.msra.mxu0 %v684
    %879 = vmatprep.subr.mxu0 0.0
    %880 = vmatpush1.xpose.msra.mxu0 %v683
    %881 = vmatprep.subr.mxu0 0.0
    %882 = vmatpush1.xpose.msra.mxu0 %v682
    %883 = vmatprep.subr.mxu0 0.0
    %884 = vmatpush1.xpose.msra.mxu0 %v681
    %885 = vmatprep.subr.mxu0 0.0
    %886 = vmatpush2.xpose.msra.mxu0 0.0
    %887 = vmatprep.subr.mxu0 0.0
    %888 = vmatpush2.xpose.msra.mxu0 0.0
    %889 = vmatprep.subr.mxu0 0.0
    %890 = vmatpush2.xpose.msra.mxu0 0.0
    %891 = vmatprep.subr.mxu0 0.0
    %892 = vmatpush2.xpose.msra.mxu0 0.0
    %893 = vmatprep.subr.mxu0 0.0
    %894 = vmatpush2.xpose.msra.mxu0 0.0
    %895 = vmatprep.subr.mxu0 0.0
    %896 = vmatpush2.xpose.msra.mxu0 0.0
    %897 = vmatprep.subr.mxu0 0.0
    %898 = vmatpush2.xpose.msra.mxu0 0.0
    %899 = vmatprep.subr.mxu0 0.0
    %900 = vmatpush2.xpose.msra.mxu0 0.0
    %901 = vmatprep.subr.mxu0 0.0
    %902 = vmatpush2.xpose.msra.mxu0 0.0
    %903 = vmatprep.subr.mxu0 0.0
    %904 = vmatpush2.xpose.msra.mxu0 0.0
    %905 = vmatprep.subr.mxu0 0.0
    %906 = vmatpush2.xpose.msra.mxu0 0.0
    %907 = vmatprep.subr.mxu0 0.0
    %908 = vmatpush2.xpose.msra.mxu0 0.0
    %909 = vmatprep.subr.mxu0 0.0
    %910 = vmatpush2.xpose.msra.mxu0 0.0
    %911 = vmatprep.subr.mxu0 0.0
    %912 = vmatpush2.xpose.msra.mxu0 0.0
    %913 = vmatprep.subr.mxu0 0.0
    %914 = vmatpush2.xpose.msra.mxu0 0.0
    %915 = vmatprep.subr.mxu0 0.0
    %916 = vmatpush2.xpose.msra.mxu0 0.0
    %917 = vmatprep.mubr.f32.mxu0 0.0
    %918 = vmatmul.mubr.f32.gmra.mxu0 %v67
    %v919 = vpop.f32.mrf.mxu0
    %v920 = vadd.f32 %v707, %v919
    %v921 = vpop.f32.mrf.mxu0
    %922 = vdwg.mxu0
    %923 = vmatprep.subr.mxu0 0.0
    %924 = vmatpush1.xpose.msra.mxu0 0.0
    %925 = vmatprep.subr.mxu0 0.0
    %926 = vmatpush1.xpose.msra.mxu0 0.0
    %927 = vmatprep.subr.mxu0 0.0
    %928 = vmatpush1.xpose.msra.mxu0 0.0
    %929 = vmatprep.subr.mxu0 0.0
    %930 = vmatpush1.xpose.msra.mxu0 0.0
    %931 = vmatprep.subr.mxu0 0.0
    %932 = vmatpush1.xpose.msra.mxu0 0.0
    %933 = vmatprep.subr.mxu0 0.0
    %934 = vmatpush1.xpose.msra.mxu0 0.0
    %935 = vmatprep.subr.mxu0 0.0
    %936 = vmatpush1.xpose.msra.mxu0 0.0
    %937 = vmatprep.subr.mxu0 0.0
    %938 = vmatpush1.xpose.msra.mxu0 0.0
    %939 = vmatprep.subr.mxu0 0.0
    %940 = vmatpush1.xpose.msra.mxu0 0.0
    %941 = vmatprep.subr.mxu0 0.0
    %942 = vmatpush1.xpose.msra.mxu0 0.0
    %943 = vmatprep.subr.mxu0 0.0
    %944 = vmatpush1.xpose.msra.mxu0 0.0
    %945 = vmatprep.subr.mxu0 0.0
    %946 = vmatpush1.xpose.msra.mxu0 0.0
    %947 = vmatprep.subr.mxu0 0.0
    %948 = vmatpush1.xpose.msra.mxu0 %v688
    %949 = vmatprep.subr.mxu0 0.0
    %950 = vmatpush1.xpose.msra.mxu0 %v687
    %951 = vmatprep.subr.mxu0 0.0
    %952 = vmatpush1.xpose.msra.mxu0 %v686
    %953 = vmatprep.subr.mxu0 0.0
    %954 = vmatpush1.xpose.msra.mxu0 %v685
    %955 = vmatprep.subr.mxu0 0.0
    %956 = vmatpush2.xpose.msra.mxu0 0.0
    %957 = vmatprep.subr.mxu0 0.0
    %958 = vmatpush2.xpose.msra.mxu0 0.0
    %959 = vmatprep.subr.mxu0 0.0
    %960 = vmatpush2.xpose.msra.mxu0 0.0
    %961 = vmatprep.subr.mxu0 0.0
    %962 = vmatpush2.xpose.msra.mxu0 0.0
    %963 = vmatprep.subr.mxu0 0.0
    %964 = vmatpush2.xpose.msra.mxu0 0.0
    %965 = vmatprep.subr.mxu0 0.0
    %966 = vmatpush2.xpose.msra.mxu0 0.0
    %967 = vmatprep.subr.mxu0 0.0
    %968 = vmatpush2.xpose.msra.mxu0 0.0
    %969 = vmatprep.subr.mxu0 0.0
    %970 = vmatpush2.xpose.msra.mxu0 0.0
    %971 = vmatprep.subr.mxu0 0.0
    %972 = vmatpush2.xpose.msra.mxu0 0.0
    %973 = vmatprep.subr.mxu0 0.0
    %974 = vmatpush2.xpose.msra.mxu0 0.0
    %975 = vmatprep.subr.mxu0 0.0
    %976 = vmatpush2.xpose.msra.mxu0 0.0
    %977 = vmatprep.subr.mxu0 0.0
    %978 = vmatpush2.xpose.msra.mxu0 0.0
    %979 = vmatprep.subr.mxu0 0.0
    %980 = vmatpush2.xpose.msra.mxu0 0.0
    %981 = vmatprep.subr.mxu0 0.0
    %982 = vmatpush2.xpose.msra.mxu0 0.0
    %983 = vmatprep.subr.mxu0 0.0
    %984 = vmatpush2.xpose.msra.mxu0 0.0
    %985 = vmatprep.subr.mxu0 0.0
    %986 = vmatpush2.xpose.msra.mxu0 0.0
    %987 = vmatprep.mubr.f32.mxu0 0.0
    %988 = vmatmul.mubr.f32.gmra.mxu0 %v68
    %v989 = vpop.f32.mrf.mxu0
    %v990 = vadd.f32 %v708, %v989
    %v991 = vpop.f32.mrf.mxu0
    %992 = vdwg.mxu0
    %993 = vmatprep.subr.mxu0 0.0
    %994 = vmatpush1.xpose.msra.mxu0 0.0
    %995 = vmatprep.subr.mxu0 0.0
    %996 = vmatpush1.xpose.msra.mxu0 0.0
    %997 = vmatprep.subr.mxu0 0.0
    %998 = vmatpush1.xpose.msra.mxu0 0.0
    %999 = vmatprep.subr.mxu0 0.0
    %1000 = vmatpush1.xpose.msra.mxu0 0.0
    %1001 = vmatprep.subr.mxu0 0.0
    %1002 = vmatpush1.xpose.msra.mxu0 0.0
    %1003 = vmatprep.subr.mxu0 0.0
    %1004 = vmatpush1.xpose.msra.mxu0 0.0
    %1005 = vmatprep.subr.mxu0 0.0
    %1006 = vmatpush1.xpose.msra.mxu0 0.0
    %1007 = vmatprep.subr.mxu0 0.0
    %1008 = vmatpush1.xpose.msra.mxu0 0.0
    %1009 = vmatprep.subr.mxu0 0.0
    %1010 = vmatpush1.xpose.msra.mxu0 0.0
    %1011 = vmatprep.subr.mxu0 0.0
    %1012 = vmatpush1.xpose.msra.mxu0 0.0
    %1013 = vmatprep.subr.mxu0 0.0
    %1014 = vmatpush1.xpose.msra.mxu0 0.0
    %1015 = vmatprep.subr.mxu0 0.0
    %1016 = vmatpush1.xpose.msra.mxu0 0.0
    %1017 = vmatprep.subr.mxu0 0.0
    %1018 = vmatpush1.xpose.msra.mxu0 %v692
    %1019 = vmatprep.subr.mxu0 0.0
    %1020 = vmatpush1.xpose.msra.mxu0 %v691
    %1021 = vmatprep.subr.mxu0 0.0
    %1022 = vmatpush1.xpose.msra.mxu0 %v690
    %1023 = vmatprep.subr.mxu0 0.0
    %1024 = vmatpush1.xpose.msra.mxu0 %v689
    %1025 = vmatprep.subr.mxu0 0.0
    %1026 = vmatpush2.xpose.msra.mxu0 0.0
    %1027 = vmatprep.subr.mxu0 0.0
    %1028 = vmatpush2.xpose.msra.mxu0 0.0
    %1029 = vmatprep.subr.mxu0 0.0
    %1030 = vmatpush2.xpose.msra.mxu0 0.0
    %1031 = vmatprep.subr.mxu0 0.0
    %1032 = vmatpush2.xpose.msra.mxu0 0.0
    %1033 = vmatprep.subr.mxu0 0.0
    %1034 = vmatpush2.xpose.msra.mxu0 0.0
    %1035 = vmatprep.subr.mxu0 0.0
    %1036 = vmatpush2.xpose.msra.mxu0 0.0
    %1037 = vmatprep.subr.mxu0 0.0
    %1038 = vmatpush2.xpose.msra.mxu0 0.0
    %1039 = vmatprep.subr.mxu0 0.0
    %1040 = vmatpush2.xpose.msra.mxu0 0.0
    %1041 = vmatprep.subr.mxu0 0.0
    %1042 = vmatpush2.xpose.msra.mxu0 0.0
    %1043 = vmatprep.subr.mxu0 0.0
    %1044 = vmatpush2.xpose.msra.mxu0 0.0
    %1045 = vmatprep.subr.mxu0 0.0
    %1046 = vmatpush2.xpose.msra.mxu0 0.0
    %1047 = vmatprep.subr.mxu0 0.0
    %1048 = vmatpush2.xpose.msra.mxu0 0.0
    %1049 = vmatprep.subr.mxu0 0.0
    %1050 = vmatpush2.xpose.msra.mxu0 0.0
    %1051 = vmatprep.subr.mxu0 0.0
    %1052 = vmatpush2.xpose.msra.mxu0 0.0
    %1053 = vmatprep.subr.mxu0 0.0
    %1054 = vmatpush2.xpose.msra.mxu0 0.0
    %1055 = vmatprep.subr.mxu0 0.0
    %1056 = vmatpush2.xpose.msra.mxu0 0.0
    %1057 = vmatprep.mubr.f32.mxu0 0.0
    %1058 = vmatmul.mubr.f32.gmra.mxu0 %v69
    %v1059 = vpop.f32.mrf.mxu0
    %v1060 = vadd.f32 %v709, %v1059
    %v1061 = vpop.f32.mrf.mxu0
    %1062 = vdwg.mxu0
    %1063 = vmatprep.subr.mxu0 0.0
    %1064 = vmatpush1.xpose.msra.mxu0 0.0
    %1065 = vmatprep.subr.mxu0 0.0
    %1066 = vmatpush1.xpose.msra.mxu0 0.0
    %1067 = vmatprep.subr.mxu0 0.0
    %1068 = vmatpush1.xpose.msra.mxu0 0.0
    %1069 = vmatprep.subr.mxu0 0.0
    %1070 = vmatpush1.xpose.msra.mxu0 0.0
    %1071 = vmatprep.subr.mxu0 0.0
    %1072 = vmatpush1.xpose.msra.mxu0 0.0
    %1073 = vmatprep.subr.mxu0 0.0
    %1074 = vmatpush1.xpose.msra.mxu0 0.0
    %1075 = vmatprep.subr.mxu0 0.0
    %1076 = vmatpush1.xpose.msra.mxu0 0.0
    %1077 = vmatprep.subr.mxu0 0.0
    %1078 = vmatpush1.xpose.msra.mxu0 0.0
    %1079 = vmatprep.subr.mxu0 0.0
    %1080 = vmatpush1.xpose.msra.mxu0 0.0
    %1081 = vmatprep.subr.mxu0 0.0
    %1082 = vmatpush1.xpose.msra.mxu0 0.0
    %1083 = vmatprep.subr.mxu0 0.0
    %1084 = vmatpush1.xpose.msra.mxu0 0.0
    %1085 = vmatprep.subr.mxu0 0.0
    %1086 = vmatpush1.xpose.msra.mxu0 0.0
    %1087 = vmatprep.subr.mxu0 0.0
    %1088 = vmatpush1.xpose.msra.mxu0 %v696
    %1089 = vmatprep.subr.mxu0 0.0
    %1090 = vmatpush1.xpose.msra.mxu0 %v695
    %1091 = vmatprep.subr.mxu0 0.0
    %1092 = vmatpush1.xpose.msra.mxu0 %v694
    %1093 = vmatprep.subr.mxu0 0.0
    %1094 = vmatpush1.xpose.msra.mxu0 %v693
    %1095 = vmatprep.subr.mxu0 0.0
    %1096 = vmatpush2.xpose.msra.mxu0 0.0
    %1097 = vmatprep.subr.mxu0 0.0
    %1098 = vmatpush2.xpose.msra.mxu0 0.0
    %1099 = vmatprep.subr.mxu0 0.0
    %1100 = vmatpush2.xpose.msra.mxu0 0.0
    %1101 = vmatprep.subr.mxu0 0.0
    %1102 = vmatpush2.xpose.msra.mxu0 0.0
    %1103 = vmatprep.subr.mxu0 0.0
    %1104 = vmatpush2.xpose.msra.mxu0 0.0
    %1105 = vmatprep.subr.mxu0 0.0
    %1106 = vmatpush2.xpose.msra.mxu0 0.0
    %1107 = vmatprep.subr.mxu0 0.0
    %1108 = vmatpush2.xpose.msra.mxu0 0.0
    %1109 = vmatprep.subr.mxu0 0.0
    %1110 = vmatpush2.xpose.msra.mxu0 0.0
    %1111 = vmatprep.subr.mxu0 0.0
    %1112 = vmatpush2.xpose.msra.mxu0 0.0
    %1113 = vmatprep.subr.mxu0 0.0
    %1114 = vmatpush2.xpose.msra.mxu0 0.0
    %1115 = vmatprep.subr.mxu0 0.0
    %1116 = vmatpush2.xpose.msra.mxu0 0.0
    %1117 = vmatprep.subr.mxu0 0.0
    %1118 = vmatpush2.xpose.msra.mxu0 0.0
    %1119 = vmatprep.subr.mxu0 0.0
    %1120 = vmatpush2.xpose.msra.mxu0 0.0
    %1121 = vmatprep.subr.mxu0 0.0
    %1122 = vmatpush2.xpose.msra.mxu0 0.0
    %1123 = vmatprep.subr.mxu0 0.0
    %1124 = vmatpush2.xpose.msra.mxu0 0.0
    %1125 = vmatprep.subr.mxu0 0.0
    %1126 = vmatpush2.xpose.msra.mxu0 0.0
    %1127 = vmatprep.mubr.f32.mxu0 0.0
    %1128 = vmatmul.mubr.f32.gmra.mxu0 %v70
    %v1129 = vpop.f32.mrf.mxu0
    %v1130 = vadd.f32 %v710, %v1129
    %v1131 = vpop.f32.mrf.mxu0
    %1132 = vdwg.mxu0
    %1133 = vmatprep.subr.mxu0 0.0
    %1134 = vmatpush1.xpose.msra.mxu0 0.0
    %1135 = vmatprep.subr.mxu0 0.0
    %1136 = vmatpush1.xpose.msra.mxu0 0.0
    %1137 = vmatprep.subr.mxu0 0.0
    %1138 = vmatpush1.xpose.msra.mxu0 0.0
    %1139 = vmatprep.subr.mxu0 0.0
    %1140 = vmatpush1.xpose.msra.mxu0 0.0
    %1141 = vmatprep.subr.mxu0 0.0
    %1142 = vmatpush1.xpose.msra.mxu0 0.0
    %1143 = vmatprep.subr.mxu0 0.0
    %1144 = vmatpush1.xpose.msra.mxu0 0.0
    %1145 = vmatprep.subr.mxu0 0.0
    %1146 = vmatpush1.xpose.msra.mxu0 0.0
    %1147 = vmatprep.subr.mxu0 0.0
    %1148 = vmatpush1.xpose.msra.mxu0 0.0
    %1149 = vmatprep.subr.mxu0 0.0
    %1150 = vmatpush1.xpose.msra.mxu0 0.0
    %1151 = vmatprep.subr.mxu0 0.0
    %1152 = vmatpush1.xpose.msra.mxu0 0.0
    %1153 = vmatprep.subr.mxu0 0.0
    %1154 = vmatpush1.xpose.msra.mxu0 0.0
    %1155 = vmatprep.subr.mxu0 0.0
    %1156 = vmatpush1.xpose.msra.mxu0 0.0
    %1157 = vmatprep.subr.mxu0 0.0
    %1158 = vmatpush1.xpose.msra.mxu0 %v700
    %1159 = vmatprep.subr.mxu0 0.0
    %1160 = vmatpush1.xpose.msra.mxu0 %v699
    %1161 = vmatprep.subr.mxu0 0.0
    %1162 = vmatpush1.xpose.msra.mxu0 %v698
    %1163 = vmatprep.subr.mxu0 0.0
    %1164 = vmatpush1.xpose.msra.mxu0 %v697
    %1165 = vmatprep.subr.mxu0 0.0
    %1166 = vmatpush2.xpose.msra.mxu0 0.0
    %1167 = vmatprep.subr.mxu0 0.0
    %1168 = vmatpush2.xpose.msra.mxu0 0.0
    %1169 = vmatprep.subr.mxu0 0.0
    %1170 = vmatpush2.xpose.msra.mxu0 0.0
    %1171 = vmatprep.subr.mxu0 0.0
    %1172 = vmatpush2.xpose.msra.mxu0 0.0
    %1173 = vmatprep.subr.mxu0 0.0
    %1174 = vmatpush2.xpose.msra.mxu0 0.0
    %1175 = vmatprep.subr.mxu0 0.0
    %1176 = vmatpush2.xpose.msra.mxu0 0.0
    %1177 = vmatprep.subr.mxu0 0.0
    %1178 = vmatpush2.xpose.msra.mxu0 0.0
    %1179 = vmatprep.subr.mxu0 0.0
    %1180 = vmatpush2.xpose.msra.mxu0 0.0
    %1181 = vmatprep.subr.mxu0 0.0
    %1182 = vmatpush2.xpose.msra.mxu0 0.0
    %1183 = vmatprep.subr.mxu0 0.0
    %1184 = vmatpush2.xpose.msra.mxu0 0.0
    %1185 = vmatprep.subr.mxu0 0.0
    %1186 = vmatpush2.xpose.msra.mxu0 0.0
    %1187 = vmatprep.subr.mxu0 0.0
    %1188 = vmatpush2.xpose.msra.mxu0 0.0
    %1189 = vmatprep.subr.mxu0 0.0
    %1190 = vmatpush2.xpose.msra.mxu0 0.0
    %1191 = vmatprep.subr.mxu0 0.0
    %1192 = vmatpush2.xpose.msra.mxu0 0.0
    %1193 = vmatprep.subr.mxu0 0.0
    %1194 = vmatpush2.xpose.msra.mxu0 0.0
    %1195 = vmatprep.subr.mxu0 0.0
    %1196 = vmatpush2.xpose.msra.mxu0 0.0
    %1197 = vmatprep.mubr.f32.mxu0 0.0
    %1198 = vmatmul.mubr.f32.gmra.mxu0 %v71
    %v1199 = vpop.f32.mrf.mxu0
    %v1200 = vadd.f32 %v711, %v1199
    %v1201 = vpop.f32.mrf.mxu0
    %1202 = vdwg.mxu0
    %1203 = vmatprep.subr.mxu0 0.0
    %1204 = vmatpush1.xpose.msra.mxu0 0.0
    %1205 = vmatprep.subr.mxu0 0.0
    %1206 = vmatpush1.xpose.msra.mxu0 0.0
    %1207 = vmatprep.subr.mxu0 0.0
    %1208 = vmatpush1.xpose.msra.mxu0 0.0
    %1209 = vmatprep.subr.mxu0 0.0
    %1210 = vmatpush1.xpose.msra.mxu0 0.0
    %1211 = vmatprep.subr.mxu0 0.0
    %1212 = vmatpush1.xpose.msra.mxu0 0.0
    %1213 = vmatprep.subr.mxu0 0.0
    %1214 = vmatpush1.xpose.msra.mxu0 0.0
    %1215 = vmatprep.subr.mxu0 0.0
    %1216 = vmatpush1.xpose.msra.mxu0 0.0
    %1217 = vmatprep.subr.mxu0 0.0
    %1218 = vmatpush1.xpose.msra.mxu0 0.0
    %1219 = vmatprep.subr.mxu0 0.0
    %1220 = vmatpush1.xpose.msra.mxu0 0.0
    %1221 = vmatprep.subr.mxu0 0.0
    %1222 = vmatpush1.xpose.msra.mxu0 0.0
    %1223 = vmatprep.subr.mxu0 0.0
    %1224 = vmatpush1.xpose.msra.mxu0 0.0
    %1225 = vmatprep.subr.mxu0 0.0
    %1226 = vmatpush1.xpose.msra.mxu0 0.0
    %1227 = vmatprep.subr.mxu0 0.0
    %1228 = vmatpush1.xpose.msra.mxu0 %v704
    %1229 = vmatprep.subr.mxu0 0.0
    %1230 = vmatpush1.xpose.msra.mxu0 %v703
    %1231 = vmatprep.subr.mxu0 0.0
    %1232 = vmatpush1.xpose.msra.mxu0 %v702
    %1233 = vmatprep.subr.mxu0 0.0
    %1234 = vmatpush1.xpose.msra.mxu0 %v701
    %1235 = vmatprep.subr.mxu0 0.0
    %1236 = vmatpush2.xpose.msra.mxu0 0.0
    %1237 = vmatprep.subr.mxu0 0.0
    %1238 = vmatpush2.xpose.msra.mxu0 0.0
    %1239 = vmatprep.subr.mxu0 0.0
    %1240 = vmatpush2.xpose.msra.mxu0 0.0
    %1241 = vmatprep.subr.mxu0 0.0
    %1242 = vmatpush2.xpose.msra.mxu0 0.0
    %1243 = vmatprep.subr.mxu0 0.0
    %1244 = vmatpush2.xpose.msra.mxu0 0.0
    %1245 = vmatprep.subr.mxu0 0.0
    %1246 = vmatpush2.xpose.msra.mxu0 0.0
    %1247 = vmatprep.subr.mxu0 0.0
    %1248 = vmatpush2.xpose.msra.mxu0 0.0
    %1249 = vmatprep.subr.mxu0 0.0
    %1250 = vmatpush2.xpose.msra.mxu0 0.0
    %1251 = vmatprep.subr.mxu0 0.0
    %1252 = vmatpush2.xpose.msra.mxu0 0.0
    %1253 = vmatprep.subr.mxu0 0.0
    %1254 = vmatpush2.xpose.msra.mxu0 0.0
    %1255 = vmatprep.subr.mxu0 0.0
    %1256 = vmatpush2.xpose.msra.mxu0 0.0
    %1257 = vmatprep.subr.mxu0 0.0
    %1258 = vmatpush2.xpose.msra.mxu0 0.0
    %1259 = vmatprep.subr.mxu0 0.0
    %1260 = vmatpush2.xpose.msra.mxu0 0.0
    %1261 = vmatprep.subr.mxu0 0.0
    %1262 = vmatpush2.xpose.msra.mxu0 0.0
    %1263 = vmatprep.subr.mxu0 0.0
    %1264 = vmatpush2.xpose.msra.mxu0 0.0
    %1265 = vmatprep.subr.mxu0 0.0
    %1266 = vmatpush2.xpose.msra.mxu0 0.0
    %1267 = vmatprep.mubr.f32.mxu0 0.0
    %1268 = vmatmul.mubr.f32.gmra.mxu0 %v72
    %v1269 = vpop.f32.mrf.mxu0
    %v1270 = vadd.f32 %v712, %v1269
    %v1271 = vpop.f32.mrf.mxu0
    %1272 = vdwg.mxu0
    %v1273 = vld [vmem:[%s7] sm:$0xff]
    %v1274 = vld [vmem:[%s7 + $0x8] sm:$0xff]
    %v1275 = vld [vmem:[%s7 + $0x10] sm:$0xff]
    %v1276 = vld [vmem:[%s7 + $0x18] sm:$0xff]
    %v1277 = vld [vmem:[%s7 + $0x20] sm:$0xff]
    %v1278 = vld [vmem:[%s7 + $0x28] sm:$0xff]
    %v1279 = vld [vmem:[%s7 + $0x30] sm:$0xff]
    %v1280 = vld [vmem:[%s7 + $0x38] sm:$0xff]
    %v1281 = vld [vmem:[%s7 + $0x40] sm:$0xff]
    %v1282 = vld [vmem:[%s7 + $0x48] sm:$0xff]
    %v1283 = vld [vmem:[%s7 + $0x50] sm:$0xff]
    %v1284 = vld [vmem:[%s7 + $0x58] sm:$0xff]
    %v1285 = vld [vmem:[%s7 + $0x60] sm:$0xff]
    %v1286 = vld [vmem:[%s7 + $0x68] sm:$0xff]
    %v1287 = vld [vmem:[%s7 + $0x70] sm:$0xff]
    %v1288 = vld [vmem:[%s7 + $0x78] sm:$0xff]
    %v1289 = vld [vmem:[%s7 + $0x80] sm:$0xff]
    %v1290 = vld [vmem:[%s7 + $0x88] sm:$0xff]
    %v1291 = vld [vmem:[%s7 + $0x90] sm:$0xff]
    %v1292 = vld [vmem:[%s7 + $0x98] sm:$0xff]
    %v1293 = vld [vmem:[%s7 + $0xa0] sm:$0xff]
    %v1294 = vld [vmem:[%s7 + $0xa8] sm:$0xff]
    %v1295 = vld [vmem:[%s7 + $0xb0] sm:$0xff]
    %v1296 = vld [vmem:[%s7 + $0xb8] sm:$0xff]
    %v1297 = vld [vmem:[%s7 + $0xc0] sm:$0xff]
    %v1298 = vld [vmem:[%s7 + $0xc8] sm:$0xff]
    %v1299 = vld [vmem:[%s7 + $0xd0] sm:$0xff]
    %v1300 = vld [vmem:[%s7 + $0xd8] sm:$0xff]
    %v1301 = vld [vmem:[%s7 + $0xe0] sm:$0xff]
    %v1302 = vld [vmem:[%s7 + $0xe8] sm:$0xff]
    %v1303 = vld [vmem:[%s7 + $0xf0] sm:$0xff]
    %v1304 = vld [vmem:[%s7 + $0xf8] sm:$0xff]
    %v1305 = vld [vmem:[%s8] sm:$0xff]
    %v1306 = vld [vmem:[%s8 + $0x8] sm:$0xff]
    %v1307 = vld [vmem:[%s8 + $0x10] sm:$0xff]
    %v1308 = vld [vmem:[%s8 + $0x18] sm:$0xff]
    %v1309 = vld [vmem:[%s8 + $0x20] sm:$0xff]
    %v1310 = vld [vmem:[%s8 + $0x28] sm:$0xff]
    %v1311 = vld [vmem:[%s8 + $0x30] sm:$0xff]
    %v1312 = vld [vmem:[%s8 + $0x38] sm:$0xff]
    %1313 = vmatprep.subr.mxu0 0.0
    %1314 = vmatpush1.xpose.msra.mxu0 0.0
    %1315 = vmatprep.subr.mxu0 0.0
    %1316 = vmatpush1.xpose.msra.mxu0 0.0
    %1317 = vmatprep.subr.mxu0 0.0
    %1318 = vmatpush1.xpose.msra.mxu0 0.0
    %1319 = vmatprep.subr.mxu0 0.0
    %1320 = vmatpush1.xpose.msra.mxu0 0.0
    %1321 = vmatprep.subr.mxu0 0.0
    %1322 = vmatpush1.xpose.msra.mxu0 0.0
    %1323 = vmatprep.subr.mxu0 0.0
    %1324 = vmatpush1.xpose.msra.mxu0 0.0
    %1325 = vmatprep.subr.mxu0 0.0
    %1326 = vmatpush1.xpose.msra.mxu0 0.0
    %1327 = vmatprep.subr.mxu0 0.0
    %1328 = vmatpush1.xpose.msra.mxu0 0.0
    %1329 = vmatprep.subr.mxu0 0.0
    %1330 = vmatpush1.xpose.msra.mxu0 0.0
    %1331 = vmatprep.subr.mxu0 0.0
    %1332 = vmatpush1.xpose.msra.mxu0 0.0
    %1333 = vmatprep.subr.mxu0 0.0
    %1334 = vmatpush1.xpose.msra.mxu0 0.0
    %1335 = vmatprep.subr.mxu0 0.0
    %1336 = vmatpush1.xpose.msra.mxu0 0.0
    %1337 = vmatprep.subr.mxu0 0.0
    %1338 = vmatpush1.xpose.msra.mxu0 %v1276
    %1339 = vmatprep.subr.mxu0 0.0
    %1340 = vmatpush1.xpose.msra.mxu0 %v1275
    %1341 = vmatprep.subr.mxu0 0.0
    %1342 = vmatpush1.xpose.msra.mxu0 %v1274
    %1343 = vmatprep.subr.mxu0 0.0
    %1344 = vmatpush1.xpose.msra.mxu0 %v1273
    %1345 = vmatprep.subr.mxu0 0.0
    %1346 = vmatpush2.xpose.msra.mxu0 0.0
    %1347 = vmatprep.subr.mxu0 0.0
    %1348 = vmatpush2.xpose.msra.mxu0 0.0
    %1349 = vmatprep.subr.mxu0 0.0
    %1350 = vmatpush2.xpose.msra.mxu0 0.0
    %1351 = vmatprep.subr.mxu0 0.0
    %1352 = vmatpush2.xpose.msra.mxu0 0.0
    %1353 = vmatprep.subr.mxu0 0.0
    %1354 = vmatpush2.xpose.msra.mxu0 0.0
    %1355 = vmatprep.subr.mxu0 0.0
    %1356 = vmatpush2.xpose.msra.mxu0 0.0
    %1357 = vmatprep.subr.mxu0 0.0
    %1358 = vmatpush2.xpose.msra.mxu0 0.0
    %1359 = vmatprep.subr.mxu0 0.0
    %1360 = vmatpush2.xpose.msra.mxu0 0.0
    %1361 = vmatprep.subr.mxu0 0.0
    %1362 = vmatpush2.xpose.msra.mxu0 0.0
    %1363 = vmatprep.subr.mxu0 0.0
    %1364 = vmatpush2.xpose.msra.mxu0 0.0
    %1365 = vmatprep.subr.mxu0 0.0
    %1366 = vmatpush2.xpose.msra.mxu0 0.0
    %1367 = vmatprep.subr.mxu0 0.0
    %1368 = vmatpush2.xpose.msra.mxu0 0.0
    %1369 = vmatprep.subr.mxu0 0.0
    %1370 = vmatpush2.xpose.msra.mxu0 0.0
    %1371 = vmatprep.subr.mxu0 0.0
    %1372 = vmatpush2.xpose.msra.mxu0 0.0
    %1373 = vmatprep.subr.mxu0 0.0
    %1374 = vmatpush2.xpose.msra.mxu0 0.0
    %1375 = vmatprep.subr.mxu0 0.0
    %1376 = vmatpush2.xpose.msra.mxu0 0.0
    %1377 = vmatprep.mubr.f32.mxu0 0.0
    %1378 = vmatmul.mubr.f32.gmra.mxu0 %v65
    %v1379 = vpop.f32.mrf.mxu0
    %v1380 = vadd.f32 %v1305, %v1379
    %v1381 = vpop.f32.mrf.mxu0
    %1382 = vdwg.mxu0
    %1383 = vmatprep.subr.mxu0 0.0
    %1384 = vmatpush1.xpose.msra.mxu0 0.0
    %1385 = vmatprep.subr.mxu0 0.0
    %1386 = vmatpush1.xpose.msra.mxu0 0.0
    %1387 = vmatprep.subr.mxu0 0.0
    %1388 = vmatpush1.xpose.msra.mxu0 0.0
    %1389 = vmatprep.subr.mxu0 0.0
    %1390 = vmatpush1.xpose.msra.mxu0 0.0
    %1391 = vmatprep.subr.mxu0 0.0
    %1392 = vmatpush1.xpose.msra.mxu0 0.0
    %1393 = vmatprep.subr.mxu0 0.0
    %1394 = vmatpush1.xpose.msra.mxu0 0.0
    %1395 = vmatprep.subr.mxu0 0.0
    %1396 = vmatpush1.xpose.msra.mxu0 0.0
    %1397 = vmatprep.subr.mxu0 0.0
    %1398 = vmatpush1.xpose.msra.mxu0 0.0
    %1399 = vmatprep.subr.mxu0 0.0
    %1400 = vmatpush1.xpose.msra.mxu0 0.0
    %1401 = vmatprep.subr.mxu0 0.0
    %1402 = vmatpush1.xpose.msra.mxu0 0.0
    %1403 = vmatprep.subr.mxu0 0.0
    %1404 = vmatpush1.xpose.msra.mxu0 0.0
    %1405 = vmatprep.subr.mxu0 0.0
    %1406 = vmatpush1.xpose.msra.mxu0 0.0
    %1407 = vmatprep.subr.mxu0 0.0
    %1408 = vmatpush1.xpose.msra.mxu0 %v1280
    %1409 = vmatprep.subr.mxu0 0.0
    %1410 = vmatpush1.xpose.msra.mxu0 %v1279
    %1411 = vmatprep.subr.mxu0 0.0
    %1412 = vmatpush1.xpose.msra.mxu0 %v1278
    %1413 = vmatprep.subr.mxu0 0.0
    %1414 = vmatpush1.xpose.msra.mxu0 %v1277
    %1415 = vmatprep.subr.mxu0 0.0
    %1416 = vmatpush2.xpose.msra.mxu0 0.0
    %1417 = vmatprep.subr.mxu0 0.0
    %1418 = vmatpush2.xpose.msra.mxu0 0.0
    %1419 = vmatprep.subr.mxu0 0.0
    %1420 = vmatpush2.xpose.msra.mxu0 0.0
    %1421 = vmatprep.subr.mxu0 0.0
    %1422 = vmatpush2.xpose.msra.mxu0 0.0
    %1423 = vmatprep.subr.mxu0 0.0
    %1424 = vmatpush2.xpose.msra.mxu0 0.0
    %1425 = vmatprep.subr.mxu0 0.0
    %1426 = vmatpush2.xpose.msra.mxu0 0.0
    %1427 = vmatprep.subr.mxu0 0.0
    %1428 = vmatpush2.xpose.msra.mxu0 0.0
    %1429 = vmatprep.subr.mxu0 0.0
    %1430 = vmatpush2.xpose.msra.mxu0 0.0
    %1431 = vmatprep.subr.mxu0 0.0
    %1432 = vmatpush2.xpose.msra.mxu0 0.0
    %1433 = vmatprep.subr.mxu0 0.0
    %1434 = vmatpush2.xpose.msra.mxu0 0.0
    %1435 = vmatprep.subr.mxu0 0.0
    %1436 = vmatpush2.xpose.msra.mxu0 0.0
    %1437 = vmatprep.subr.mxu0 0.0
    %1438 = vmatpush2.xpose.msra.mxu0 0.0
    %1439 = vmatprep.subr.mxu0 0.0
    %1440 = vmatpush2.xpose.msra.mxu0 0.0
    %1441 = vmatprep.subr.mxu0 0.0
    %1442 = vmatpush2.xpose.msra.mxu0 0.0
    %1443 = vmatprep.subr.mxu0 0.0
    %1444 = vmatpush2.xpose.msra.mxu0 0.0
    %1445 = vmatprep.subr.mxu0 0.0
    %1446 = vmatpush2.xpose.msra.mxu0 0.0
    %1447 = vmatprep.mubr.f32.mxu0 0.0
    %1448 = vmatmul.mubr.f32.gmra.mxu0 %v66
    %v1449 = vpop.f32.mrf.mxu0
    %v1450 = vadd.f32 %v1306, %v1449
    %v1451 = vpop.f32.mrf.mxu0
    %1452 = vdwg.mxu0
    %1453 = vmatprep.subr.mxu0 0.0
    %1454 = vmatpush1.xpose.msra.mxu0 0.0
    %1455 = vmatprep.subr.mxu0 0.0
    %1456 = vmatpush1.xpose.msra.mxu0 0.0
    %1457 = vmatprep.subr.mxu0 0.0
    %1458 = vmatpush1.xpose.msra.mxu0 0.0
    %1459 = vmatprep.subr.mxu0 0.0
    %1460 = vmatpush1.xpose.msra.mxu0 0.0
    %1461 = vmatprep.subr.mxu0 0.0
    %1462 = vmatpush1.xpose.msra.mxu0 0.0
    %1463 = vmatprep.subr.mxu0 0.0
    %1464 = vmatpush1.xpose.msra.mxu0 0.0
    %1465 = vmatprep.subr.mxu0 0.0
    %1466 = vmatpush1.xpose.msra.mxu0 0.0
    %1467 = vmatprep.subr.mxu0 0.0
    %1468 = vmatpush1.xpose.msra.mxu0 0.0
    %1469 = vmatprep.subr.mxu0 0.0
    %1470 = vmatpush1.xpose.msra.mxu0 0.0
    %1471 = vmatprep.subr.mxu0 0.0
    %1472 = vmatpush1.xpose.msra.mxu0 0.0
    %1473 = vmatprep.subr.mxu0 0.0
    %1474 = vmatpush1.xpose.msra.mxu0 0.0
    %1475 = vmatprep.subr.mxu0 0.0
    %1476 = vmatpush1.xpose.msra.mxu0 0.0
    %1477 = vmatprep.subr.mxu0 0.0
    %1478 = vmatpush1.xpose.msra.mxu0 %v1284
    %1479 = vmatprep.subr.mxu0 0.0
    %1480 = vmatpush1.xpose.msra.mxu0 %v1283
    %1481 = vmatprep.subr.mxu0 0.0
    %1482 = vmatpush1.xpose.msra.mxu0 %v1282
    %1483 = vmatprep.subr.mxu0 0.0
    %1484 = vmatpush1.xpose.msra.mxu0 %v1281
    %1485 = vmatprep.subr.mxu0 0.0
    %1486 = vmatpush2.xpose.msra.mxu0 0.0
    %1487 = vmatprep.subr.mxu0 0.0
    %1488 = vmatpush2.xpose.msra.mxu0 0.0
    %1489 = vmatprep.subr.mxu0 0.0
    %1490 = vmatpush2.xpose.msra.mxu0 0.0
    %1491 = vmatprep.subr.mxu0 0.0
    %1492 = vmatpush2.xpose.msra.mxu0 0.0
    %1493 = vmatprep.subr.mxu0 0.0
    %1494 = vmatpush2.xpose.msra.mxu0 0.0
    %1495 = vmatprep.subr.mxu0 0.0
    %1496 = vmatpush2.xpose.msra.mxu0 0.0
    %1497 = vmatprep.subr.mxu0 0.0
    %1498 = vmatpush2.xpose.msra.mxu0 0.0
    %1499 = vmatprep.subr.mxu0 0.0
    %1500 = vmatpush2.xpose.msra.mxu0 0.0
    %1501 = vmatprep.subr.mxu0 0.0
    %1502 = vmatpush2.xpose.msra.mxu0 0.0
    %1503 = vmatprep.subr.mxu0 0.0
    %1504 = vmatpush2.xpose.msra.mxu0 0.0
    %1505 = vmatprep.subr.mxu0 0.0
    %1506 = vmatpush2.xpose.msra.mxu0 0.0
    %1507 = vmatprep.subr.mxu0 0.0
    %1508 = vmatpush2.xpose.msra.mxu0 0.0
    %1509 = vmatprep.subr.mxu0 0.0
    %1510 = vmatpush2.xpose.msra.mxu0 0.0
    %1511 = vmatprep.subr.mxu0 0.0
    %1512 = vmatpush2.xpose.msra.mxu0 0.0
    %1513 = vmatprep.subr.mxu0 0.0
    %1514 = vmatpush2.xpose.msra.mxu0 0.0
    %1515 = vmatprep.subr.mxu0 0.0
    %1516 = vmatpush2.xpose.msra.mxu0 0.0
    %1517 = vmatprep.mubr.f32.mxu0 0.0
    %1518 = vmatmul.mubr.f32.gmra.mxu0 %v67
    %v1519 = vpop.f32.mrf.mxu0
    %v1520 = vadd.f32 %v1307, %v1519
    %v1521 = vpop.f32.mrf.mxu0
    %1522 = vdwg.mxu0
    %1523 = vmatprep.subr.mxu0 0.0
    %1524 = vmatpush1.xpose.msra.mxu0 0.0
    %1525 = vmatprep.subr.mxu0 0.0
    %1526 = vmatpush1.xpose.msra.mxu0 0.0
    %1527 = vmatprep.subr.mxu0 0.0
    %1528 = vmatpush1.xpose.msra.mxu0 0.0
    %1529 = vmatprep.subr.mxu0 0.0
    %1530 = vmatpush1.xpose.msra.mxu0 0.0
    %1531 = vmatprep.subr.mxu0 0.0
    %1532 = vmatpush1.xpose.msra.mxu0 0.0
    %1533 = vmatprep.subr.mxu0 0.0
    %1534 = vmatpush1.xpose.msra.mxu0 0.0
    %1535 = vmatprep.subr.mxu0 0.0
    %1536 = vmatpush1.xpose.msra.mxu0 0.0
    %1537 = vmatprep.subr.mxu0 0.0
    %1538 = vmatpush1.xpose.msra.mxu0 0.0
    %1539 = vmatprep.subr.mxu0 0.0
    %1540 = vmatpush1.xpose.msra.mxu0 0.0
    %1541 = vmatprep.subr.mxu0 0.0
    %1542 = vmatpush1.xpose.msra.mxu0 0.0
    %1543 = vmatprep.subr.mxu0 0.0
    %1544 = vmatpush1.xpose.msra.mxu0 0.0
    %1545 = vmatprep.subr.mxu0 0.0
    %1546 = vmatpush1.xpose.msra.mxu0 0.0
    %1547 = vmatprep.subr.mxu0 0.0
    %1548 = vmatpush1.xpose.msra.mxu0 %v1288
    %1549 = vmatprep.subr.mxu0 0.0
    %1550 = vmatpush1.xpose.msra.mxu0 %v1287
    %1551 = vmatprep.subr.mxu0 0.0
    %1552 = vmatpush1.xpose.msra.mxu0 %v1286
    %1553 = vmatprep.subr.mxu0 0.0
    %1554 = vmatpush1.xpose.msra.mxu0 %v1285
    %1555 = vmatprep.subr.mxu0 0.0
    %1556 = vmatpush2.xpose.msra.mxu0 0.0
    %1557 = vmatprep.subr.mxu0 0.0
    %1558 = vmatpush2.xpose.msra.mxu0 0.0
    %1559 = vmatprep.subr.mxu0 0.0
    %1560 = vmatpush2.xpose.msra.mxu0 0.0
    %1561 = vmatprep.subr.mxu0 0.0
    %1562 = vmatpush2.xpose.msra.mxu0 0.0
    %1563 = vmatprep.subr.mxu0 0.0
    %1564 = vmatpush2.xpose.msra.mxu0 0.0
    %1565 = vmatprep.subr.mxu0 0.0
    %1566 = vmatpush2.xpose.msra.mxu0 0.0
    %1567 = vmatprep.subr.mxu0 0.0
    %1568 = vmatpush2.xpose.msra.mxu0 0.0
    %1569 = vmatprep.subr.mxu0 0.0
    %1570 = vmatpush2.xpose.msra.mxu0 0.0
    %1571 = vmatprep.subr.mxu0 0.0
    %1572 = vmatpush2.xpose.msra.mxu0 0.0
    %1573 = vmatprep.subr.mxu0 0.0
    %1574 = vmatpush2.xpose.msra.mxu0 0.0
    %1575 = vmatprep.subr.mxu0 0.0
    %1576 = vmatpush2.xpose.msra.mxu0 0.0
    %1577 = vmatprep.subr.mxu0 0.0
    %1578 = vmatpush2.xpose.msra.mxu0 0.0
    %1579 = vmatprep.subr.mxu0 0.0
    %1580 = vmatpush2.xpose.msra.mxu0 0.0
    %1581 = vmatprep.subr.mxu0 0.0
    %1582 = vmatpush2.xpose.msra.mxu0 0.0
    %1583 = vmatprep.subr.mxu0 0.0
    %1584 = vmatpush2.xpose.msra.mxu0 0.0
    %1585 = vmatprep.subr.mxu0 0.0
    %1586 = vmatpush2.xpose.msra.mxu0 0.0
    %1587 = vmatprep.mubr.f32.mxu0 0.0
    %1588 = vmatmul.mubr.f32.gmra.mxu0 %v68
    %v1589 = vpop.f32.mrf.mxu0
    %v1590 = vadd.f32 %v1308, %v1589
    %v1591 = vpop.f32.mrf.mxu0
    %1592 = vdwg.mxu0
    %1593 = vmatprep.subr.mxu0 0.0
    %1594 = vmatpush1.xpose.msra.mxu0 0.0
    %1595 = vmatprep.subr.mxu0 0.0
    %1596 = vmatpush1.xpose.msra.mxu0 0.0
    %1597 = vmatprep.subr.mxu0 0.0
    %1598 = vmatpush1.xpose.msra.mxu0 0.0
    %1599 = vmatprep.subr.mxu0 0.0
    %1600 = vmatpush1.xpose.msra.mxu0 0.0
    %1601 = vmatprep.subr.mxu0 0.0
    %1602 = vmatpush1.xpose.msra.mxu0 0.0
    %1603 = vmatprep.subr.mxu0 0.0
    %1604 = vmatpush1.xpose.msra.mxu0 0.0
    %1605 = vmatprep.subr.mxu0 0.0
    %1606 = vmatpush1.xpose.msra.mxu0 0.0
    %1607 = vmatprep.subr.mxu0 0.0
    %1608 = vmatpush1.xpose.msra.mxu0 0.0
    %1609 = vmatprep.subr.mxu0 0.0
    %1610 = vmatpush1.xpose.msra.mxu0 0.0
    %1611 = vmatprep.subr.mxu0 0.0
    %1612 = vmatpush1.xpose.msra.mxu0 0.0
    %1613 = vmatprep.subr.mxu0 0.0
    %1614 = vmatpush1.xpose.msra.mxu0 0.0
    %1615 = vmatprep.subr.mxu0 0.0
    %1616 = vmatpush1.xpose.msra.mxu0 0.0
    %1617 = vmatprep.subr.mxu0 0.0
    %1618 = vmatpush1.xpose.msra.mxu0 %v1292
    %1619 = vmatprep.subr.mxu0 0.0
    %1620 = vmatpush1.xpose.msra.mxu0 %v1291
    %1621 = vmatprep.subr.mxu0 0.0
    %1622 = vmatpush1.xpose.msra.mxu0 %v1290
    %1623 = vmatprep.subr.mxu0 0.0
    %1624 = vmatpush1.xpose.msra.mxu0 %v1289
    %1625 = vmatprep.subr.mxu0 0.0
    %1626 = vmatpush2.xpose.msra.mxu0 0.0
    %1627 = vmatprep.subr.mxu0 0.0
    %1628 = vmatpush2.xpose.msra.mxu0 0.0
    %1629 = vmatprep.subr.mxu0 0.0
    %1630 = vmatpush2.xpose.msra.mxu0 0.0
    %1631 = vmatprep.subr.mxu0 0.0
    %1632 = vmatpush2.xpose.msra.mxu0 0.0
    %1633 = vmatprep.subr.mxu0 0.0
    %1634 = vmatpush2.xpose.msra.mxu0 0.0
    %1635 = vmatprep.subr.mxu0 0.0
    %1636 = vmatpush2.xpose.msra.mxu0 0.0
    %1637 = vmatprep.subr.mxu0 0.0
    %1638 = vmatpush2.xpose.msra.mxu0 0.0
    %1639 = vmatprep.subr.mxu0 0.0
    %1640 = vmatpush2.xpose.msra.mxu0 0.0
    %1641 = vmatprep.subr.mxu0 0.0
    %1642 = vmatpush2.xpose.msra.mxu0 0.0
    %1643 = vmatprep.subr.mxu0 0.0
    %1644 = vmatpush2.xpose.msra.mxu0 0.0
    %1645 = vmatprep.subr.mxu0 0.0
    %1646 = vmatpush2.xpose.msra.mxu0 0.0
    %1647 = vmatprep.subr.mxu0 0.0
    %1648 = vmatpush2.xpose.msra.mxu0 0.0
    %1649 = vmatprep.subr.mxu0 0.0
    %1650 = vmatpush2.xpose.msra.mxu0 0.0
    %1651 = vmatprep.subr.mxu0 0.0
    %1652 = vmatpush2.xpose.msra.mxu0 0.0
    %1653 = vmatprep.subr.mxu0 0.0
    %1654 = vmatpush2.xpose.msra.mxu0 0.0
    %1655 = vmatprep.subr.mxu0 0.0
    %1656 = vmatpush2.xpose.msra.mxu0 0.0
    %1657 = vmatprep.mubr.f32.mxu0 0.0
    %1658 = vmatmul.mubr.f32.gmra.mxu0 %v69
    %v1659 = vpop.f32.mrf.mxu0
    %v1660 = vadd.f32 %v1309, %v1659
    %v1661 = vpop.f32.mrf.mxu0
    %1662 = vdwg.mxu0
    %1663 = vmatprep.subr.mxu0 0.0
    %1664 = vmatpush1.xpose.msra.mxu0 0.0
    %1665 = vmatprep.subr.mxu0 0.0
    %1666 = vmatpush1.xpose.msra.mxu0 0.0
    %1667 = vmatprep.subr.mxu0 0.0
    %1668 = vmatpush1.xpose.msra.mxu0 0.0
    %1669 = vmatprep.subr.mxu0 0.0
    %1670 = vmatpush1.xpose.msra.mxu0 0.0
    %1671 = vmatprep.subr.mxu0 0.0
    %1672 = vmatpush1.xpose.msra.mxu0 0.0
    %1673 = vmatprep.subr.mxu0 0.0
    %1674 = vmatpush1.xpose.msra.mxu0 0.0
    %1675 = vmatprep.subr.mxu0 0.0
    %1676 = vmatpush1.xpose.msra.mxu0 0.0
    %1677 = vmatprep.subr.mxu0 0.0
    %1678 = vmatpush1.xpose.msra.mxu0 0.0
    %1679 = vmatprep.subr.mxu0 0.0
    %1680 = vmatpush1.xpose.msra.mxu0 0.0
    %1681 = vmatprep.subr.mxu0 0.0
    %1682 = vmatpush1.xpose.msra.mxu0 0.0
    %1683 = vmatprep.subr.mxu0 0.0
    %1684 = vmatpush1.xpose.msra.mxu0 0.0
    %1685 = vmatprep.subr.mxu0 0.0
    %1686 = vmatpush1.xpose.msra.mxu0 0.0
    %1687 = vmatprep.subr.mxu0 0.0
    %1688 = vmatpush1.xpose.msra.mxu0 %v1296
    %1689 = vmatprep.subr.mxu0 0.0
    %1690 = vmatpush1.xpose.msra.mxu0 %v1295
    %1691 = vmatprep.subr.mxu0 0.0
    %1692 = vmatpush1.xpose.msra.mxu0 %v1294
    %1693 = vmatprep.subr.mxu0 0.0
    %1694 = vmatpush1.xpose.msra.mxu0 %v1293
    %1695 = vmatprep.subr.mxu0 0.0
    %1696 = vmatpush2.xpose.msra.mxu0 0.0
    %1697 = vmatprep.subr.mxu0 0.0
    %1698 = vmatpush2.xpose.msra.mxu0 0.0
    %1699 = vmatprep.subr.mxu0 0.0
    %1700 = vmatpush2.xpose.msra.mxu0 0.0
    %1701 = vmatprep.subr.mxu0 0.0
    %1702 = vmatpush2.xpose.msra.mxu0 0.0
    %1703 = vmatprep.subr.mxu0 0.0
    %1704 = vmatpush2.xpose.msra.mxu0 0.0
    %1705 = vmatprep.subr.mxu0 0.0
    %1706 = vmatpush2.xpose.msra.mxu0 0.0
    %1707 = vmatprep.subr.mxu0 0.0
    %1708 = vmatpush2.xpose.msra.mxu0 0.0
    %1709 = vmatprep.subr.mxu0 0.0
    %1710 = vmatpush2.xpose.msra.mxu0 0.0
    %1711 = vmatprep.subr.mxu0 0.0
    %1712 = vmatpush2.xpose.msra.mxu0 0.0
    %1713 = vmatprep.subr.mxu0 0.0
    %1714 = vmatpush2.xpose.msra.mxu0 0.0
    %1715 = vmatprep.subr.mxu0 0.0
    %1716 = vmatpush2.xpose.msra.mxu0 0.0
    %1717 = vmatprep.subr.mxu0 0.0
    %1718 = vmatpush2.xpose.msra.mxu0 0.0
    %1719 = vmatprep.subr.mxu0 0.0
    %1720 = vmatpush2.xpose.msra.mxu0 0.0
    %1721 = vmatprep.subr.mxu0 0.0
    %1722 = vmatpush2.xpose.msra.mxu0 0.0
    %1723 = vmatprep.subr.mxu0 0.0
    %1724 = vmatpush2.xpose.msra.mxu0 0.0
    %1725 = vmatprep.subr.mxu0 0.0
    %1726 = vmatpush2.xpose.msra.mxu0 0.0
    %1727 = vmatprep.mubr.f32.mxu0 0.0
    %1728 = vmatmul.mubr.f32.gmra.mxu0 %v70
    %v1729 = vpop.f32.mrf.mxu0
    %v1730 = vadd.f32 %v1310, %v1729
    %v1731 = vpop.f32.mrf.mxu0
    %1732 = vdwg.mxu0
    %1733 = vmatprep.subr.mxu0 0.0
    %1734 = vmatpush1.xpose.msra.mxu0 0.0
    %1735 = vmatprep.subr.mxu0 0.0
    %1736 = vmatpush1.xpose.msra.mxu0 0.0
    %1737 = vmatprep.subr.mxu0 0.0
    %1738 = vmatpush1.xpose.msra.mxu0 0.0
    %1739 = vmatprep.subr.mxu0 0.0
    %1740 = vmatpush1.xpose.msra.mxu0 0.0
    %1741 = vmatprep.subr.mxu0 0.0
    %1742 = vmatpush1.xpose.msra.mxu0 0.0
    %1743 = vmatprep.subr.mxu0 0.0
    %1744 = vmatpush1.xpose.msra.mxu0 0.0
    %1745 = vmatprep.subr.mxu0 0.0
    %1746 = vmatpush1.xpose.msra.mxu0 0.0
    %1747 = vmatprep.subr.mxu0 0.0
    %1748 = vmatpush1.xpose.msra.mxu0 0.0
    %1749 = vmatprep.subr.mxu0 0.0
    %1750 = vmatpush1.xpose.msra.mxu0 0.0
    %1751 = vmatprep.subr.mxu0 0.0
    %1752 = vmatpush1.xpose.msra.mxu0 0.0
    %1753 = vmatprep.subr.mxu0 0.0
    %1754 = vmatpush1.xpose.msra.mxu0 0.0
    %1755 = vmatprep.subr.mxu0 0.0
    %1756 = vmatpush1.xpose.msra.mxu0 0.0
    %1757 = vmatprep.subr.mxu0 0.0
    %1758 = vmatpush1.xpose.msra.mxu0 %v1300
    %1759 = vmatprep.subr.mxu0 0.0
    %1760 = vmatpush1.xpose.msra.mxu0 %v1299
    %1761 = vmatprep.subr.mxu0 0.0
    %1762 = vmatpush1.xpose.msra.mxu0 %v1298
    %1763 = vmatprep.subr.mxu0 0.0
    %1764 = vmatpush1.xpose.msra.mxu0 %v1297
    %1765 = vmatprep.subr.mxu0 0.0
    %1766 = vmatpush2.xpose.msra.mxu0 0.0
    %1767 = vmatprep.subr.mxu0 0.0
    %1768 = vmatpush2.xpose.msra.mxu0 0.0
    %1769 = vmatprep.subr.mxu0 0.0
    %1770 = vmatpush2.xpose.msra.mxu0 0.0
    %1771 = vmatprep.subr.mxu0 0.0
    %1772 = vmatpush2.xpose.msra.mxu0 0.0
    %1773 = vmatprep.subr.mxu0 0.0
    %1774 = vmatpush2.xpose.msra.mxu0 0.0
    %1775 = vmatprep.subr.mxu0 0.0
    %1776 = vmatpush2.xpose.msra.mxu0 0.0
    %1777 = vmatprep.subr.mxu0 0.0
    %1778 = vmatpush2.xpose.msra.mxu0 0.0
    %1779 = vmatprep.subr.mxu0 0.0
    %1780 = vmatpush2.xpose.msra.mxu0 0.0
    %1781 = vmatprep.subr.mxu0 0.0
    %1782 = vmatpush2.xpose.msra.mxu0 0.0
    %1783 = vmatprep.subr.mxu0 0.0
    %1784 = vmatpush2.xpose.msra.mxu0 0.0
    %1785 = vmatprep.subr.mxu0 0.0
    %1786 = vmatpush2.xpose.msra.mxu0 0.0
    %1787 = vmatprep.subr.mxu0 0.0
    %1788 = vmatpush2.xpose.msra.mxu0 0.0
    %1789 = vmatprep.subr.mxu0 0.0
    %1790 = vmatpush2.xpose.msra.mxu0 0.0
    %1791 = vmatprep.subr.mxu0 0.0
    %1792 = vmatpush2.xpose.msra.mxu0 0.0
    %1793 = vmatprep.subr.mxu0 0.0
    %1794 = vmatpush2.xpose.msra.mxu0 0.0
    %1795 = vmatprep.subr.mxu0 0.0
    %1796 = vmatpush2.xpose.msra.mxu0 0.0
    %1797 = vmatprep.mubr.f32.mxu0 0.0
    %1798 = vmatmul.mubr.f32.gmra.mxu0 %v71
    %v1799 = vpop.f32.mrf.mxu0
    %v1800 = vadd.f32 %v1311, %v1799
    %v1801 = vpop.f32.mrf.mxu0
    %1802 = vdwg.mxu0
    %1803 = vmatprep.subr.mxu0 0.0
    %1804 = vmatpush1.xpose.msra.mxu0 0.0
    %1805 = vmatprep.subr.mxu0 0.0
    %1806 = vmatpush1.xpose.msra.mxu0 0.0
    %1807 = vmatprep.subr.mxu0 0.0
    %1808 = vmatpush1.xpose.msra.mxu0 0.0
    %1809 = vmatprep.subr.mxu0 0.0
    %1810 = vmatpush1.xpose.msra.mxu0 0.0
    %1811 = vmatprep.subr.mxu0 0.0
    %1812 = vmatpush1.xpose.msra.mxu0 0.0
    %1813 = vmatprep.subr.mxu0 0.0
    %1814 = vmatpush1.xpose.msra.mxu0 0.0
    %1815 = vmatprep.subr.mxu0 0.0
    %1816 = vmatpush1.xpose.msra.mxu0 0.0
    %1817 = vmatprep.subr.mxu0 0.0
    %1818 = vmatpush1.xpose.msra.mxu0 0.0
    %1819 = vmatprep.subr.mxu0 0.0
    %1820 = vmatpush1.xpose.msra.mxu0 0.0
    %1821 = vmatprep.subr.mxu0 0.0
    %1822 = vmatpush1.xpose.msra.mxu0 0.0
    %1823 = vmatprep.subr.mxu0 0.0
    %1824 = vmatpush1.xpose.msra.mxu0 0.0
    %1825 = vmatprep.subr.mxu0 0.0
    %1826 = vmatpush1.xpose.msra.mxu0 0.0
    %1827 = vmatprep.subr.mxu0 0.0
    %1828 = vmatpush1.xpose.msra.mxu0 %v1304
    %1829 = vmatprep.subr.mxu0 0.0
    %1830 = vmatpush1.xpose.msra.mxu0 %v1303
    %1831 = vmatprep.subr.mxu0 0.0
    %1832 = vmatpush1.xpose.msra.mxu0 %v1302
    %1833 = vmatprep.subr.mxu0 0.0
    %1834 = vmatpush1.xpose.msra.mxu0 %v1301
    %1835 = vmatprep.subr.mxu0 0.0
    %1836 = vmatpush2.xpose.msra.mxu0 0.0
    %1837 = vmatprep.subr.mxu0 0.0
    %1838 = vmatpush2.xpose.msra.mxu0 0.0
    %1839 = vmatprep.subr.mxu0 0.0
    %1840 = vmatpush2.xpose.msra.mxu0 0.0
    %1841 = vmatprep.subr.mxu0 0.0
    %1842 = vmatpush2.xpose.msra.mxu0 0.0
    %1843 = vmatprep.subr.mxu0 0.0
    %1844 = vmatpush2.xpose.msra.mxu0 0.0
    %1845 = vmatprep.subr.mxu0 0.0
    %1846 = vmatpush2.xpose.msra.mxu0 0.0
    %1847 = vmatprep.subr.mxu0 0.0
    %1848 = vmatpush2.xpose.msra.mxu0 0.0
    %1849 = vmatprep.subr.mxu0 0.0
    %1850 = vmatpush2.xpose.msra.mxu0 0.0
    %1851 = vmatprep.subr.mxu0 0.0
    %1852 = vmatpush2.xpose.msra.mxu0 0.0
    %1853 = vmatprep.subr.mxu0 0.0
    %1854 = vmatpush2.xpose.msra.mxu0 0.0
    %1855 = vmatprep.subr.mxu0 0.0
    %1856 = vmatpush2.xpose.msra.mxu0 0.0
    %1857 = vmatprep.subr.mxu0 0.0
    %1858 = vmatpush2.xpose.msra.mxu0 0.0
    %1859 = vmatprep.subr.mxu0 0.0
    %1860 = vmatpush2.xpose.msra.mxu0 0.0
    %1861 = vmatprep.subr.mxu0 0.0
    %1862 = vmatpush2.xpose.msra.mxu0 0.0
    %1863 = vmatprep.subr.mxu0 0.0
    %1864 = vmatpush2.xpose.msra.mxu0 0.0
    %1865 = vmatprep.subr.mxu0 0.0
    %1866 = vmatpush2.xpose.msra.mxu0 0.0
    %1867 = vmatprep.mubr.f32.mxu0 0.0
    %1868 = vmatmul.mubr.f32.gmra.mxu0 %v72
    %v1869 = vpop.f32.mrf.mxu0
    %v1870 = vadd.f32 %v1312, %v1869
    %v1871 = vpop.f32.mrf.mxu0
    %1872 = vdwg.mxu0
    %v1873 = vld [vmem:[%s2] sm:$0xff]
    %v1874 = vld [vmem:[%s2 + $0x8] sm:$0xff]
    %v1875 = vld [vmem:[%s2 + $0x10] sm:$0xff]
    %v1876 = vld [vmem:[%s2 + $0x18] sm:$0xff]
    %v1877 = vld [vmem:[%s2 + $0x20] sm:$0xff]
    %v1878 = vld [vmem:[%s2 + $0x28] sm:$0xff]
    %v1879 = vld [vmem:[%s2 + $0x30] sm:$0xff]
    %v1880 = vld [vmem:[%s2 + $0x38] sm:$0xff]
    %vm1881 = vcmask 261120
    %v1883 = vsel %vm1881, %v180, 0
    %v1886 = vsel %vm1881, %v780, 0
    %1888 = vmatprep.subr.mxu0 0.0
    %1889 = vmatpush1.xpose.msra.mxu0 0.0
    %1890 = vmatprep.subr.mxu0 0.0
    %1891 = vmatpush1.xpose.msra.mxu0 0.0
    %1892 = vmatprep.subr.mxu0 0.0
    %1893 = vmatpush1.xpose.msra.mxu0 0.0
    %1894 = vmatprep.subr.mxu0 0.0
    %1895 = vmatpush1.xpose.msra.mxu0 0.0
    %1896 = vmatprep.subr.mxu0 0.0
    %1897 = vmatpush1.xpose.msra.mxu0 0.0
    %1898 = vmatprep.subr.mxu0 0.0
    %1899 = vmatpush1.xpose.msra.mxu0 0.0
    %1900 = vmatprep.subr.mxu0 0.0
    %1901 = vmatpush1.xpose.msra.mxu0 0.0
    %1902 = vmatprep.subr.mxu0 0.0
    %1903 = vmatpush1.xpose.msra.mxu0 0.0
    %1904 = vmatprep.subr.mxu0 0.0
    %1905 = vmatpush1.xpose.msra.mxu0 0.0
    %1906 = vmatprep.subr.mxu0 0.0
    %1907 = vmatpush1.xpose.msra.mxu0 0.0
    %1908 = vmatprep.subr.mxu0 0.0
    %1909 = vmatpush1.xpose.msra.mxu0 0.0
    %1910 = vmatprep.subr.mxu0 0.0
    %1911 = vmatpush1.xpose.msra.mxu0 0.0
    %1912 = vmatprep.subr.mxu0 0.0
    %1913 = vmatpush1.xpose.msra.mxu0 0.0
    %1914 = vmatprep.subr.mxu0 0.0
    %1915 = vmatpush1.xpose.msra.mxu0 0.0
    %1916 = vmatprep.subr.mxu0 0.0
    %1917 = vmatpush1.xpose.msra.mxu0 0.0
    %1918 = vmatprep.subr.mxu0 0.0
    %1919 = vmatpush1.xpose.msra.mxu0 %v1886
    %1920 = vmatprep.subr.mxu0 0.0
    %1921 = vmatpush2.xpose.msra.mxu0 0.0
    %1922 = vmatprep.subr.mxu0 0.0
    %1923 = vmatpush2.xpose.msra.mxu0 0.0
    %1924 = vmatprep.subr.mxu0 0.0
    %1925 = vmatpush2.xpose.msra.mxu0 0.0
    %1926 = vmatprep.subr.mxu0 0.0
    %1927 = vmatpush2.xpose.msra.mxu0 0.0
    %1928 = vmatprep.subr.mxu0 0.0
    %1929 = vmatpush2.xpose.msra.mxu0 0.0
    %1930 = vmatprep.subr.mxu0 0.0
    %1931 = vmatpush2.xpose.msra.mxu0 0.0
    %1932 = vmatprep.subr.mxu0 0.0
    %1933 = vmatpush2.xpose.msra.mxu0 0.0
    %1934 = vmatprep.subr.mxu0 0.0
    %1935 = vmatpush2.xpose.msra.mxu0 0.0
    %1936 = vmatprep.subr.mxu0 0.0
    %1937 = vmatpush2.xpose.msra.mxu0 0.0
    %1938 = vmatprep.subr.mxu0 0.0
    %1939 = vmatpush2.xpose.msra.mxu0 0.0
    %1940 = vmatprep.subr.mxu0 0.0
    %1941 = vmatpush2.xpose.msra.mxu0 0.0
    %1942 = vmatprep.subr.mxu0 0.0
    %1943 = vmatpush2.xpose.msra.mxu0 0.0
    %1944 = vmatprep.subr.mxu0 0.0
    %1945 = vmatpush2.xpose.msra.mxu0 0.0
    %1946 = vmatprep.subr.mxu0 0.0
    %1947 = vmatpush2.xpose.msra.mxu0 0.0
    %1948 = vmatprep.subr.mxu0 0.0
    %1949 = vmatpush2.xpose.msra.mxu0 0.0
    %1950 = vmatprep.subr.mxu0 0.0
    %1951 = vmatpush2.xpose.msra.mxu0 0.0
    %1952 = vmatprep.mubr.f32.mxu0 0.0
    %1953 = vmatmul.mubr.f32.gmra.mxu0 %v1883
    %v1954 = vpop.f32.mrf.mxu0
    %v1955 = vadd.f32 %v1873, %v1954
    %v1956 = vpop.f32.mrf.mxu0
    %1957 = vdwg.mxu0
    %v1959 = vsel %vm1881, %v250, 0
    %v1962 = vsel %vm1881, %v850, 0
    %1964 = vmatprep.subr.mxu0 0.0
    %1965 = vmatpush1.xpose.msra.mxu0 0.0
    %1966 = vmatprep.subr.mxu0 0.0
    %1967 = vmatpush1.xpose.msra.mxu0 0.0
    %1968 = vmatprep.subr.mxu0 0.0
    %1969 = vmatpush1.xpose.msra.mxu0 0.0
    %1970 = vmatprep.subr.mxu0 0.0
    %1971 = vmatpush1.xpose.msra.mxu0 0.0
    %1972 = vmatprep.subr.mxu0 0.0
    %1973 = vmatpush1.xpose.msra.mxu0 0.0
    %1974 = vmatprep.subr.mxu0 0.0
    %1975 = vmatpush1.xpose.msra.mxu0 0.0
    %1976 = vmatprep.subr.mxu0 0.0
    %1977 = vmatpush1.xpose.msra.mxu0 0.0
    %1978 = vmatprep.subr.mxu0 0.0
    %1979 = vmatpush1.xpose.msra.mxu0 0.0
    %1980 = vmatprep.subr.mxu0 0.0
    %1981 = vmatpush1.xpose.msra.mxu0 0.0
    %1982 = vmatprep.subr.mxu0 0.0
    %1983 = vmatpush1.xpose.msra.mxu0 0.0
    %1984 = vmatprep.subr.mxu0 0.0
    %1985 = vmatpush1.xpose.msra.mxu0 0.0
    %1986 = vmatprep.subr.mxu0 0.0
    %1987 = vmatpush1.xpose.msra.mxu0 0.0
    %1988 = vmatprep.subr.mxu0 0.0
    %1989 = vmatpush1.xpose.msra.mxu0 0.0
    %1990 = vmatprep.subr.mxu0 0.0
    %1991 = vmatpush1.xpose.msra.mxu0 0.0
    %1992 = vmatprep.subr.mxu0 0.0
    %1993 = vmatpush1.xpose.msra.mxu0 0.0
    %1994 = vmatprep.subr.mxu0 0.0
    %1995 = vmatpush1.xpose.msra.mxu0 %v1962
    %1996 = vmatprep.subr.mxu0 0.0
    %1997 = vmatpush2.xpose.msra.mxu0 0.0
    %1998 = vmatprep.subr.mxu0 0.0
    %1999 = vmatpush2.xpose.msra.mxu0 0.0
    %2000 = vmatprep.subr.mxu0 0.0
    %2001 = vmatpush2.xpose.msra.mxu0 0.0
    %2002 = vmatprep.subr.mxu0 0.0
    %2003 = vmatpush2.xpose.msra.mxu0 0.0
    %2004 = vmatprep.subr.mxu0 0.0
    %2005 = vmatpush2.xpose.msra.mxu0 0.0
    %2006 = vmatprep.subr.mxu0 0.0
    %2007 = vmatpush2.xpose.msra.mxu0 0.0
    %2008 = vmatprep.subr.mxu0 0.0
    %2009 = vmatpush2.xpose.msra.mxu0 0.0
    %2010 = vmatprep.subr.mxu0 0.0
    %2011 = vmatpush2.xpose.msra.mxu0 0.0
    %2012 = vmatprep.subr.mxu0 0.0
    %2013 = vmatpush2.xpose.msra.mxu0 0.0
    %2014 = vmatprep.subr.mxu0 0.0
    %2015 = vmatpush2.xpose.msra.mxu0 0.0
    %2016 = vmatprep.subr.mxu0 0.0
    %2017 = vmatpush2.xpose.msra.mxu0 0.0
    %2018 = vmatprep.subr.mxu0 0.0
    %2019 = vmatpush2.xpose.msra.mxu0 0.0
    %2020 = vmatprep.subr.mxu0 0.0
    %2021 = vmatpush2.xpose.msra.mxu0 0.0
    %2022 = vmatprep.subr.mxu0 0.0
    %2023 = vmatpush2.xpose.msra.mxu0 0.0
    %2024 = vmatprep.subr.mxu0 0.0
    %2025 = vmatpush2.xpose.msra.mxu0 0.0
    %2026 = vmatprep.subr.mxu0 0.0
    %2027 = vmatpush2.xpose.msra.mxu0 0.0
    %2028 = vmatprep.mubr.f32.mxu0 0.0
    %2029 = vmatmul.mubr.f32.gmra.mxu0 %v1959
    %v2030 = vpop.f32.mrf.mxu0
    %v2031 = vadd.f32 %v1874, %v2030
    %v2032 = vpop.f32.mrf.mxu0
    %2033 = vdwg.mxu0
    %v2035 = vsel %vm1881, %v320, 0
    %v2038 = vsel %vm1881, %v920, 0
    %2040 = vmatprep.subr.mxu0 0.0
    %2041 = vmatpush1.xpose.msra.mxu0 0.0
    %2042 = vmatprep.subr.mxu0 0.0
    %2043 = vmatpush1.xpose.msra.mxu0 0.0
    %2044 = vmatprep.subr.mxu0 0.0
    %2045 = vmatpush1.xpose.msra.mxu0 0.0
    %2046 = vmatprep.subr.mxu0 0.0
    %2047 = vmatpush1.xpose.msra.mxu0 0.0
    %2048 = vmatprep.subr.mxu0 0.0
    %2049 = vmatpush1.xpose.msra.mxu0 0.0
    %2050 = vmatprep.subr.mxu0 0.0
    %2051 = vmatpush1.xpose.msra.mxu0 0.0
    %2052 = vmatprep.subr.mxu0 0.0
    %2053 = vmatpush1.xpose.msra.mxu0 0.0
    %2054 = vmatprep.subr.mxu0 0.0
    %2055 = vmatpush1.xpose.msra.mxu0 0.0
    %2056 = vmatprep.subr.mxu0 0.0
    %2057 = vmatpush1.xpose.msra.mxu0 0.0
    %2058 = vmatprep.subr.mxu0 0.0
    %2059 = vmatpush1.xpose.msra.mxu0 0.0
    %2060 = vmatprep.subr.mxu0 0.0
    %2061 = vmatpush1.xpose.msra.mxu0 0.0
    %2062 = vmatprep.subr.mxu0 0.0
    %2063 = vmatpush1.xpose.msra.mxu0 0.0
    %2064 = vmatprep.subr.mxu0 0.0
    %2065 = vmatpush1.xpose.msra.mxu0 0.0
    %2066 = vmatprep.subr.mxu0 0.0
    %2067 = vmatpush1.xpose.msra.mxu0 0.0
    %2068 = vmatprep.subr.mxu0 0.0
    %2069 = vmatpush1.xpose.msra.mxu0 0.0
    %2070 = vmatprep.subr.mxu0 0.0
    %2071 = vmatpush1.xpose.msra.mxu0 %v2038
    %2072 = vmatprep.subr.mxu0 0.0
    %2073 = vmatpush2.xpose.msra.mxu0 0.0
    %2074 = vmatprep.subr.mxu0 0.0
    %2075 = vmatpush2.xpose.msra.mxu0 0.0
    %2076 = vmatprep.subr.mxu0 0.0
    %2077 = vmatpush2.xpose.msra.mxu0 0.0
    %2078 = vmatprep.subr.mxu0 0.0
    %2079 = vmatpush2.xpose.msra.mxu0 0.0
    %2080 = vmatprep.subr.mxu0 0.0
    %2081 = vmatpush2.xpose.msra.mxu0 0.0
    %2082 = vmatprep.subr.mxu0 0.0
    %2083 = vmatpush2.xpose.msra.mxu0 0.0
    %2084 = vmatprep.subr.mxu0 0.0
    %2085 = vmatpush2.xpose.msra.mxu0 0.0
    %2086 = vmatprep.subr.mxu0 0.0
    %2087 = vmatpush2.xpose.msra.mxu0 0.0
    %2088 = vmatprep.subr.mxu0 0.0
    %2089 = vmatpush2.xpose.msra.mxu0 0.0
    %2090 = vmatprep.subr.mxu0 0.0
    %2091 = vmatpush2.xpose.msra.mxu0 0.0
    %2092 = vmatprep.subr.mxu0 0.0
    %2093 = vmatpush2.xpose.msra.mxu0 0.0
    %2094 = vmatprep.subr.mxu0 0.0
    %2095 = vmatpush2.xpose.msra.mxu0 0.0
    %2096 = vmatprep.subr.mxu0 0.0
    %2097 = vmatpush2.xpose.msra.mxu0 0.0
    %2098 = vmatprep.subr.mxu0 0.0
    %2099 = vmatpush2.xpose.msra.mxu0 0.0
    %2100 = vmatprep.subr.mxu0 0.0
    %2101 = vmatpush2.xpose.msra.mxu0 0.0
    %2102 = vmatprep.subr.mxu0 0.0
    %2103 = vmatpush2.xpose.msra.mxu0 0.0
    %2104 = vmatprep.mubr.f32.mxu0 0.0
    %2105 = vmatmul.mubr.f32.gmra.mxu0 %v2035
    %v2106 = vpop.f32.mrf.mxu0
    %v2107 = vadd.f32 %v1875, %v2106
    %v2108 = vpop.f32.mrf.mxu0
    %2109 = vdwg.mxu0
    %v2111 = vsel %vm1881, %v390, 0
    %v2114 = vsel %vm1881, %v990, 0
    %2116 = vmatprep.subr.mxu0 0.0
    %2117 = vmatpush1.xpose.msra.mxu0 0.0
    %2118 = vmatprep.subr.mxu0 0.0
    %2119 = vmatpush1.xpose.msra.mxu0 0.0
    %2120 = vmatprep.subr.mxu0 0.0
    %2121 = vmatpush1.xpose.msra.mxu0 0.0
    %2122 = vmatprep.subr.mxu0 0.0
    %2123 = vmatpush1.xpose.msra.mxu0 0.0
    %2124 = vmatprep.subr.mxu0 0.0
    %2125 = vmatpush1.xpose.msra.mxu0 0.0
    %2126 = vmatprep.subr.mxu0 0.0
    %2127 = vmatpush1.xpose.msra.mxu0 0.0
    %2128 = vmatprep.subr.mxu0 0.0
    %2129 = vmatpush1.xpose.msra.mxu0 0.0
    %2130 = vmatprep.subr.mxu0 0.0
    %2131 = vmatpush1.xpose.msra.mxu0 0.0
    %2132 = vmatprep.subr.mxu0 0.0
    %2133 = vmatpush1.xpose.msra.mxu0 0.0
    %2134 = vmatprep.subr.mxu0 0.0
    %2135 = vmatpush1.xpose.msra.mxu0 0.0
    %2136 = vmatprep.subr.mxu0 0.0
    %2137 = vmatpush1.xpose.msra.mxu0 0.0
    %2138 = vmatprep.subr.mxu0 0.0
    %2139 = vmatpush1.xpose.msra.mxu0 0.0
    %2140 = vmatprep.subr.mxu0 0.0
    %2141 = vmatpush1.xpose.msra.mxu0 0.0
    %2142 = vmatprep.subr.mxu0 0.0
    %2143 = vmatpush1.xpose.msra.mxu0 0.0
    %2144 = vmatprep.subr.mxu0 0.0
    %2145 = vmatpush1.xpose.msra.mxu0 0.0
    %2146 = vmatprep.subr.mxu0 0.0
    %2147 = vmatpush1.xpose.msra.mxu0 %v2114
    %2148 = vmatprep.subr.mxu0 0.0
    %2149 = vmatpush2.xpose.msra.mxu0 0.0
    %2150 = vmatprep.subr.mxu0 0.0
    %2151 = vmatpush2.xpose.msra.mxu0 0.0
    %2152 = vmatprep.subr.mxu0 0.0
    %2153 = vmatpush2.xpose.msra.mxu0 0.0
    %2154 = vmatprep.subr.mxu0 0.0
    %2155 = vmatpush2.xpose.msra.mxu0 0.0
    %2156 = vmatprep.subr.mxu0 0.0
    %2157 = vmatpush2.xpose.msra.mxu0 0.0
    %2158 = vmatprep.subr.mxu0 0.0
    %2159 = vmatpush2.xpose.msra.mxu0 0.0
    %2160 = vmatprep.subr.mxu0 0.0
    %2161 = vmatpush2.xpose.msra.mxu0 0.0
    %2162 = vmatprep.subr.mxu0 0.0
    %2163 = vmatpush2.xpose.msra.mxu0 0.0
    %2164 = vmatprep.subr.mxu0 0.0
    %2165 = vmatpush2.xpose.msra.mxu0 0.0
    %2166 = vmatprep.subr.mxu0 0.0
    %2167 = vmatpush2.xpose.msra.mxu0 0.0
    %2168 = vmatprep.subr.mxu0 0.0
    %2169 = vmatpush2.xpose.msra.mxu0 0.0
    %2170 = vmatprep.subr.mxu0 0.0
    %2171 = vmatpush2.xpose.msra.mxu0 0.0
    %2172 = vmatprep.subr.mxu0 0.0
    %2173 = vmatpush2.xpose.msra.mxu0 0.0
    %2174 = vmatprep.subr.mxu0 0.0
    %2175 = vmatpush2.xpose.msra.mxu0 0.0
    %2176 = vmatprep.subr.mxu0 0.0
    %2177 = vmatpush2.xpose.msra.mxu0 0.0
    %2178 = vmatprep.subr.mxu0 0.0
    %2179 = vmatpush2.xpose.msra.mxu0 0.0
    %2180 = vmatprep.mubr.f32.mxu0 0.0
    %2181 = vmatmul.mubr.f32.gmra.mxu0 %v2111
    %v2182 = vpop.f32.mrf.mxu0
    %v2183 = vadd.f32 %v1876, %v2182
    %v2184 = vpop.f32.mrf.mxu0
    %2185 = vdwg.mxu0
    %v2187 = vsel %vm1881, %v460, 0
    %v2190 = vsel %vm1881, %v1060, 0
    %2192 = vmatprep.subr.mxu0 0.0
    %2193 = vmatpush1.xpose.msra.mxu0 0.0
    %2194 = vmatprep.subr.mxu0 0.0
    %2195 = vmatpush1.xpose.msra.mxu0 0.0
    %2196 = vmatprep.subr.mxu0 0.0
    %2197 = vmatpush1.xpose.msra.mxu0 0.0
    %2198 = vmatprep.subr.mxu0 0.0
    %2199 = vmatpush1.xpose.msra.mxu0 0.0
    %2200 = vmatprep.subr.mxu0 0.0
    %2201 = vmatpush1.xpose.msra.mxu0 0.0
    %2202 = vmatprep.subr.mxu0 0.0
    %2203 = vmatpush1.xpose.msra.mxu0 0.0
    %2204 = vmatprep.subr.mxu0 0.0
    %2205 = vmatpush1.xpose.msra.mxu0 0.0
    %2206 = vmatprep.subr.mxu0 0.0
    %2207 = vmatpush1.xpose.msra.mxu0 0.0
    %2208 = vmatprep.subr.mxu0 0.0
    %2209 = vmatpush1.xpose.msra.mxu0 0.0
    %2210 = vmatprep.subr.mxu0 0.0
    %2211 = vmatpush1.xpose.msra.mxu0 0.0
    %2212 = vmatprep.subr.mxu0 0.0
    %2213 = vmatpush1.xpose.msra.mxu0 0.0
    %2214 = vmatprep.subr.mxu0 0.0
    %2215 = vmatpush1.xpose.msra.mxu0 0.0
    %2216 = vmatprep.subr.mxu0 0.0
    %2217 = vmatpush1.xpose.msra.mxu0 0.0
    %2218 = vmatprep.subr.mxu0 0.0
    %2219 = vmatpush1.xpose.msra.mxu0 0.0
    %2220 = vmatprep.subr.mxu0 0.0
    %2221 = vmatpush1.xpose.msra.mxu0 0.0
    %2222 = vmatprep.subr.mxu0 0.0
    %2223 = vmatpush1.xpose.msra.mxu0 %v2190
    %2224 = vmatprep.subr.mxu0 0.0
    %2225 = vmatpush2.xpose.msra.mxu0 0.0
    %2226 = vmatprep.subr.mxu0 0.0
    %2227 = vmatpush2.xpose.msra.mxu0 0.0
    %2228 = vmatprep.subr.mxu0 0.0
    %2229 = vmatpush2.xpose.msra.mxu0 0.0
    %2230 = vmatprep.subr.mxu0 0.0
    %2231 = vmatpush2.xpose.msra.mxu0 0.0
    %2232 = vmatprep.subr.mxu0 0.0
    %2233 = vmatpush2.xpose.msra.mxu0 0.0
    %2234 = vmatprep.subr.mxu0 0.0
    %2235 = vmatpush2.xpose.msra.mxu0 0.0
    %2236 = vmatprep.subr.mxu0 0.0
    %2237 = vmatpush2.xpose.msra.mxu0 0.0
    %2238 = vmatprep.subr.mxu0 0.0
    %2239 = vmatpush2.xpose.msra.mxu0 0.0
    %2240 = vmatprep.subr.mxu0 0.0
    %2241 = vmatpush2.xpose.msra.mxu0 0.0
    %2242 = vmatprep.subr.mxu0 0.0
    %2243 = vmatpush2.xpose.msra.mxu0 0.0
    %2244 = vmatprep.subr.mxu0 0.0
    %2245 = vmatpush2.xpose.msra.mxu0 0.0
    %2246 = vmatprep.subr.mxu0 0.0
    %2247 = vmatpush2.xpose.msra.mxu0 0.0
    %2248 = vmatprep.subr.mxu0 0.0
    %2249 = vmatpush2.xpose.msra.mxu0 0.0
    %2250 = vmatprep.subr.mxu0 0.0
    %2251 = vmatpush2.xpose.msra.mxu0 0.0
    %2252 = vmatprep.subr.mxu0 0.0
    %2253 = vmatpush2.xpose.msra.mxu0 0.0
    %2254 = vmatprep.subr.mxu0 0.0
    %2255 = vmatpush2.xpose.msra.mxu0 0.0
    %2256 = vmatprep.mubr.f32.mxu0 0.0
    %2257 = vmatmul.mubr.f32.gmra.mxu0 %v2187
    %v2258 = vpop.f32.mrf.mxu0
    %v2259 = vadd.f32 %v1877, %v2258
    %v2260 = vpop.f32.mrf.mxu0
    %2261 = vdwg.mxu0
    %v2263 = vsel %vm1881, %v530, 0
    %v2266 = vsel %vm1881, %v1130, 0
    %2268 = vmatprep.subr.mxu0 0.0
    %2269 = vmatpush1.xpose.msra.mxu0 0.0
    %2270 = vmatprep.subr.mxu0 0.0
    %2271 = vmatpush1.xpose.msra.mxu0 0.0
    %2272 = vmatprep.subr.mxu0 0.0
    %2273 = vmatpush1.xpose.msra.mxu0 0.0
    %2274 = vmatprep.subr.mxu0 0.0
    %2275 = vmatpush1.xpose.msra.mxu0 0.0
    %2276 = vmatprep.subr.mxu0 0.0
    %2277 = vmatpush1.xpose.msra.mxu0 0.0
    %2278 = vmatprep.subr.mxu0 0.0
    %2279 = vmatpush1.xpose.msra.mxu0 0.0
    %2280 = vmatprep.subr.mxu0 0.0
    %2281 = vmatpush1.xpose.msra.mxu0 0.0
    %2282 = vmatprep.subr.mxu0 0.0
    %2283 = vmatpush1.xpose.msra.mxu0 0.0
    %2284 = vmatprep.subr.mxu0 0.0
    %2285 = vmatpush1.xpose.msra.mxu0 0.0
    %2286 = vmatprep.subr.mxu0 0.0
    %2287 = vmatpush1.xpose.msra.mxu0 0.0
    %2288 = vmatprep.subr.mxu0 0.0
    %2289 = vmatpush1.xpose.msra.mxu0 0.0
    %2290 = vmatprep.subr.mxu0 0.0
    %2291 = vmatpush1.xpose.msra.mxu0 0.0
    %2292 = vmatprep.subr.mxu0 0.0
    %2293 = vmatpush1.xpose.msra.mxu0 0.0
    %2294 = vmatprep.subr.mxu0 0.0
    %2295 = vmatpush1.xpose.msra.mxu0 0.0
    %2296 = vmatprep.subr.mxu0 0.0
    %2297 = vmatpush1.xpose.msra.mxu0 0.0
    %2298 = vmatprep.subr.mxu0 0.0
    %2299 = vmatpush1.xpose.msra.mxu0 %v2266
    %2300 = vmatprep.subr.mxu0 0.0
    %2301 = vmatpush2.xpose.msra.mxu0 0.0
    %2302 = vmatprep.subr.mxu0 0.0
    %2303 = vmatpush2.xpose.msra.mxu0 0.0
    %2304 = vmatprep.subr.mxu0 0.0
    %2305 = vmatpush2.xpose.msra.mxu0 0.0
    %2306 = vmatprep.subr.mxu0 0.0
    %2307 = vmatpush2.xpose.msra.mxu0 0.0
    %2308 = vmatprep.subr.mxu0 0.0
    %2309 = vmatpush2.xpose.msra.mxu0 0.0
    %2310 = vmatprep.subr.mxu0 0.0
    %2311 = vmatpush2.xpose.msra.mxu0 0.0
    %2312 = vmatprep.subr.mxu0 0.0
    %2313 = vmatpush2.xpose.msra.mxu0 0.0
    %2314 = vmatprep.subr.mxu0 0.0
    %2315 = vmatpush2.xpose.msra.mxu0 0.0
    %2316 = vmatprep.subr.mxu0 0.0
    %2317 = vmatpush2.xpose.msra.mxu0 0.0
    %2318 = vmatprep.subr.mxu0 0.0
    %2319 = vmatpush2.xpose.msra.mxu0 0.0
    %2320 = vmatprep.subr.mxu0 0.0
    %2321 = vmatpush2.xpose.msra.mxu0 0.0
    %2322 = vmatprep.subr.mxu0 0.0
    %2323 = vmatpush2.xpose.msra.mxu0 0.0
    %2324 = vmatprep.subr.mxu0 0.0
    %2325 = vmatpush2.xpose.msra.mxu0 0.0
    %2326 = vmatprep.subr.mxu0 0.0
    %2327 = vmatpush2.xpose.msra.mxu0 0.0
    %2328 = vmatprep.subr.mxu0 0.0
    %2329 = vmatpush2.xpose.msra.mxu0 0.0
    %2330 = vmatprep.subr.mxu0 0.0
    %2331 = vmatpush2.xpose.msra.mxu0 0.0
    %2332 = vmatprep.mubr.f32.mxu0 0.0
    %2333 = vmatmul.mubr.f32.gmra.mxu0 %v2263
    %v2334 = vpop.f32.mrf.mxu0
    %v2335 = vadd.f32 %v1878, %v2334
    %v2336 = vpop.f32.mrf.mxu0
    %2337 = vdwg.mxu0
    %v2339 = vsel %vm1881, %v600, 0
    %v2342 = vsel %vm1881, %v1200, 0
    %2344 = vmatprep.subr.mxu0 0.0
    %2345 = vmatpush1.xpose.msra.mxu0 0.0
    %2346 = vmatprep.subr.mxu0 0.0
    %2347 = vmatpush1.xpose.msra.mxu0 0.0
    %2348 = vmatprep.subr.mxu0 0.0
    %2349 = vmatpush1.xpose.msra.mxu0 0.0
    %2350 = vmatprep.subr.mxu0 0.0
    %2351 = vmatpush1.xpose.msra.mxu0 0.0
    %2352 = vmatprep.subr.mxu0 0.0
    %2353 = vmatpush1.xpose.msra.mxu0 0.0
    %2354 = vmatprep.subr.mxu0 0.0
    %2355 = vmatpush1.xpose.msra.mxu0 0.0
    %2356 = vmatprep.subr.mxu0 0.0
    %2357 = vmatpush1.xpose.msra.mxu0 0.0
    %2358 = vmatprep.subr.mxu0 0.0
    %2359 = vmatpush1.xpose.msra.mxu0 0.0
    %2360 = vmatprep.subr.mxu0 0.0
    %2361 = vmatpush1.xpose.msra.mxu0 0.0
    %2362 = vmatprep.subr.mxu0 0.0
    %2363 = vmatpush1.xpose.msra.mxu0 0.0
    %2364 = vmatprep.subr.mxu0 0.0
    %2365 = vmatpush1.xpose.msra.mxu0 0.0
    %2366 = vmatprep.subr.mxu0 0.0
    %2367 = vmatpush1.xpose.msra.mxu0 0.0
    %2368 = vmatprep.subr.mxu0 0.0
    %2369 = vmatpush1.xpose.msra.mxu0 0.0
    %2370 = vmatprep.subr.mxu0 0.0
    %2371 = vmatpush1.xpose.msra.mxu0 0.0
    %2372 = vmatprep.subr.mxu0 0.0
    %2373 = vmatpush1.xpose.msra.mxu0 0.0
    %2374 = vmatprep.subr.mxu0 0.0
    %2375 = vmatpush1.xpose.msra.mxu0 %v2342
    %2376 = vmatprep.subr.mxu0 0.0
    %2377 = vmatpush2.xpose.msra.mxu0 0.0
    %2378 = vmatprep.subr.mxu0 0.0
    %2379 = vmatpush2.xpose.msra.mxu0 0.0
    %2380 = vmatprep.subr.mxu0 0.0
    %2381 = vmatpush2.xpose.msra.mxu0 0.0
    %2382 = vmatprep.subr.mxu0 0.0
    %2383 = vmatpush2.xpose.msra.mxu0 0.0
    %2384 = vmatprep.subr.mxu0 0.0
    %2385 = vmatpush2.xpose.msra.mxu0 0.0
    %2386 = vmatprep.subr.mxu0 0.0
    %2387 = vmatpush2.xpose.msra.mxu0 0.0
    %2388 = vmatprep.subr.mxu0 0.0
    %2389 = vmatpush2.xpose.msra.mxu0 0.0
    %2390 = vmatprep.subr.mxu0 0.0
    %2391 = vmatpush2.xpose.msra.mxu0 0.0
    %2392 = vmatprep.subr.mxu0 0.0
    %2393 = vmatpush2.xpose.msra.mxu0 0.0
    %2394 = vmatprep.subr.mxu0 0.0
    %2395 = vmatpush2.xpose.msra.mxu0 0.0
    %2396 = vmatprep.subr.mxu0 0.0
    %2397 = vmatpush2.xpose.msra.mxu0 0.0
    %2398 = vmatprep.subr.mxu0 0.0
    %2399 = vmatpush2.xpose.msra.mxu0 0.0
    %2400 = vmatprep.subr.mxu0 0.0
    %2401 = vmatpush2.xpose.msra.mxu0 0.0
    %2402 = vmatprep.subr.mxu0 0.0
    %2403 = vmatpush2.xpose.msra.mxu0 0.0
    %2404 = vmatprep.subr.mxu0 0.0
    %2405 = vmatpush2.xpose.msra.mxu0 0.0
    %2406 = vmatprep.subr.mxu0 0.0
    %2407 = vmatpush2.xpose.msra.mxu0 0.0
    %2408 = vmatprep.mubr.f32.mxu0 0.0
    %2409 = vmatmul.mubr.f32.gmra.mxu0 %v2339
    %v2410 = vpop.f32.mrf.mxu0
    %v2411 = vadd.f32 %v1879, %v2410
    %v2412 = vpop.f32.mrf.mxu0
    %2413 = vdwg.mxu0
    %v2415 = vsel %vm1881, %v670, 0
    %v2418 = vsel %vm1881, %v1270, 0
    %2420 = vmatprep.subr.mxu0 0.0
    %2421 = vmatpush1.xpose.msra.mxu0 0.0
    %2422 = vmatprep.subr.mxu0 0.0
    %2423 = vmatpush1.xpose.msra.mxu0 0.0
    %2424 = vmatprep.subr.mxu0 0.0
    %2425 = vmatpush1.xpose.msra.mxu0 0.0
    %2426 = vmatprep.subr.mxu0 0.0
    %2427 = vmatpush1.xpose.msra.mxu0 0.0
    %2428 = vmatprep.subr.mxu0 0.0
    %2429 = vmatpush1.xpose.msra.mxu0 0.0
    %2430 = vmatprep.subr.mxu0 0.0
    %2431 = vmatpush1.xpose.msra.mxu0 0.0
    %2432 = vmatprep.subr.mxu0 0.0
    %2433 = vmatpush1.xpose.msra.mxu0 0.0
    %2434 = vmatprep.subr.mxu0 0.0
    %2435 = vmatpush1.xpose.msra.mxu0 0.0
    %2436 = vmatprep.subr.mxu0 0.0
    %2437 = vmatpush1.xpose.msra.mxu0 0.0
    %2438 = vmatprep.subr.mxu0 0.0
    %2439 = vmatpush1.xpose.msra.mxu0 0.0
    %2440 = vmatprep.subr.mxu0 0.0
    %2441 = vmatpush1.xpose.msra.mxu0 0.0
    %2442 = vmatprep.subr.mxu0 0.0
    %2443 = vmatpush1.xpose.msra.mxu0 0.0
    %2444 = vmatprep.subr.mxu0 0.0
    %2445 = vmatpush1.xpose.msra.mxu0 0.0
    %2446 = vmatprep.subr.mxu0 0.0
    %2447 = vmatpush1.xpose.msra.mxu0 0.0
    %2448 = vmatprep.subr.mxu0 0.0
    %2449 = vmatpush1.xpose.msra.mxu0 0.0
    %2450 = vmatprep.subr.mxu0 0.0
    %2451 = vmatpush1.xpose.msra.mxu0 %v2418
    %2452 = vmatprep.subr.mxu0 0.0
    %2453 = vmatpush2.xpose.msra.mxu0 0.0
    %2454 = vmatprep.subr.mxu0 0.0
    %2455 = vmatpush2.xpose.msra.mxu0 0.0
    %2456 = vmatprep.subr.mxu0 0.0
    %2457 = vmatpush2.xpose.msra.mxu0 0.0
    %2458 = vmatprep.subr.mxu0 0.0
    %2459 = vmatpush2.xpose.msra.mxu0 0.0
    %2460 = vmatprep.subr.mxu0 0.0
    %2461 = vmatpush2.xpose.msra.mxu0 0.0
    %2462 = vmatprep.subr.mxu0 0.0
    %2463 = vmatpush2.xpose.msra.mxu0 0.0
    %2464 = vmatprep.subr.mxu0 0.0
    %2465 = vmatpush2.xpose.msra.mxu0 0.0
    %2466 = vmatprep.subr.mxu0 0.0
    %2467 = vmatpush2.xpose.msra.mxu0 0.0
    %2468 = vmatprep.subr.mxu0 0.0
    %2469 = vmatpush2.xpose.msra.mxu0 0.0
    %2470 = vmatprep.subr.mxu0 0.0
    %2471 = vmatpush2.xpose.msra.mxu0 0.0
    %2472 = vmatprep.subr.mxu0 0.0
    %2473 = vmatpush2.xpose.msra.mxu0 0.0
    %2474 = vmatprep.subr.mxu0 0.0
    %2475 = vmatpush2.xpose.msra.mxu0 0.0
    %2476 = vmatprep.subr.mxu0 0.0
    %2477 = vmatpush2.xpose.msra.mxu0 0.0
    %2478 = vmatprep.subr.mxu0 0.0
    %2479 = vmatpush2.xpose.msra.mxu0 0.0
    %2480 = vmatprep.subr.mxu0 0.0
    %2481 = vmatpush2.xpose.msra.mxu0 0.0
    %2482 = vmatprep.subr.mxu0 0.0
    %2483 = vmatpush2.xpose.msra.mxu0 0.0
    %2484 = vmatprep.mubr.f32.mxu0 0.0
    %2485 = vmatmul.mubr.f32.gmra.mxu0 %v2415
    %v2486 = vpop.f32.mrf.mxu0
    %v2487 = vadd.f32 %v1880, %v2486
    %v2488 = vpop.f32.mrf.mxu0
    %2489 = vdwg.mxu0
    %vm2490 = vcmask 64512
    %v2491 = vsel %vm2490, %v1955, -inf
    %2492 = vmax.xlane.f32.xlu0 %v2491
    %v2493 = vpop.xlane.xlu0 %2492
    %v2494 = vsel %vm2490, %v2031, -inf
    %2495 = vmax.xlane.f32.xlu0 %v2494
    %v2496 = vpop.xlane.xlu0 %2495
    %v2497 = vsel %vm2490, %v2107, -inf
    %2498 = vmax.xlane.f32.xlu0 %v2497
    %v2499 = vpop.xlane.xlu0 %2498
    %v2500 = vsel %vm2490, %v2183, -inf
    %2501 = vmax.xlane.f32.xlu0 %v2500
    %v2502 = vpop.xlane.xlu0 %2501
    %v2503 = vsel %vm2490, %v2259, -inf
    %2504 = vmax.xlane.f32.xlu0 %v2503
    %v2505 = vpop.xlane.xlu0 %2504
    %v2506 = vsel %vm2490, %v2335, -inf
    %2507 = vmax.xlane.f32.xlu0 %v2506
    %v2508 = vpop.xlane.xlu0 %2507
    %v2509 = vsel %vm2490, %v2411, -inf
    %2510 = vmax.xlane.f32.xlu0 %v2509
    %v2511 = vpop.xlane.xlu0 %2510
    %v2512 = vsel %vm2490, %v2487, -inf
    %2513 = vmax.xlane.f32.xlu0 %v2512
    %v2514 = vpop.xlane.xlu0 %2513
    %v2515 = vsub.f32 %v1955, %v2493
    %v2516 = vsub.f32 %v2031, %v2496
    %v2517 = vsub.f32 %v2107, %v2499
    %v2518 = vsub.f32 %v2183, %v2502
    %v2519 = vsub.f32 %v2259, %v2505
    %v2520 = vsub.f32 %v2335, %v2508
    %v2521 = vsub.f32 %v2411, %v2511
    %v2522 = vsub.f32 %v2487, %v2514
    %v2523 = vmul.f32 %v2515, 1.442695
    %v2524 = vpow.pop %v2523
    %v2525 = vmul.f32 %v2516, 1.442695
    %v2526 = vpow.pop %v2525
    %v2527 = vmul.f32 %v2517, 1.442695
    %v2528 = vpow.pop %v2527
    %v2529 = vmul.f32 %v2518, 1.442695
    %v2530 = vpow.pop %v2529
    %v2531 = vmul.f32 %v2519, 1.442695
    %v2532 = vpow.pop %v2531
    %v2533 = vmul.f32 %v2520, 1.442695
    %v2534 = vpow.pop %v2533
    %v2535 = vmul.f32 %v2521, 1.442695
    %v2536 = vpow.pop %v2535
    %v2537 = vmul.f32 %v2522, 1.442695
    %v2538 = vpow.pop %v2537
    %v2539 = vsel %vm2490, %v2524, 0.0
    %2540 = vadd.xlane.f32.xlu0 %v2539
    %v2541 = vpop.xlane.xlu0 %2540
    %v2542 = vsel %vm2490, %v2526, 0.0
    %2543 = vadd.xlane.f32.xlu0 %v2542
    %v2544 = vpop.xlane.xlu0 %2543
    %v2545 = vsel %vm2490, %v2528, 0.0
    %2546 = vadd.xlane.f32.xlu0 %v2545
    %v2547 = vpop.xlane.xlu0 %2546
    %v2548 = vsel %vm2490, %v2530, 0.0
    %2549 = vadd.xlane.f32.xlu0 %v2548
    %v2550 = vpop.xlane.xlu0 %2549
    %v2551 = vsel %vm2490, %v2532, 0.0
    %2552 = vadd.xlane.f32.xlu0 %v2551
    %v2553 = vpop.xlane.xlu0 %2552
    %v2554 = vsel %vm2490, %v2534, 0.0
    %2555 = vadd.xlane.f32.xlu0 %v2554
    %v2556 = vpop.xlane.xlu0 %2555
    %v2557 = vsel %vm2490, %v2536, 0.0
    %2558 = vadd.xlane.f32.xlu0 %v2557
    %v2559 = vpop.xlane.xlu0 %2558
    %v2560 = vsel %vm2490, %v2538, 0.0
    %2561 = vadd.xlane.f32.xlu0 %v2560
    %v2562 = vpop.xlane.xlu0 %2561
    %v2563 = vrcp.pop %v2541
    %v2564 = vrcp.pop %v2544
    %v2565 = vrcp.pop %v2547
    %v2566 = vrcp.pop %v2550
    %v2567 = vrcp.pop %v2553
    %v2568 = vrcp.pop %v2556
    %v2569 = vrcp.pop %v2559
    %v2570 = vrcp.pop %v2562
    %v2571 = vmul.f32 %v2524, %v2563
    %v2572 = vmul.f32 %v2526, %v2564
    %v2573 = vmul.f32 %v2528, %v2565
    %v2574 = vmul.f32 %v2530, %v2566
    %v2575 = vmul.f32 %v2532, %v2567
    %v2576 = vmul.f32 %v2534, %v2568
    %v2577 = vmul.f32 %v2536, %v2569
    %v2578 = vmul.f32 %v2538, %v2570
    %v2580 = vsel %vm2490, %v2571, 0
    %2582 = vmatprep.subr.mxu0 0.0
    %2583 = vmatpush1.msra.mxu0 0.0
    %2584 = vmatprep.subr.mxu0 0.0
    %2585 = vmatpush1.msra.mxu0 0.0
    %2586 = vmatprep.subr.mxu0 0.0
    %2587 = vmatpush1.msra.mxu0 0.0
    %2588 = vmatprep.subr.mxu0 0.0
    %2589 = vmatpush1.msra.mxu0 0.0
    %2590 = vmatprep.subr.mxu0 0.0
    %2591 = vmatpush1.msra.mxu0 0.0
    %2592 = vmatprep.subr.mxu0 0.0
    %2593 = vmatpush1.msra.mxu0 0.0
    %2594 = vmatprep.subr.mxu0 0.0
    %2595 = vmatpush1.msra.mxu0 0.0
    %2596 = vmatprep.subr.mxu0 0.0
    %2597 = vmatpush1.msra.mxu0 0.0
    %2598 = vmatprep.subr.mxu0 0.0
    %2599 = vmatpush1.msra.mxu0 0.0
    %2600 = vmatprep.subr.mxu0 0.0
    %2601 = vmatpush1.msra.mxu0 0.0
    %2602 = vmatprep.subr.mxu0 0.0
    %2603 = vmatpush1.msra.mxu0 0.0
    %2604 = vmatprep.subr.mxu0 0.0
    %2605 = vmatpush1.msra.mxu0 0.0
    %2606 = vmatprep.subr.mxu0 0.0
    %2607 = vmatpush1.msra.mxu0 0.0
    %2608 = vmatprep.subr.mxu0 0.0
    %2609 = vmatpush1.msra.mxu0 0.0
    %2610 = vmatprep.subr.mxu0 0.0
    %2611 = vmatpush1.msra.mxu0 0.0
    %2612 = vmatprep.subr.mxu0 0.0
    %2613 = vmatpush1.msra.mxu0 %v1380
    %2614 = vmatprep.subr.mxu0 0.0
    %2615 = vmatpush2.msra.mxu0 0.0
    %2616 = vmatprep.subr.mxu0 0.0
    %2617 = vmatpush2.msra.mxu0 0.0
    %2618 = vmatprep.subr.mxu0 0.0
    %2619 = vmatpush2.msra.mxu0 0.0
    %2620 = vmatprep.subr.mxu0 0.0
    %2621 = vmatpush2.msra.mxu0 0.0
    %2622 = vmatprep.subr.mxu0 0.0
    %2623 = vmatpush2.msra.mxu0 0.0
    %2624 = vmatprep.subr.mxu0 0.0
    %2625 = vmatpush2.msra.mxu0 0.0
    %2626 = vmatprep.subr.mxu0 0.0
    %2627 = vmatpush2.msra.mxu0 0.0
    %2628 = vmatprep.subr.mxu0 0.0
    %2629 = vmatpush2.msra.mxu0 0.0
    %2630 = vmatprep.subr.mxu0 0.0
    %2631 = vmatpush2.msra.mxu0 0.0
    %2632 = vmatprep.subr.mxu0 0.0
    %2633 = vmatpush2.msra.mxu0 0.0
    %2634 = vmatprep.subr.mxu0 0.0
    %2635 = vmatpush2.msra.mxu0 0.0
    %2636 = vmatprep.subr.mxu0 0.0
    %2637 = vmatpush2.msra.mxu0 0.0
    %2638 = vmatprep.subr.mxu0 0.0
    %2639 = vmatpush2.msra.mxu0 0.0
    %2640 = vmatprep.subr.mxu0 0.0
    %2641 = vmatpush2.msra.mxu0 0.0
    %2642 = vmatprep.subr.mxu0 0.0
    %2643 = vmatpush2.msra.mxu0 0.0
    %2644 = vmatprep.subr.mxu0 0.0
    %2645 = vmatpush2.msra.mxu0 0.0
    %2646 = vmatprep.mubr.f32.mxu0 0.0
    %2647 = vmatmul.mubr.f32.gmra.mxu0 %v2580
    %v2648 = vpop.f32.mrf.mxu0
    %v2649 = vadd.f32 0.0, %v2648
    %v2650 = vpop.f32.mrf.mxu0
    %2651 = vdwg.mxu0
    %v2653 = vsel %vm2490, %v2572, 0
    %2655 = vmatprep.subr.mxu0 0.0
    %2656 = vmatpush1.msra.mxu0 0.0
    %2657 = vmatprep.subr.mxu0 0.0
    %2658 = vmatpush1.msra.mxu0 0.0
    %2659 = vmatprep.subr.mxu0 0.0
    %2660 = vmatpush1.msra.mxu0 0.0
    %2661 = vmatprep.subr.mxu0 0.0
    %2662 = vmatpush1.msra.mxu0 0.0
    %2663 = vmatprep.subr.mxu0 0.0
    %2664 = vmatpush1.msra.mxu0 0.0
    %2665 = vmatprep.subr.mxu0 0.0
    %2666 = vmatpush1.msra.mxu0 0.0
    %2667 = vmatprep.subr.mxu0 0.0
    %2668 = vmatpush1.msra.mxu0 0.0
    %2669 = vmatprep.subr.mxu0 0.0
    %2670 = vmatpush1.msra.mxu0 0.0
    %2671 = vmatprep.subr.mxu0 0.0
    %2672 = vmatpush1.msra.mxu0 0.0
    %2673 = vmatprep.subr.mxu0 0.0
    %2674 = vmatpush1.msra.mxu0 0.0
    %2675 = vmatprep.subr.mxu0 0.0
    %2676 = vmatpush1.msra.mxu0 0.0
    %2677 = vmatprep.subr.mxu0 0.0
    %2678 = vmatpush1.msra.mxu0 0.0
    %2679 = vmatprep.subr.mxu0 0.0
    %2680 = vmatpush1.msra.mxu0 0.0
    %2681 = vmatprep.subr.mxu0 0.0
    %2682 = vmatpush1.msra.mxu0 0.0
    %2683 = vmatprep.subr.mxu0 0.0
    %2684 = vmatpush1.msra.mxu0 0.0
    %2685 = vmatprep.subr.mxu0 0.0
    %2686 = vmatpush1.msra.mxu0 %v1450
    %2687 = vmatprep.subr.mxu0 0.0
    %2688 = vmatpush2.msra.mxu0 0.0
    %2689 = vmatprep.subr.mxu0 0.0
    %2690 = vmatpush2.msra.mxu0 0.0
    %2691 = vmatprep.subr.mxu0 0.0
    %2692 = vmatpush2.msra.mxu0 0.0
    %2693 = vmatprep.subr.mxu0 0.0
    %2694 = vmatpush2.msra.mxu0 0.0
    %2695 = vmatprep.subr.mxu0 0.0
    %2696 = vmatpush2.msra.mxu0 0.0
    %2697 = vmatprep.subr.mxu0 0.0
    %2698 = vmatpush2.msra.mxu0 0.0
    %2699 = vmatprep.subr.mxu0 0.0
    %2700 = vmatpush2.msra.mxu0 0.0
    %2701 = vmatprep.subr.mxu0 0.0
    %2702 = vmatpush2.msra.mxu0 0.0
    %2703 = vmatprep.subr.mxu0 0.0
    %2704 = vmatpush2.msra.mxu0 0.0
    %2705 = vmatprep.subr.mxu0 0.0
    %2706 = vmatpush2.msra.mxu0 0.0
    %2707 = vmatprep.subr.mxu0 0.0
    %2708 = vmatpush2.msra.mxu0 0.0
    %2709 = vmatprep.subr.mxu0 0.0
    %2710 = vmatpush2.msra.mxu0 0.0
    %2711 = vmatprep.subr.mxu0 0.0
    %2712 = vmatpush2.msra.mxu0 0.0
    %2713 = vmatprep.subr.mxu0 0.0
    %2714 = vmatpush2.msra.mxu0 0.0
    %2715 = vmatprep.subr.mxu0 0.0
    %2716 = vmatpush2.msra.mxu0 0.0
    %2717 = vmatprep.subr.mxu0 0.0
    %2718 = vmatpush2.msra.mxu0 0.0
    %2719 = vmatprep.mubr.f32.mxu0 0.0
    %2720 = vmatmul.mubr.f32.gmra.mxu0 %v2653
    %v2721 = vpop.f32.mrf.mxu0
    %v2722 = vadd.f32 0.0, %v2721
    %v2723 = vpop.f32.mrf.mxu0
    %2724 = vdwg.mxu0
    %v2726 = vsel %vm2490, %v2573, 0
    %2728 = vmatprep.subr.mxu0 0.0
    %2729 = vmatpush1.msra.mxu0 0.0
    %2730 = vmatprep.subr.mxu0 0.0
    %2731 = vmatpush1.msra.mxu0 0.0
    %2732 = vmatprep.subr.mxu0 0.0
    %2733 = vmatpush1.msra.mxu0 0.0
    %2734 = vmatprep.subr.mxu0 0.0
    %2735 = vmatpush1.msra.mxu0 0.0
    %2736 = vmatprep.subr.mxu0 0.0
    %2737 = vmatpush1.msra.mxu0 0.0
    %2738 = vmatprep.subr.mxu0 0.0
    %2739 = vmatpush1.msra.mxu0 0.0
    %2740 = vmatprep.subr.mxu0 0.0
    %2741 = vmatpush1.msra.mxu0 0.0
    %2742 = vmatprep.subr.mxu0 0.0
    %2743 = vmatpush1.msra.mxu0 0.0
    %2744 = vmatprep.subr.mxu0 0.0
    %2745 = vmatpush1.msra.mxu0 0.0
    %2746 = vmatprep.subr.mxu0 0.0
    %2747 = vmatpush1.msra.mxu0 0.0
    %2748 = vmatprep.subr.mxu0 0.0
    %2749 = vmatpush1.msra.mxu0 0.0
    %2750 = vmatprep.subr.mxu0 0.0
    %2751 = vmatpush1.msra.mxu0 0.0
    %2752 = vmatprep.subr.mxu0 0.0
    %2753 = vmatpush1.msra.mxu0 0.0
    %2754 = vmatprep.subr.mxu0 0.0
    %2755 = vmatpush1.msra.mxu0 0.0
    %2756 = vmatprep.subr.mxu0 0.0
    %2757 = vmatpush1.msra.mxu0 0.0
    %2758 = vmatprep.subr.mxu0 0.0
    %2759 = vmatpush1.msra.mxu0 %v1520
    %2760 = vmatprep.subr.mxu0 0.0
    %2761 = vmatpush2.msra.mxu0 0.0
    %2762 = vmatprep.subr.mxu0 0.0
    %2763 = vmatpush2.msra.mxu0 0.0
    %2764 = vmatprep.subr.mxu0 0.0
    %2765 = vmatpush2.msra.mxu0 0.0
    %2766 = vmatprep.subr.mxu0 0.0
    %2767 = vmatpush2.msra.mxu0 0.0
    %2768 = vmatprep.subr.mxu0 0.0
    %2769 = vmatpush2.msra.mxu0 0.0
    %2770 = vmatprep.subr.mxu0 0.0
    %2771 = vmatpush2.msra.mxu0 0.0
    %2772 = vmatprep.subr.mxu0 0.0
    %2773 = vmatpush2.msra.mxu0 0.0
    %2774 = vmatprep.subr.mxu0 0.0
    %2775 = vmatpush2.msra.mxu0 0.0
    %2776 = vmatprep.subr.mxu0 0.0
    %2777 = vmatpush2.msra.mxu0 0.0
    %2778 = vmatprep.subr.mxu0 0.0
    %2779 = vmatpush2.msra.mxu0 0.0
    %2780 = vmatprep.subr.mxu0 0.0
    %2781 = vmatpush2.msra.mxu0 0.0
    %2782 = vmatprep.subr.mxu0 0.0
    %2783 = vmatpush2.msra.mxu0 0.0
    %2784 = vmatprep.subr.mxu0 0.0
    %2785 = vmatpush2.msra.mxu0 0.0
    %2786 = vmatprep.subr.mxu0 0.0
    %2787 = vmatpush2.msra.mxu0 0.0
    %2788 = vmatprep.subr.mxu0 0.0
    %2789 = vmatpush2.msra.mxu0 0.0
    %2790 = vmatprep.subr.mxu0 0.0
    %2791 = vmatpush2.msra.mxu0 0.0
    %2792 = vmatprep.mubr.f32.mxu0 0.0
    %2793 = vmatmul.mubr.f32.gmra.mxu0 %v2726
    %v2794 = vpop.f32.mrf.mxu0
    %v2795 = vadd.f32 0.0, %v2794
    %v2796 = vpop.f32.mrf.mxu0
    %2797 = vdwg.mxu0
    %v2799 = vsel %vm2490, %v2574, 0
    %2801 = vmatprep.subr.mxu0 0.0
    %2802 = vmatpush1.msra.mxu0 0.0
    %2803 = vmatprep.subr.mxu0 0.0
    %2804 = vmatpush1.msra.mxu0 0.0
    %2805 = vmatprep.subr.mxu0 0.0
    %2806 = vmatpush1.msra.mxu0 0.0
    %2807 = vmatprep.subr.mxu0 0.0
    %2808 = vmatpush1.msra.mxu0 0.0
    %2809 = vmatprep.subr.mxu0 0.0
    %2810 = vmatpush1.msra.mxu0 0.0
    %2811 = vmatprep.subr.mxu0 0.0
    %2812 = vmatpush1.msra.mxu0 0.0
    %2813 = vmatprep.subr.mxu0 0.0
    %2814 = vmatpush1.msra.mxu0 0.0
    %2815 = vmatprep.subr.mxu0 0.0
    %2816 = vmatpush1.msra.mxu0 0.0
    %2817 = vmatprep.subr.mxu0 0.0
    %2818 = vmatpush1.msra.mxu0 0.0
    %2819 = vmatprep.subr.mxu0 0.0
    %2820 = vmatpush1.msra.mxu0 0.0
    %2821 = vmatprep.subr.mxu0 0.0
    %2822 = vmatpush1.msra.mxu0 0.0
    %2823 = vmatprep.subr.mxu0 0.0
    %2824 = vmatpush1.msra.mxu0 0.0
    %2825 = vmatprep.subr.mxu0 0.0
    %2826 = vmatpush1.msra.mxu0 0.0
    %2827 = vmatprep.subr.mxu0 0.0
    %2828 = vmatpush1.msra.mxu0 0.0
    %2829 = vmatprep.subr.mxu0 0.0
    %2830 = vmatpush1.msra.mxu0 0.0
    %2831 = vmatprep.subr.mxu0 0.0
    %2832 = vmatpush1.msra.mxu0 %v1590
    %2833 = vmatprep.subr.mxu0 0.0
    %2834 = vmatpush2.msra.mxu0 0.0
    %2835 = vmatprep.subr.mxu0 0.0
    %2836 = vmatpush2.msra.mxu0 0.0
    %2837 = vmatprep.subr.mxu0 0.0
    %2838 = vmatpush2.msra.mxu0 0.0
    %2839 = vmatprep.subr.mxu0 0.0
    %2840 = vmatpush2.msra.mxu0 0.0
    %2841 = vmatprep.subr.mxu0 0.0
    %2842 = vmatpush2.msra.mxu0 0.0
    %2843 = vmatprep.subr.mxu0 0.0
    %2844 = vmatpush2.msra.mxu0 0.0
    %2845 = vmatprep.subr.mxu0 0.0
    %2846 = vmatpush2.msra.mxu0 0.0
    %2847 = vmatprep.subr.mxu0 0.0
    %2848 = vmatpush2.msra.mxu0 0.0
    %2849 = vmatprep.subr.mxu0 0.0
    %2850 = vmatpush2.msra.mxu0 0.0
    %2851 = vmatprep.subr.mxu0 0.0
    %2852 = vmatpush2.msra.mxu0 0.0
    %2853 = vmatprep.subr.mxu0 0.0
    %2854 = vmatpush2.msra.mxu0 0.0
    %2855 = vmatprep.subr.mxu0 0.0
    %2856 = vmatpush2.msra.mxu0 0.0
    %2857 = vmatprep.subr.mxu0 0.0
    %2858 = vmatpush2.msra.mxu0 0.0
    %2859 = vmatprep.subr.mxu0 0.0
    %2860 = vmatpush2.msra.mxu0 0.0
    %2861 = vmatprep.subr.mxu0 0.0
    %2862 = vmatpush2.msra.mxu0 0.0
    %2863 = vmatprep.subr.mxu0 0.0
    %2864 = vmatpush2.msra.mxu0 0.0
    %2865 = vmatprep.mubr.f32.mxu0 0.0
    %2866 = vmatmul.mubr.f32.gmra.mxu0 %v2799
    %v2867 = vpop.f32.mrf.mxu0
    %v2868 = vadd.f32 0.0, %v2867
    %v2869 = vpop.f32.mrf.mxu0
    %2870 = vdwg.mxu0
    %v2872 = vsel %vm2490, %v2575, 0
    %2874 = vmatprep.subr.mxu0 0.0
    %2875 = vmatpush1.msra.mxu0 0.0
    %2876 = vmatprep.subr.mxu0 0.0
    %2877 = vmatpush1.msra.mxu0 0.0
    %2878 = vmatprep.subr.mxu0 0.0
    %2879 = vmatpush1.msra.mxu0 0.0
    %2880 = vmatprep.subr.mxu0 0.0
    %2881 = vmatpush1.msra.mxu0 0.0
    %2882 = vmatprep.subr.mxu0 0.0
    %2883 = vmatpush1.msra.mxu0 0.0
    %2884 = vmatprep.subr.mxu0 0.0
    %2885 = vmatpush1.msra.mxu0 0.0
    %2886 = vmatprep.subr.mxu0 0.0
    %2887 = vmatpush1.msra.mxu0 0.0
    %2888 = vmatprep.subr.mxu0 0.0
    %2889 = vmatpush1.msra.mxu0 0.0
    %2890 = vmatprep.subr.mxu0 0.0
    %2891 = vmatpush1.msra.mxu0 0.0
    %2892 = vmatprep.subr.mxu0 0.0
    %2893 = vmatpush1.msra.mxu0 0.0
    %2894 = vmatprep.subr.mxu0 0.0
    %2895 = vmatpush1.msra.mxu0 0.0
    %2896 = vmatprep.subr.mxu0 0.0
    %2897 = vmatpush1.msra.mxu0 0.0
    %2898 = vmatprep.subr.mxu0 0.0
    %2899 = vmatpush1.msra.mxu0 0.0
    %2900 = vmatprep.subr.mxu0 0.0
    %2901 = vmatpush1.msra.mxu0 0.0
    %2902 = vmatprep.subr.mxu0 0.0
    %2903 = vmatpush1.msra.mxu0 0.0
    %2904 = vmatprep.subr.mxu0 0.0
    %2905 = vmatpush1.msra.mxu0 %v1660
    %2906 = vmatprep.subr.mxu0 0.0
    %2907 = vmatpush2.msra.mxu0 0.0
    %2908 = vmatprep.subr.mxu0 0.0
    %2909 = vmatpush2.msra.mxu0 0.0
    %2910 = vmatprep.subr.mxu0 0.0
    %2911 = vmatpush2.msra.mxu0 0.0
    %2912 = vmatprep.subr.mxu0 0.0
    %2913 = vmatpush2.msra.mxu0 0.0
    %2914 = vmatprep.subr.mxu0 0.0
    %2915 = vmatpush2.msra.mxu0 0.0
    %2916 = vmatprep.subr.mxu0 0.0
    %2917 = vmatpush2.msra.mxu0 0.0
    %2918 = vmatprep.subr.mxu0 0.0
    %2919 = vmatpush2.msra.mxu0 0.0
    %2920 = vmatprep.subr.mxu0 0.0
    %2921 = vmatpush2.msra.mxu0 0.0
    %2922 = vmatprep.subr.mxu0 0.0
    %2923 = vmatpush2.msra.mxu0 0.0
    %2924 = vmatprep.subr.mxu0 0.0
    %2925 = vmatpush2.msra.mxu0 0.0
    %2926 = vmatprep.subr.mxu0 0.0
    %2927 = vmatpush2.msra.mxu0 0.0
    %2928 = vmatprep.subr.mxu0 0.0
    %2929 = vmatpush2.msra.mxu0 0.0
    %2930 = vmatprep.subr.mxu0 0.0
    %2931 = vmatpush2.msra.mxu0 0.0
    %2932 = vmatprep.subr.mxu0 0.0
    %2933 = vmatpush2.msra.mxu0 0.0
    %2934 = vmatprep.subr.mxu0 0.0
    %2935 = vmatpush2.msra.mxu0 0.0
    %2936 = vmatprep.subr.mxu0 0.0
    %2937 = vmatpush2.msra.mxu0 0.0
    %2938 = vmatprep.mubr.f32.mxu0 0.0
    %2939 = vmatmul.mubr.f32.gmra.mxu0 %v2872
    %v2940 = vpop.f32.mrf.mxu0
    %v2941 = vadd.f32 0.0, %v2940
    %v2942 = vpop.f32.mrf.mxu0
    %2943 = vdwg.mxu0
    %v2945 = vsel %vm2490, %v2576, 0
    %2947 = vmatprep.subr.mxu0 0.0
    %2948 = vmatpush1.msra.mxu0 0.0
    %2949 = vmatprep.subr.mxu0 0.0
    %2950 = vmatpush1.msra.mxu0 0.0
    %2951 = vmatprep.subr.mxu0 0.0
    %2952 = vmatpush1.msra.mxu0 0.0
    %2953 = vmatprep.subr.mxu0 0.0
    %2954 = vmatpush1.msra.mxu0 0.0
    %2955 = vmatprep.subr.mxu0 0.0
    %2956 = vmatpush1.msra.mxu0 0.0
    %2957 = vmatprep.subr.mxu0 0.0
    %2958 = vmatpush1.msra.mxu0 0.0
    %2959 = vmatprep.subr.mxu0 0.0
    %2960 = vmatpush1.msra.mxu0 0.0
    %2961 = vmatprep.subr.mxu0 0.0
    %2962 = vmatpush1.msra.mxu0 0.0
    %2963 = vmatprep.subr.mxu0 0.0
    %2964 = vmatpush1.msra.mxu0 0.0
    %2965 = vmatprep.subr.mxu0 0.0
    %2966 = vmatpush1.msra.mxu0 0.0
    %2967 = vmatprep.subr.mxu0 0.0
    %2968 = vmatpush1.msra.mxu0 0.0
    %2969 = vmatprep.subr.mxu0 0.0
    %2970 = vmatpush1.msra.mxu0 0.0
    %2971 = vmatprep.subr.mxu0 0.0
    %2972 = vmatpush1.msra.mxu0 0.0
    %2973 = vmatprep.subr.mxu0 0.0
    %2974 = vmatpush1.msra.mxu0 0.0
    %2975 = vmatprep.subr.mxu0 0.0
    %2976 = vmatpush1.msra.mxu0 0.0
    %2977 = vmatprep.subr.mxu0 0.0
    %2978 = vmatpush1.msra.mxu0 %v1730
    %2979 = vmatprep.subr.mxu0 0.0
    %2980 = vmatpush2.msra.mxu0 0.0
    %2981 = vmatprep.subr.mxu0 0.0
    %2982 = vmatpush2.msra.mxu0 0.0
    %2983 = vmatprep.subr.mxu0 0.0
    %2984 = vmatpush2.msra.mxu0 0.0
    %2985 = vmatprep.subr.mxu0 0.0
    %2986 = vmatpush2.msra.mxu0 0.0
    %2987 = vmatprep.subr.mxu0 0.0
    %2988 = vmatpush2.msra.mxu0 0.0
    %2989 = vmatprep.subr.mxu0 0.0
    %2990 = vmatpush2.msra.mxu0 0.0
    %2991 = vmatprep.subr.mxu0 0.0
    %2992 = vmatpush2.msra.mxu0 0.0
    %2993 = vmatprep.subr.mxu0 0.0
    %2994 = vmatpush2.msra.mxu0 0.0
    %2995 = vmatprep.subr.mxu0 0.0
    %2996 = vmatpush2.msra.mxu0 0.0
    %2997 = vmatprep.subr.mxu0 0.0
    %2998 = vmatpush2.msra.mxu0 0.0
    %2999 = vmatprep.subr.mxu0 0.0
    %3000 = vmatpush2.msra.mxu0 0.0
    %3001 = vmatprep.subr.mxu0 0.0
    %3002 = vmatpush2.msra.mxu0 0.0
    %3003 = vmatprep.subr.mxu0 0.0
    %3004 = vmatpush2.msra.mxu0 0.0
    %3005 = vmatprep.subr.mxu0 0.0
    %3006 = vmatpush2.msra.mxu0 0.0
    %3007 = vmatprep.subr.mxu0 0.0
    %3008 = vmatpush2.msra.mxu0 0.0
    %3009 = vmatprep.subr.mxu0 0.0
    %3010 = vmatpush2.msra.mxu0 0.0
    %3011 = vmatprep.mubr.f32.mxu0 0.0
    %3012 = vmatmul.mubr.f32.gmra.mxu0 %v2945
    %v3013 = vpop.f32.mrf.mxu0
    %v3014 = vadd.f32 0.0, %v3013
    %v3015 = vpop.f32.mrf.mxu0
    %3016 = vdwg.mxu0
    %v3018 = vsel %vm2490, %v2577, 0
    %3020 = vmatprep.subr.mxu0 0.0
    %3021 = vmatpush1.msra.mxu0 0.0
    %3022 = vmatprep.subr.mxu0 0.0
    %3023 = vmatpush1.msra.mxu0 0.0
    %3024 = vmatprep.subr.mxu0 0.0
    %3025 = vmatpush1.msra.mxu0 0.0
    %3026 = vmatprep.subr.mxu0 0.0
    %3027 = vmatpush1.msra.mxu0 0.0
    %3028 = vmatprep.subr.mxu0 0.0
    %3029 = vmatpush1.msra.mxu0 0.0
    %3030 = vmatprep.subr.mxu0 0.0
    %3031 = vmatpush1.msra.mxu0 0.0
    %3032 = vmatprep.subr.mxu0 0.0
    %3033 = vmatpush1.msra.mxu0 0.0
    %3034 = vmatprep.subr.mxu0 0.0
    %3035 = vmatpush1.msra.mxu0 0.0
    %3036 = vmatprep.subr.mxu0 0.0
    %3037 = vmatpush1.msra.mxu0 0.0
    %3038 = vmatprep.subr.mxu0 0.0
    %3039 = vmatpush1.msra.mxu0 0.0
    %3040 = vmatprep.subr.mxu0 0.0
    %3041 = vmatpush1.msra.mxu0 0.0
    %3042 = vmatprep.subr.mxu0 0.0
    %3043 = vmatpush1.msra.mxu0 0.0
    %3044 = vmatprep.subr.mxu0 0.0
    %3045 = vmatpush1.msra.mxu0 0.0
    %3046 = vmatprep.subr.mxu0 0.0
    %3047 = vmatpush1.msra.mxu0 0.0
    %3048 = vmatprep.subr.mxu0 0.0
    %3049 = vmatpush1.msra.mxu0 0.0
    %3050 = vmatprep.subr.mxu0 0.0
    %3051 = vmatpush1.msra.mxu0 %v1800
    %3052 = vmatprep.subr.mxu0 0.0
    %3053 = vmatpush2.msra.mxu0 0.0
    %3054 = vmatprep.subr.mxu0 0.0
    %3055 = vmatpush2.msra.mxu0 0.0
    %3056 = vmatprep.subr.mxu0 0.0
    %3057 = vmatpush2.msra.mxu0 0.0
    %3058 = vmatprep.subr.mxu0 0.0
    %3059 = vmatpush2.msra.mxu0 0.0
    %3060 = vmatprep.subr.mxu0 0.0
    %3061 = vmatpush2.msra.mxu0 0.0
    %3062 = vmatprep.subr.mxu0 0.0
    %3063 = vmatpush2.msra.mxu0 0.0
    %3064 = vmatprep.subr.mxu0 0.0
    %3065 = vmatpush2.msra.mxu0 0.0
    %3066 = vmatprep.subr.mxu0 0.0
    %3067 = vmatpush2.msra.mxu0 0.0
    %3068 = vmatprep.subr.mxu0 0.0
    %3069 = vmatpush2.msra.mxu0 0.0
    %3070 = vmatprep.subr.mxu0 0.0
    %3071 = vmatpush2.msra.mxu0 0.0
    %3072 = vmatprep.subr.mxu0 0.0
    %3073 = vmatpush2.msra.mxu0 0.0
    %3074 = vmatprep.subr.mxu0 0.0
    %3075 = vmatpush2.msra.mxu0 0.0
    %3076 = vmatprep.subr.mxu0 0.0
    %3077 = vmatpush2.msra.mxu0 0.0
    %3078 = vmatprep.subr.mxu0 0.0
    %3079 = vmatpush2.msra.mxu0 0.0
    %3080 = vmatprep.subr.mxu0 0.0
    %3081 = vmatpush2.msra.mxu0 0.0
    %3082 = vmatprep.subr.mxu0 0.0
    %3083 = vmatpush2.msra.mxu0 0.0
    %3084 = vmatprep.mubr.f32.mxu0 0.0
    %3085 = vmatmul.mubr.f32.gmra.mxu0 %v3018
    %v3086 = vpop.f32.mrf.mxu0
    %v3087 = vadd.f32 0.0, %v3086
    %v3088 = vpop.f32.mrf.mxu0
    %3089 = vdwg.mxu0
    %v3091 = vsel %vm2490, %v2578, 0
    %3093 = vmatprep.subr.mxu0 0.0
    %3094 = vmatpush1.msra.mxu0 0.0
    %3095 = vmatprep.subr.mxu0 0.0
    %3096 = vmatpush1.msra.mxu0 0.0
    %3097 = vmatprep.subr.mxu0 0.0
    %3098 = vmatpush1.msra.mxu0 0.0
    %3099 = vmatprep.subr.mxu0 0.0
    %3100 = vmatpush1.msra.mxu0 0.0
    %3101 = vmatprep.subr.mxu0 0.0
    %3102 = vmatpush1.msra.mxu0 0.0
    %3103 = vmatprep.subr.mxu0 0.0
    %3104 = vmatpush1.msra.mxu0 0.0
    %3105 = vmatprep.subr.mxu0 0.0
    %3106 = vmatpush1.msra.mxu0 0.0
    %3107 = vmatprep.subr.mxu0 0.0
    %3108 = vmatpush1.msra.mxu0 0.0
    %3109 = vmatprep.subr.mxu0 0.0
    %3110 = vmatpush1.msra.mxu0 0.0
    %3111 = vmatprep.subr.mxu0 0.0
    %3112 = vmatpush1.msra.mxu0 0.0
    %3113 = vmatprep.subr.mxu0 0.0
    %3114 = vmatpush1.msra.mxu0 0.0
    %3115 = vmatprep.subr.mxu0 0.0
    %3116 = vmatpush1.msra.mxu0 0.0
    %3117 = vmatprep.subr.mxu0 0.0
    %3118 = vmatpush1.msra.mxu0 0.0
    %3119 = vmatprep.subr.mxu0 0.0
    %3120 = vmatpush1.msra.mxu0 0.0
    %3121 = vmatprep.subr.mxu0 0.0
    %3122 = vmatpush1.msra.mxu0 0.0
    %3123 = vmatprep.subr.mxu0 0.0
    %3124 = vmatpush1.msra.mxu0 %v1870
    %3125 = vmatprep.subr.mxu0 0.0
    %3126 = vmatpush2.msra.mxu0 0.0
    %3127 = vmatprep.subr.mxu0 0.0
    %3128 = vmatpush2.msra.mxu0 0.0
    %3129 = vmatprep.subr.mxu0 0.0
    %3130 = vmatpush2.msra.mxu0 0.0
    %3131 = vmatprep.subr.mxu0 0.0
    %3132 = vmatpush2.msra.mxu0 0.0
    %3133 = vmatprep.subr.mxu0 0.0
    %3134 = vmatpush2.msra.mxu0 0.0
    %3135 = vmatprep.subr.mxu0 0.0
    %3136 = vmatpush2.msra.mxu0 0.0
    %3137 = vmatprep.subr.mxu0 0.0
    %3138 = vmatpush2.msra.mxu0 0.0
    %3139 = vmatprep.subr.mxu0 0.0
    %3140 = vmatpush2.msra.mxu0 0.0
    %3141 = vmatprep.subr.mxu0 0.0
    %3142 = vmatpush2.msra.mxu0 0.0
    %3143 = vmatprep.subr.mxu0 0.0
    %3144 = vmatpush2.msra.mxu0 0.0
    %3145 = vmatprep.subr.mxu0 0.0
    %3146 = vmatpush2.msra.mxu0 0.0
    %3147 = vmatprep.subr.mxu0 0.0
    %3148 = vmatpush2.msra.mxu0 0.0
    %3149 = vmatprep.subr.mxu0 0.0
    %3150 = vmatpush2.msra.mxu0 0.0
    %3151 = vmatprep.subr.mxu0 0.0
    %3152 = vmatpush2.msra.mxu0 0.0
    %3153 = vmatprep.subr.mxu0 0.0
    %3154 = vmatpush2.msra.mxu0 0.0
    %3155 = vmatprep.subr.mxu0 0.0
    %3156 = vmatpush2.msra.mxu0 0.0
    %3157 = vmatprep.mubr.f32.mxu0 0.0
    %3158 = vmatmul.mubr.f32.gmra.mxu0 %v3091
    %v3159 = vpop.f32.mrf.mxu0
    %v3160 = vadd.f32 0.0, %v3159
    %v3161 = vpop.f32.mrf.mxu0
    %3162 = vdwg.mxu0
    %v3163 = vld [vmem:[%s9] sm:$0xff]
    %v3164 = vld [vmem:[%s9 + $0x8] sm:$0xff]
    %v3165 = vld [vmem:[%s9 + $0x10] sm:$0xff]
    %v3166 = vld [vmem:[%s9 + $0x18] sm:$0xff]
    %v3167 = vld [vmem:[%s9 + $0x20] sm:$0xff]
    %v3168 = vld [vmem:[%s9 + $0x28] sm:$0xff]
    %v3169 = vld [vmem:[%s9 + $0x30] sm:$0xff]
    %v3170 = vld [vmem:[%s9 + $0x38] sm:$0xff]
    %v3171 = vld [vmem:[%s9 + $0x40] sm:$0xff]
    %v3172 = vld [vmem:[%s9 + $0x48] sm:$0xff]
    %v3173 = vld [vmem:[%s9 + $0x50] sm:$0xff]
    %v3174 = vld [vmem:[%s9 + $0x58] sm:$0xff]
    %v3175 = vld [vmem:[%s9 + $0x60] sm:$0xff]
    %v3176 = vld [vmem:[%s9 + $0x68] sm:$0xff]
    %v3177 = vld [vmem:[%s9 + $0x70] sm:$0xff]
    %v3178 = vld [vmem:[%s9 + $0x78] sm:$0xff]
    %v3179 = vld [vmem:[%s9 + $0x80] sm:$0xff]
    %v3180 = vld [vmem:[%s9 + $0x88] sm:$0xff]
    %v3181 = vld [vmem:[%s9 + $0x90] sm:$0xff]
    %v3182 = vld [vmem:[%s9 + $0x98] sm:$0xff]
    %v3183 = vld [vmem:[%s9 + $0xa0] sm:$0xff]
    %v3184 = vld [vmem:[%s9 + $0xa8] sm:$0xff]
    %v3185 = vld [vmem:[%s9 + $0xb0] sm:$0xff]
    %v3186 = vld [vmem:[%s9 + $0xb8] sm:$0xff]
    %v3187 = vld [vmem:[%s9 + $0xc0] sm:$0xff]
    %v3188 = vld [vmem:[%s9 + $0xc8] sm:$0xff]
    %v3189 = vld [vmem:[%s9 + $0xd0] sm:$0xff]
    %v3190 = vld [vmem:[%s9 + $0xd8] sm:$0xff]
    %v3191 = vld [vmem:[%s9 + $0xe0] sm:$0xff]
    %v3192 = vld [vmem:[%s9 + $0xe8] sm:$0xff]
    %v3193 = vld [vmem:[%s9 + $0xf0] sm:$0xff]
    %v3194 = vld [vmem:[%s9 + $0xf8] sm:$0xff]
    %v3196 = vsel %vm1881, %v2649, 0
    %3198 = vmatprep.subr.mxu0 0.0
    %3199 = vmatpush1.msra.mxu0 0.0
    %3200 = vmatprep.subr.mxu0 0.0
    %3201 = vmatpush1.msra.mxu0 0.0
    %3202 = vmatprep.subr.mxu0 0.0
    %3203 = vmatpush1.msra.mxu0 0.0
    %3204 = vmatprep.subr.mxu0 0.0
    %3205 = vmatpush1.msra.mxu0 0.0
    %3206 = vmatprep.subr.mxu0 0.0
    %3207 = vmatpush1.msra.mxu0 0.0
    %3208 = vmatprep.subr.mxu0 0.0
    %3209 = vmatpush1.msra.mxu0 0.0
    %3210 = vmatprep.subr.mxu0 0.0
    %3211 = vmatpush1.msra.mxu0 0.0
    %3212 = vmatprep.subr.mxu0 0.0
    %3213 = vmatpush1.msra.mxu0 0.0
    %3214 = vmatprep.subr.mxu0 0.0
    %3215 = vmatpush1.msra.mxu0 0.0
    %3216 = vmatprep.subr.mxu0 0.0
    %3217 = vmatpush1.msra.mxu0 0.0
    %3218 = vmatprep.subr.mxu0 0.0
    %3219 = vmatpush1.msra.mxu0 0.0
    %3220 = vmatprep.subr.mxu0 0.0
    %3221 = vmatpush1.msra.mxu0 0.0
    %3222 = vmatprep.subr.mxu0 0.0
    %3223 = vmatpush1.msra.mxu0 %v3166
    %3224 = vmatprep.subr.mxu0 0.0
    %3225 = vmatpush1.msra.mxu0 %v3165
    %3226 = vmatprep.subr.mxu0 0.0
    %3227 = vmatpush1.msra.mxu0 %v3164
    %3228 = vmatprep.subr.mxu0 0.0
    %3229 = vmatpush1.msra.mxu0 %v3163
    %3230 = vmatprep.subr.mxu0 0.0
    %3231 = vmatpush2.msra.mxu0 0.0
    %3232 = vmatprep.subr.mxu0 0.0
    %3233 = vmatpush2.msra.mxu0 0.0
    %3234 = vmatprep.subr.mxu0 0.0
    %3235 = vmatpush2.msra.mxu0 0.0
    %3236 = vmatprep.subr.mxu0 0.0
    %3237 = vmatpush2.msra.mxu0 0.0
    %3238 = vmatprep.subr.mxu0 0.0
    %3239 = vmatpush2.msra.mxu0 0.0
    %3240 = vmatprep.subr.mxu0 0.0
    %3241 = vmatpush2.msra.mxu0 0.0
    %3242 = vmatprep.subr.mxu0 0.0
    %3243 = vmatpush2.msra.mxu0 0.0
    %3244 = vmatprep.subr.mxu0 0.0
    %3245 = vmatpush2.msra.mxu0 0.0
    %3246 = vmatprep.subr.mxu0 0.0
    %3247 = vmatpush2.msra.mxu0 0.0
    %3248 = vmatprep.subr.mxu0 0.0
    %3249 = vmatpush2.msra.mxu0 0.0
    %3250 = vmatprep.subr.mxu0 0.0
    %3251 = vmatpush2.msra.mxu0 0.0
    %3252 = vmatprep.subr.mxu0 0.0
    %3253 = vmatpush2.msra.mxu0 0.0
    %3254 = vmatprep.subr.mxu0 0.0
    %3255 = vmatpush2.msra.mxu0 0.0
    %3256 = vmatprep.subr.mxu0 0.0
    %3257 = vmatpush2.msra.mxu0 0.0
    %3258 = vmatprep.subr.mxu0 0.0
    %3259 = vmatpush2.msra.mxu0 0.0
    %3260 = vmatprep.subr.mxu0 0.0
    %3261 = vmatpush2.msra.mxu0 0.0
    %3262 = vmatprep.mubr.f32.mxu0 0.0
    %3263 = vmatmul.mubr.f32.gmra.mxu0 %v3196
    %v3264 = vpop.f32.mrf.mxu0
    %v3265 = vadd.f32 0.0, %v3264
    %v3266 = vpop.f32.mrf.mxu0
    %3267 = vdwg.mxu0
    %v3269 = vsel %vm1881, %v2722, 0
    %3271 = vmatprep.subr.mxu0 0.0
    %3272 = vmatpush1.msra.mxu0 0.0
    %3273 = vmatprep.subr.mxu0 0.0
    %3274 = vmatpush1.msra.mxu0 0.0
    %3275 = vmatprep.subr.mxu0 0.0
    %3276 = vmatpush1.msra.mxu0 0.0
    %3277 = vmatprep.subr.mxu0 0.0
    %3278 = vmatpush1.msra.mxu0 0.0
    %3279 = vmatprep.subr.mxu0 0.0
    %3280 = vmatpush1.msra.mxu0 0.0
    %3281 = vmatprep.subr.mxu0 0.0
    %3282 = vmatpush1.msra.mxu0 0.0
    %3283 = vmatprep.subr.mxu0 0.0
    %3284 = vmatpush1.msra.mxu0 0.0
    %3285 = vmatprep.subr.mxu0 0.0
    %3286 = vmatpush1.msra.mxu0 0.0
    %3287 = vmatprep.subr.mxu0 0.0
    %3288 = vmatpush1.msra.mxu0 0.0
    %3289 = vmatprep.subr.mxu0 0.0
    %3290 = vmatpush1.msra.mxu0 0.0
    %3291 = vmatprep.subr.mxu0 0.0
    %3292 = vmatpush1.msra.mxu0 0.0
    %3293 = vmatprep.subr.mxu0 0.0
    %3294 = vmatpush1.msra.mxu0 0.0
    %3295 = vmatprep.subr.mxu0 0.0
    %3296 = vmatpush1.msra.mxu0 %v3170
    %3297 = vmatprep.subr.mxu0 0.0
    %3298 = vmatpush1.msra.mxu0 %v3169
    %3299 = vmatprep.subr.mxu0 0.0
    %3300 = vmatpush1.msra.mxu0 %v3168
    %3301 = vmatprep.subr.mxu0 0.0
    %3302 = vmatpush1.msra.mxu0 %v3167
    %3303 = vmatprep.subr.mxu0 0.0
    %3304 = vmatpush2.msra.mxu0 0.0
    %3305 = vmatprep.subr.mxu0 0.0
    %3306 = vmatpush2.msra.mxu0 0.0
    %3307 = vmatprep.subr.mxu0 0.0
    %3308 = vmatpush2.msra.mxu0 0.0
    %3309 = vmatprep.subr.mxu0 0.0
    %3310 = vmatpush2.msra.mxu0 0.0
    %3311 = vmatprep.subr.mxu0 0.0
    %3312 = vmatpush2.msra.mxu0 0.0
    %3313 = vmatprep.subr.mxu0 0.0
    %3314 = vmatpush2.msra.mxu0 0.0
    %3315 = vmatprep.subr.mxu0 0.0
    %3316 = vmatpush2.msra.mxu0 0.0
    %3317 = vmatprep.subr.mxu0 0.0
    %3318 = vmatpush2.msra.mxu0 0.0
    %3319 = vmatprep.subr.mxu0 0.0
    %3320 = vmatpush2.msra.mxu0 0.0
    %3321 = vmatprep.subr.mxu0 0.0
    %3322 = vmatpush2.msra.mxu0 0.0
    %3323 = vmatprep.subr.mxu0 0.0
    %3324 = vmatpush2.msra.mxu0 0.0
    %3325 = vmatprep.subr.mxu0 0.0
    %3326 = vmatpush2.msra.mxu0 0.0
    %3327 = vmatprep.subr.mxu0 0.0
    %3328 = vmatpush2.msra.mxu0 0.0
    %3329 = vmatprep.subr.mxu0 0.0
    %3330 = vmatpush2.msra.mxu0 0.0
    %3331 = vmatprep.subr.mxu0 0.0
    %3332 = vmatpush2.msra.mxu0 0.0
    %3333 = vmatprep.subr.mxu0 0.0
    %3334 = vmatpush2.msra.mxu0 0.0
    %3335 = vmatprep.mubr.f32.mxu0 0.0
    %3336 = vmatmul.mubr.f32.gmra.mxu0 %v3269
    %v3337 = vpop.f32.mrf.mxu0
    %v3338 = vadd.f32 0.0, %v3337
    %v3339 = vpop.f32.mrf.mxu0
    %3340 = vdwg.mxu0
    %v3342 = vsel %vm1881, %v2795, 0
    %3344 = vmatprep.subr.mxu0 0.0
    %3345 = vmatpush1.msra.mxu0 0.0
    %3346 = vmatprep.subr.mxu0 0.0
    %3347 = vmatpush1.msra.mxu0 0.0
    %3348 = vmatprep.subr.mxu0 0.0
    %3349 = vmatpush1.msra.mxu0 0.0
    %3350 = vmatprep.subr.mxu0 0.0
    %3351 = vmatpush1.msra.mxu0 0.0
    %3352 = vmatprep.subr.mxu0 0.0
    %3353 = vmatpush1.msra.mxu0 0.0
    %3354 = vmatprep.subr.mxu0 0.0
    %3355 = vmatpush1.msra.mxu0 0.0
    %3356 = vmatprep.subr.mxu0 0.0
    %3357 = vmatpush1.msra.mxu0 0.0
    %3358 = vmatprep.subr.mxu0 0.0
    %3359 = vmatpush1.msra.mxu0 0.0
    %3360 = vmatprep.subr.mxu0 0.0
    %3361 = vmatpush1.msra.mxu0 0.0
    %3362 = vmatprep.subr.mxu0 0.0
    %3363 = vmatpush1.msra.mxu0 0.0
    %3364 = vmatprep.subr.mxu0 0.0
    %3365 = vmatpush1.msra.mxu0 0.0
    %3366 = vmatprep.subr.mxu0 0.0
    %3367 = vmatpush1.msra.mxu0 0.0
    %3368 = vmatprep.subr.mxu0 0.0
    %3369 = vmatpush1.msra.mxu0 %v3174
    %3370 = vmatprep.subr.mxu0 0.0
    %3371 = vmatpush1.msra.mxu0 %v3173
    %3372 = vmatprep.subr.mxu0 0.0
    %3373 = vmatpush1.msra.mxu0 %v3172
    %3374 = vmatprep.subr.mxu0 0.0
    %3375 = vmatpush1.msra.mxu0 %v3171
    %3376 = vmatprep.subr.mxu0 0.0
    %3377 = vmatpush2.msra.mxu0 0.0
    %3378 = vmatprep.subr.mxu0 0.0
    %3379 = vmatpush2.msra.mxu0 0.0
    %3380 = vmatprep.subr.mxu0 0.0
    %3381 = vmatpush2.msra.mxu0 0.0
    %3382 = vmatprep.subr.mxu0 0.0
    %3383 = vmatpush2.msra.mxu0 0.0
    %3384 = vmatprep.subr.mxu0 0.0
    %3385 = vmatpush2.msra.mxu0 0.0
    %3386 = vmatprep.subr.mxu0 0.0
    %3387 = vmatpush2.msra.mxu0 0.0
    %3388 = vmatprep.subr.mxu0 0.0
    %3389 = vmatpush2.msra.mxu0 0.0
    %3390 = vmatprep.subr.mxu0 0.0
    %3391 = vmatpush2.msra.mxu0 0.0
    %3392 = vmatprep.subr.mxu0 0.0
    %3393 = vmatpush2.msra.mxu0 0.0
    %3394 = vmatprep.subr.mxu0 0.0
    %3395 = vmatpush2.msra.mxu0 0.0
    %3396 = vmatprep.subr.mxu0 0.0
    %3397 = vmatpush2.msra.mxu0 0.0
    %3398 = vmatprep.subr.mxu0 0.0
    %3399 = vmatpush2.msra.mxu0 0.0
    %3400 = vmatprep.subr.mxu0 0.0
    %3401 = vmatpush2.msra.mxu0 0.0
    %3402 = vmatprep.subr.mxu0 0.0
    %3403 = vmatpush2.msra.mxu0 0.0
    %3404 = vmatprep.subr.mxu0 0.0
    %3405 = vmatpush2.msra.mxu0 0.0
    %3406 = vmatprep.subr.mxu0 0.0
    %3407 = vmatpush2.msra.mxu0 0.0
    %3408 = vmatprep.mubr.f32.mxu0 0.0
    %3409 = vmatmul.mubr.f32.gmra.mxu0 %v3342
    %v3410 = vpop.f32.mrf.mxu0
    %v3411 = vadd.f32 0.0, %v3410
    %v3412 = vpop.f32.mrf.mxu0
    %3413 = vdwg.mxu0
    %v3415 = vsel %vm1881, %v2868, 0
    %3417 = vmatprep.subr.mxu0 0.0
    %3418 = vmatpush1.msra.mxu0 0.0
    %3419 = vmatprep.subr.mxu0 0.0
    %3420 = vmatpush1.msra.mxu0 0.0
    %3421 = vmatprep.subr.mxu0 0.0
    %3422 = vmatpush1.msra.mxu0 0.0
    %3423 = vmatprep.subr.mxu0 0.0
    %3424 = vmatpush1.msra.mxu0 0.0
    %3425 = vmatprep.subr.mxu0 0.0
    %3426 = vmatpush1.msra.mxu0 0.0
    %3427 = vmatprep.subr.mxu0 0.0
    %3428 = vmatpush1.msra.mxu0 0.0
    %3429 = vmatprep.subr.mxu0 0.0
    %3430 = vmatpush1.msra.mxu0 0.0
    %3431 = vmatprep.subr.mxu0 0.0
    %3432 = vmatpush1.msra.mxu0 0.0
    %3433 = vmatprep.subr.mxu0 0.0
    %3434 = vmatpush1.msra.mxu0 0.0
    %3435 = vmatprep.subr.mxu0 0.0
    %3436 = vmatpush1.msra.mxu0 0.0
    %3437 = vmatprep.subr.mxu0 0.0
    %3438 = vmatpush1.msra.mxu0 0.0
    %3439 = vmatprep.subr.mxu0 0.0
    %3440 = vmatpush1.msra.mxu0 0.0
    %3441 = vmatprep.subr.mxu0 0.0
    %3442 = vmatpush1.msra.mxu0 %v3178
    %3443 = vmatprep.subr.mxu0 0.0
    %3444 = vmatpush1.msra.mxu0 %v3177
    %3445 = vmatprep.subr.mxu0 0.0
    %3446 = vmatpush1.msra.mxu0 %v3176
    %3447 = vmatprep.subr.mxu0 0.0
    %3448 = vmatpush1.msra.mxu0 %v3175
    %3449 = vmatprep.subr.mxu0 0.0
    %3450 = vmatpush2.msra.mxu0 0.0
    %3451 = vmatprep.subr.mxu0 0.0
    %3452 = vmatpush2.msra.mxu0 0.0
    %3453 = vmatprep.subr.mxu0 0.0
    %3454 = vmatpush2.msra.mxu0 0.0
    %3455 = vmatprep.subr.mxu0 0.0
    %3456 = vmatpush2.msra.mxu0 0.0
    %3457 = vmatprep.subr.mxu0 0.0
    %3458 = vmatpush2.msra.mxu0 0.0
    %3459 = vmatprep.subr.mxu0 0.0
    %3460 = vmatpush2.msra.mxu0 0.0
    %3461 = vmatprep.subr.mxu0 0.0
    %3462 = vmatpush2.msra.mxu0 0.0
    %3463 = vmatprep.subr.mxu0 0.0
    %3464 = vmatpush2.msra.mxu0 0.0
    %3465 = vmatprep.subr.mxu0 0.0
    %3466 = vmatpush2.msra.mxu0 0.0
    %3467 = vmatprep.subr.mxu0 0.0
    %3468 = vmatpush2.msra.mxu0 0.0
    %3469 = vmatprep.subr.mxu0 0.0
    %3470 = vmatpush2.msra.mxu0 0.0
    %3471 = vmatprep.subr.mxu0 0.0
    %3472 = vmatpush2.msra.mxu0 0.0
    %3473 = vmatprep.subr.mxu0 0.0
    %3474 = vmatpush2.msra.mxu0 0.0
    %3475 = vmatprep.subr.mxu0 0.0
    %3476 = vmatpush2.msra.mxu0 0.0
    %3477 = vmatprep.subr.mxu0 0.0
    %3478 = vmatpush2.msra.mxu0 0.0
    %3479 = vmatprep.subr.mxu0 0.0
    %3480 = vmatpush2.msra.mxu0 0.0
    %3481 = vmatprep.mubr.f32.mxu0 0.0
    %3482 = vmatmul.mubr.f32.gmra.mxu0 %v3415
    %v3483 = vpop.f32.mrf.mxu0
    %v3484 = vadd.f32 0.0, %v3483
    %v3485 = vpop.f32.mrf.mxu0
    %3486 = vdwg.mxu0
    %v3488 = vsel %vm1881, %v2941, 0
    %3490 = vmatprep.subr.mxu0 0.0
    %3491 = vmatpush1.msra.mxu0 0.0
    %3492 = vmatprep.subr.mxu0 0.0
    %3493 = vmatpush1.msra.mxu0 0.0
    %3494 = vmatprep.subr.mxu0 0.0
    %3495 = vmatpush1.msra.mxu0 0.0
    %3496 = vmatprep.subr.mxu0 0.0
    %3497 = vmatpush1.msra.mxu0 0.0
    %3498 = vmatprep.subr.mxu0 0.0
    %3499 = vmatpush1.msra.mxu0 0.0
    %3500 = vmatprep.subr.mxu0 0.0
    %3501 = vmatpush1.msra.mxu0 0.0
    %3502 = vmatprep.subr.mxu0 0.0
    %3503 = vmatpush1.msra.mxu0 0.0
    %3504 = vmatprep.subr.mxu0 0.0
    %3505 = vmatpush1.msra.mxu0 0.0
    %3506 = vmatprep.subr.mxu0 0.0
    %3507 = vmatpush1.msra.mxu0 0.0
    %3508 = vmatprep.subr.mxu0 0.0
    %3509 = vmatpush1.msra.mxu0 0.0
    %3510 = vmatprep.subr.mxu0 0.0
    %3511 = vmatpush1.msra.mxu0 0.0
    %3512 = vmatprep.subr.mxu0 0.0
    %3513 = vmatpush1.msra.mxu0 0.0
    %3514 = vmatprep.subr.mxu0 0.0
    %3515 = vmatpush1.msra.mxu0 %v3182
    %3516 = vmatprep.subr.mxu0 0.0
    %3517 = vmatpush1.msra.mxu0 %v3181
    %3518 = vmatprep.subr.mxu0 0.0
    %3519 = vmatpush1.msra.mxu0 %v3180
    %3520 = vmatprep.subr.mxu0 0.0
    %3521 = vmatpush1.msra.mxu0 %v3179
    %3522 = vmatprep.subr.mxu0 0.0
    %3523 = vmatpush2.msra.mxu0 0.0
    %3524 = vmatprep.subr.mxu0 0.0
    %3525 = vmatpush2.msra.mxu0 0.0
    %3526 = vmatprep.subr.mxu0 0.0
    %3527 = vmatpush2.msra.mxu0 0.0
    %3528 = vmatprep.subr.mxu0 0.0
    %3529 = vmatpush2.msra.mxu0 0.0
    %3530 = vmatprep.subr.mxu0 0.0
    %3531 = vmatpush2.msra.mxu0 0.0
    %3532 = vmatprep.subr.mxu0 0.0
    %3533 = vmatpush2.msra.mxu0 0.0
    %3534 = vmatprep.subr.mxu0 0.0
    %3535 = vmatpush2.msra.mxu0 0.0
    %3536 = vmatprep.subr.mxu0 0.0
    %3537 = vmatpush2.msra.mxu0 0.0
    %3538 = vmatprep.subr.mxu0 0.0
    %3539 = vmatpush2.msra.mxu0 0.0
    %3540 = vmatprep.subr.mxu0 0.0
    %3541 = vmatpush2.msra.mxu0 0.0
    %3542 = vmatprep.subr.mxu0 0.0
    %3543 = vmatpush2.msra.mxu0 0.0
    %3544 = vmatprep.subr.mxu0 0.0
    %3545 = vmatpush2.msra.mxu0 0.0
    %3546 = vmatprep.subr.mxu0 0.0
    %3547 = vmatpush2.msra.mxu0 0.0
    %3548 = vmatprep.subr.mxu0 0.0
    %3549 = vmatpush2.msra.mxu0 0.0
    %3550 = vmatprep.subr.mxu0 0.0
    %3551 = vmatpush2.msra.mxu0 0.0
    %3552 = vmatprep.subr.mxu0 0.0
    %3553 = vmatpush2.msra.mxu0 0.0
    %3554 = vmatprep.mubr.f32.mxu0 0.0
    %3555 = vmatmul.mubr.f32.gmra.mxu0 %v3488
    %v3556 = vpop.f32.mrf.mxu0
    %v3557 = vadd.f32 0.0, %v3556
    %v3558 = vpop.f32.mrf.mxu0
    %3559 = vdwg.mxu0
    %v3561 = vsel %vm1881, %v3014, 0
    %3563 = vmatprep.subr.mxu0 0.0
    %3564 = vmatpush1.msra.mxu0 0.0
    %3565 = vmatprep.subr.mxu0 0.0
    %3566 = vmatpush1.msra.mxu0 0.0
    %3567 = vmatprep.subr.mxu0 0.0
    %3568 = vmatpush1.msra.mxu0 0.0
    %3569 = vmatprep.subr.mxu0 0.0
    %3570 = vmatpush1.msra.mxu0 0.0
    %3571 = vmatprep.subr.mxu0 0.0
    %3572 = vmatpush1.msra.mxu0 0.0
    %3573 = vmatprep.subr.mxu0 0.0
    %3574 = vmatpush1.msra.mxu0 0.0
    %3575 = vmatprep.subr.mxu0 0.0
    %3576 = vmatpush1.msra.mxu0 0.0
    %3577 = vmatprep.subr.mxu0 0.0
    %3578 = vmatpush1.msra.mxu0 0.0
    %3579 = vmatprep.subr.mxu0 0.0
    %3580 = vmatpush1.msra.mxu0 0.0
    %3581 = vmatprep.subr.mxu0 0.0
    %3582 = vmatpush1.msra.mxu0 0.0
    %3583 = vmatprep.subr.mxu0 0.0
    %3584 = vmatpush1.msra.mxu0 0.0
    %3585 = vmatprep.subr.mxu0 0.0
    %3586 = vmatpush1.msra.mxu0 0.0
    %3587 = vmatprep.subr.mxu0 0.0
    %3588 = vmatpush1.msra.mxu0 %v3186
    %3589 = vmatprep.subr.mxu0 0.0
    %3590 = vmatpush1.msra.mxu0 %v3185
    %3591 = vmatprep.subr.mxu0 0.0
    %3592 = vmatpush1.msra.mxu0 %v3184
    %3593 = vmatprep.subr.mxu0 0.0
    %3594 = vmatpush1.msra.mxu0 %v3183
    %3595 = vmatprep.subr.mxu0 0.0
    %3596 = vmatpush2.msra.mxu0 0.0
    %3597 = vmatprep.subr.mxu0 0.0
    %3598 = vmatpush2.msra.mxu0 0.0
    %3599 = vmatprep.subr.mxu0 0.0
    %3600 = vmatpush2.msra.mxu0 0.0
    %3601 = vmatprep.subr.mxu0 0.0
    %3602 = vmatpush2.msra.mxu0 0.0
    %3603 = vmatprep.subr.mxu0 0.0
    %3604 = vmatpush2.msra.mxu0 0.0
    %3605 = vmatprep.subr.mxu0 0.0
    %3606 = vmatpush2.msra.mxu0 0.0
    %3607 = vmatprep.subr.mxu0 0.0
    %3608 = vmatpush2.msra.mxu0 0.0
    %3609 = vmatprep.subr.mxu0 0.0
    %3610 = vmatpush2.msra.mxu0 0.0
    %3611 = vmatprep.subr.mxu0 0.0
    %3612 = vmatpush2.msra.mxu0 0.0
    %3613 = vmatprep.subr.mxu0 0.0
    %3614 = vmatpush2.msra.mxu0 0.0
    %3615 = vmatprep.subr.mxu0 0.0
    %3616 = vmatpush2.msra.mxu0 0.0
    %3617 = vmatprep.subr.mxu0 0.0
    %3618 = vmatpush2.msra.mxu0 0.0
    %3619 = vmatprep.subr.mxu0 0.0
    %3620 = vmatpush2.msra.mxu0 0.0
    %3621 = vmatprep.subr.mxu0 0.0
    %3622 = vmatpush2.msra.mxu0 0.0
    %3623 = vmatprep.subr.mxu0 0.0
    %3624 = vmatpush2.msra.mxu0 0.0
    %3625 = vmatprep.subr.mxu0 0.0
    %3626 = vmatpush2.msra.mxu0 0.0
    %3627 = vmatprep.mubr.f32.mxu0 0.0
    %3628 = vmatmul.mubr.f32.gmra.mxu0 %v3561
    %v3629 = vpop.f32.mrf.mxu0
    %v3630 = vadd.f32 0.0, %v3629
    %v3631 = vpop.f32.mrf.mxu0
    %3632 = vdwg.mxu0
    %v3634 = vsel %vm1881, %v3087, 0
    %3636 = vmatprep.subr.mxu0 0.0
    %3637 = vmatpush1.msra.mxu0 0.0
    %3638 = vmatprep.subr.mxu0 0.0
    %3639 = vmatpush1.msra.mxu0 0.0
    %3640 = vmatprep.subr.mxu0 0.0
    %3641 = vmatpush1.msra.mxu0 0.0
    %3642 = vmatprep.subr.mxu0 0.0
    %3643 = vmatpush1.msra.mxu0 0.0
    %3644 = vmatprep.subr.mxu0 0.0
    %3645 = vmatpush1.msra.mxu0 0.0
    %3646 = vmatprep.subr.mxu0 0.0
    %3647 = vmatpush1.msra.mxu0 0.0
    %3648 = vmatprep.subr.mxu0 0.0
    %3649 = vmatpush1.msra.mxu0 0.0
    %3650 = vmatprep.subr.mxu0 0.0
    %3651 = vmatpush1.msra.mxu0 0.0
    %3652 = vmatprep.subr.mxu0 0.0
    %3653 = vmatpush1.msra.mxu0 0.0
    %3654 = vmatprep.subr.mxu0 0.0
    %3655 = vmatpush1.msra.mxu0 0.0
    %3656 = vmatprep.subr.mxu0 0.0
    %3657 = vmatpush1.msra.mxu0 0.0
    %3658 = vmatprep.subr.mxu0 0.0
    %3659 = vmatpush1.msra.mxu0 0.0
    %3660 = vmatprep.subr.mxu0 0.0
    %3661 = vmatpush1.msra.mxu0 %v3190
    %3662 = vmatprep.subr.mxu0 0.0
    %3663 = vmatpush1.msra.mxu0 %v3189
    %3664 = vmatprep.subr.mxu0 0.0
    %3665 = vmatpush1.msra.mxu0 %v3188
    %3666 = vmatprep.subr.mxu0 0.0
    %3667 = vmatpush1.msra.mxu0 %v3187
    %3668 = vmatprep.subr.mxu0 0.0
    %3669 = vmatpush2.msra.mxu0 0.0
    %3670 = vmatprep.subr.mxu0 0.0
    %3671 = vmatpush2.msra.mxu0 0.0
    %3672 = vmatprep.subr.mxu0 0.0
    %3673 = vmatpush2.msra.mxu0 0.0
    %3674 = vmatprep.subr.mxu0 0.0
    %3675 = vmatpush2.msra.mxu0 0.0
    %3676 = vmatprep.subr.mxu0 0.0
    %3677 = vmatpush2.msra.mxu0 0.0
    %3678 = vmatprep.subr.mxu0 0.0
    %3679 = vmatpush2.msra.mxu0 0.0
    %3680 = vmatprep.subr.mxu0 0.0
    %3681 = vmatpush2.msra.mxu0 0.0
    %3682 = vmatprep.subr.mxu0 0.0
    %3683 = vmatpush2.msra.mxu0 0.0
    %3684 = vmatprep.subr.mxu0 0.0
    %3685 = vmatpush2.msra.mxu0 0.0
    %3686 = vmatprep.subr.mxu0 0.0
    %3687 = vmatpush2.msra.mxu0 0.0
    %3688 = vmatprep.subr.mxu0 0.0
    %3689 = vmatpush2.msra.mxu0 0.0
    %3690 = vmatprep.subr.mxu0 0.0
    %3691 = vmatpush2.msra.mxu0 0.0
    %3692 = vmatprep.subr.mxu0 0.0
    %3693 = vmatpush2.msra.mxu0 0.0
    %3694 = vmatprep.subr.mxu0 0.0
    %3695 = vmatpush2.msra.mxu0 0.0
    %3696 = vmatprep.subr.mxu0 0.0
    %3697 = vmatpush2.msra.mxu0 0.0
    %3698 = vmatprep.subr.mxu0 0.0
    %3699 = vmatpush2.msra.mxu0 0.0
    %3700 = vmatprep.mubr.f32.mxu0 0.0
    %3701 = vmatmul.mubr.f32.gmra.mxu0 %v3634
    %v3702 = vpop.f32.mrf.mxu0
    %v3703 = vadd.f32 0.0, %v3702
    %v3704 = vpop.f32.mrf.mxu0
    %3705 = vdwg.mxu0
    %v3707 = vsel %vm1881, %v3160, 0
    %3709 = vmatprep.subr.mxu0 0.0
    %3710 = vmatpush1.msra.mxu0 0.0
    %3711 = vmatprep.subr.mxu0 0.0
    %3712 = vmatpush1.msra.mxu0 0.0
    %3713 = vmatprep.subr.mxu0 0.0
    %3714 = vmatpush1.msra.mxu0 0.0
    %3715 = vmatprep.subr.mxu0 0.0
    %3716 = vmatpush1.msra.mxu0 0.0
    %3717 = vmatprep.subr.mxu0 0.0
    %3718 = vmatpush1.msra.mxu0 0.0
    %3719 = vmatprep.subr.mxu0 0.0
    %3720 = vmatpush1.msra.mxu0 0.0
    %3721 = vmatprep.subr.mxu0 0.0
    %3722 = vmatpush1.msra.mxu0 0.0
    %3723 = vmatprep.subr.mxu0 0.0
    %3724 = vmatpush1.msra.mxu0 0.0
    %3725 = vmatprep.subr.mxu0 0.0
    %3726 = vmatpush1.msra.mxu0 0.0
    %3727 = vmatprep.subr.mxu0 0.0
    %3728 = vmatpush1.msra.mxu0 0.0
    %3729 = vmatprep.subr.mxu0 0.0
    %3730 = vmatpush1.msra.mxu0 0.0
    %3731 = vmatprep.subr.mxu0 0.0
    %3732 = vmatpush1.msra.mxu0 0.0
    %3733 = vmatprep.subr.mxu0 0.0
    %3734 = vmatpush1.msra.mxu0 %v3194
    %3735 = vmatprep.subr.mxu0 0.0
    %3736 = vmatpush1.msra.mxu0 %v3193
    %3737 = vmatprep.subr.mxu0 0.0
    %3738 = vmatpush1.msra.mxu0 %v3192
    %3739 = vmatprep.subr.mxu0 0.0
    %3740 = vmatpush1.msra.mxu0 %v3191
    %3741 = vmatprep.subr.mxu0 0.0
    %3742 = vmatpush2.msra.mxu0 0.0
    %3743 = vmatprep.subr.mxu0 0.0
    %3744 = vmatpush2.msra.mxu0 0.0
    %3745 = vmatprep.subr.mxu0 0.0
    %3746 = vmatpush2.msra.mxu0 0.0
    %3747 = vmatprep.subr.mxu0 0.0
    %3748 = vmatpush2.msra.mxu0 0.0
    %3749 = vmatprep.subr.mxu0 0.0
    %3750 = vmatpush2.msra.mxu0 0.0
    %3751 = vmatprep.subr.mxu0 0.0
    %3752 = vmatpush2.msra.mxu0 0.0
    %3753 = vmatprep.subr.mxu0 0.0
    %3754 = vmatpush2.msra.mxu0 0.0
    %3755 = vmatprep.subr.mxu0 0.0
    %3756 = vmatpush2.msra.mxu0 0.0
    %3757 = vmatprep.subr.mxu0 0.0
    %3758 = vmatpush2.msra.mxu0 0.0
    %3759 = vmatprep.subr.mxu0 0.0
    %3760 = vmatpush2.msra.mxu0 0.0
    %3761 = vmatprep.subr.mxu0 0.0
    %3762 = vmatpush2.msra.mxu0 0.0
    %3763 = vmatprep.subr.mxu0 0.0
    %3764 = vmatpush2.msra.mxu0 0.0
    %3765 = vmatprep.subr.mxu0 0.0
    %3766 = vmatpush2.msra.mxu0 0.0
    %3767 = vmatprep.subr.mxu0 0.0
    %3768 = vmatpush2.msra.mxu0 0.0
    %3769 = vmatprep.subr.mxu0 0.0
    %3770 = vmatpush2.msra.mxu0 0.0
    %3771 = vmatprep.subr.mxu0 0.0
    %3772 = vmatpush2.msra.mxu0 0.0
    %3773 = vmatprep.mubr.f32.mxu0 0.0
    %3774 = vmatmul.mubr.f32.gmra.mxu0 %v3707
    %v3775 = vpop.f32.mrf.mxu0
    %v3776 = vadd.f32 0.0, %v3775
    %v3777 = vpop.f32.mrf.mxu0
    %3778 = vdwg.mxu0
    %v3779 = vadd.f32 %v3265, %v3338
    %v3780 = vadd.f32 %v3779, %v3411
    %v3781 = vadd.f32 %v3780, %v3484
    %v3782 = vadd.f32 %v3557, %v3630
    %v3783 = vadd.f32 %v3782, %v3703
    %v3784 = vadd.f32 %v3783, %v3776
    %v3785 = vld [vmem:[%s10] sm:$0x1]
    %v3787 = vlaneseq
    %v3788 = vshrl.u32 %v3787, 7
    %v3789 = vsub.s32 0, %v3788
    %v3790 = vrot.slane %v3785, %v3789
    %v3792 = vadd.f32 %v3781, %v3790
    %v3793 = vadd.f32 %v3784, %v3790
    %v3794 = vadd.f32 %v3792, %v63
    %v3795 = vadd.f32 %v3793, %v64
    %v3796 = vld [vmem:[%s11] sm:$0x1]
    %v3797 = vld [vmem:[%s12] sm:$0x1]
    %3798 = vadd.xlane.f32.xlu0 %v3794
    %v3799 = vpop.xlane.xlu0 %3798
    %3800 = vadd.xlane.f32.xlu0 %v3795
    %v3801 = vpop.xlane.xlu0 %3800
    %v3802 = vrcp.pop 128.0
    %v3803 = vmul.f32 %v3799, %v3802
    %v3804 = vmul.f32 %v3801, %v3802
    %v3805 = vsub.f32 %v3794, %v3803
    %v3806 = vsub.f32 %v3795, %v3804
    %v3807 = vmul.f32 %v3805, %v3805
    %v3808 = vmul.f32 %v3806, %v3806
    %3809 = vadd.xlane.f32.xlu0 %v3807
    %v3810 = vpop.xlane.xlu0 %3809
    %3811 = vadd.xlane.f32.xlu0 %v3808
    %v3812 = vpop.xlane.xlu0 %3811
    %v3813 = vmul.f32 %v3810, %v3802
    %v3814 = vmul.f32 %v3812, %v3802
    %v3815 = vadd.f32 %v3813, 1e-05
    %v3816 = vadd.f32 %v3814, 1e-05
    %v3817 = vrsqrt.pop %v3815
    %v3818 = vrsqrt.pop %v3816
    %v3819 = vmul.f32 %v3805, %v3817
    %v3820 = vmul.f32 %v3806, %v3818
    %v3822 = vlaneseq
    %v3823 = vshrl.u32 %v3822, 7
    %v3824 = vsub.s32 0, %v3823
    %v3825 = vrot.slane %v3796, %v3824
    %v3827 = vmul.f32 %v3825, %v3819
    %v3828 = vmul.f32 %v3825, %v3820
    %v3830 = vlaneseq
    %v3831 = vshrl.u32 %v3830, 7
    %v3832 = vsub.s32 0, %v3831
    %v3833 = vrot.slane %v3797, %v3832
    %v3835 = vadd.f32 %v3827, %v3833
    %v3836 = vadd.f32 %v3828, %v3833
    %v3837 = vld [vmem:[%s13] sm:$0xff]
    %v3838 = vld [vmem:[%s13 + $0x8] sm:$0xff]
    %v3839 = vld [vmem:[%s13 + $0x10] sm:$0xff]
    %v3840 = vld [vmem:[%s13 + $0x18] sm:$0xff]
    %v3841 = vld [vmem:[%s13 + $0x20] sm:$0xff]
    %v3842 = vld [vmem:[%s13 + $0x28] sm:$0xff]
    %v3843 = vld [vmem:[%s13 + $0x30] sm:$0xff]
    %v3844 = vld [vmem:[%s13 + $0x38] sm:$0xff]
    %v3845 = vld [vmem:[%s13 + $0x40] sm:$0xff]
    %v3846 = vld [vmem:[%s13 + $0x48] sm:$0xff]
    %v3847 = vld [vmem:[%s13 + $0x50] sm:$0xff]
    %v3848 = vld [vmem:[%s13 + $0x58] sm:$0xff]
    %v3849 = vld [vmem:[%s13 + $0x60] sm:$0xff]
    %v3850 = vld [vmem:[%s13 + $0x68] sm:$0xff]
    %v3851 = vld [vmem:[%s13 + $0x70] sm:$0xff]
    %v3852 = vld [vmem:[%s13 + $0x78] sm:$0xff]
    %v3853 = vld [vmem:[%s13 + $0x80] sm:$0xff]
    %v3854 = vld [vmem:[%s13 + $0x88] sm:$0xff]
    %v3855 = vld [vmem:[%s13 + $0x90] sm:$0xff]
    %v3856 = vld [vmem:[%s13 + $0x98] sm:$0xff]
    %v3857 = vld [vmem:[%s13 + $0xa0] sm:$0xff]
    %v3858 = vld [vmem:[%s13 + $0xa8] sm:$0xff]
    %v3859 = vld [vmem:[%s13 + $0xb0] sm:$0xff]
    %v3860 = vld [vmem:[%s13 + $0xb8] sm:$0xff]
    %v3861 = vld [vmem:[%s13 + $0xc0] sm:$0xff]
    %v3862 = vld [vmem:[%s13 + $0xc8] sm:$0xff]
    %v3863 = vld [vmem:[%s13 + $0xd0] sm:$0xff]
    %v3864 = vld [vmem:[%s13 + $0xd8] sm:$0xff]
    %v3865 = vld [vmem:[%s13 + $0xe0] sm:$0xff]
    %v3866 = vld [vmem:[%s13 + $0xe8] sm:$0xff]
    %v3867 = vld [vmem:[%s13 + $0xf0] sm:$0xff]
    %v3868 = vld [vmem:[%s13 + $0xf8] sm:$0xff]
    %v3869 = vld [vmem:[%s14] sm:$0x3]
    %v3871 = vlaneseq
    %v3872 = vshrl.u32 %v3871, 7
    %v3873 = vsub.s32 0, %v3872
    %v3874 = vrot.slane %v3869, %v3873
    %v3875 = vlaneseq
    %v3876 = vshrl.u32 %v3875, 7
    %v3877 = vsub.s32 1, %v3876
    %v3878 = vrot.slane %v3869, %v3877
    %3881 = vmatprep.subr.mxu0 %v3868
    %3882 = vmatpush1.msra.mxu0 %v3867
    %3883 = vmatprep.subr.mxu0 %v3866
    %3884 = vmatpush1.msra.mxu0 %v3865
    %3885 = vmatprep.subr.mxu0 %v3864
    %3886 = vmatpush1.msra.mxu0 %v3863
    %3887 = vmatprep.subr.mxu0 %v3862
    %3888 = vmatpush1.msra.mxu0 %v3861
    %3889 = vmatprep.subr.mxu0 %v3860
    %3890 = vmatpush1.msra.mxu0 %v3859
    %3891 = vmatprep.subr.mxu0 %v3858
    %3892 = vmatpush1.msra.mxu0 %v3857
    %3893 = vmatprep.subr.mxu0 %v3856
    %3894 = vmatpush1.msra.mxu0 %v3855
    %3895 = vmatprep.subr.mxu0 %v3854
    %3896 = vmatpush1.msra.mxu0 %v3853
    %3897 = vmatprep.subr.mxu0 %v3852
    %3898 = vmatpush1.msra.mxu0 %v3851
    %3899 = vmatprep.subr.mxu0 %v3850
    %3900 = vmatpush1.msra.mxu0 %v3849
    %3901 = vmatprep.subr.mxu0 %v3848
    %3902 = vmatpush1.msra.mxu0 %v3847
    %3903 = vmatprep.subr.mxu0 %v3846
    %3904 = vmatpush1.msra.mxu0 %v3845
    %3905 = vmatprep.subr.mxu0 %v3844
    %3906 = vmatpush1.msra.mxu0 %v3843
    %3907 = vmatprep.subr.mxu0 %v3842
    %3908 = vmatpush1.msra.mxu0 %v3841
    %3909 = vmatprep.subr.mxu0 %v3840
    %3910 = vmatpush1.msra.mxu0 %v3839
    %3911 = vmatprep.subr.mxu0 %v3838
    %3912 = vmatpush1.msra.mxu0 %v3837
    %3913 = vmatprep.subr.mxu0 0.0
    %3914 = vmatpush2.msra.mxu0 0.0
    %3915 = vmatprep.subr.mxu0 0.0
    %3916 = vmatpush2.msra.mxu0 0.0
    %3917 = vmatprep.subr.mxu0 0.0
    %3918 = vmatpush2.msra.mxu0 0.0
    %3919 = vmatprep.subr.mxu0 0.0
    %3920 = vmatpush2.msra.mxu0 0.0
    %3921 = vmatprep.subr.mxu0 0.0
    %3922 = vmatpush2.msra.mxu0 0.0
    %3923 = vmatprep.subr.mxu0 0.0
    %3924 = vmatpush2.msra.mxu0 0.0
    %3925 = vmatprep.subr.mxu0 0.0
    %3926 = vmatpush2.msra.mxu0 0.0
    %3927 = vmatprep.subr.mxu0 0.0
    %3928 = vmatpush2.msra.mxu0 0.0
    %3929 = vmatprep.subr.mxu0 0.0
    %3930 = vmatpush2.msra.mxu0 0.0
    %3931 = vmatprep.subr.mxu0 0.0
    %3932 = vmatpush2.msra.mxu0 0.0
    %3933 = vmatprep.subr.mxu0 0.0
    %3934 = vmatpush2.msra.mxu0 0.0
    %3935 = vmatprep.subr.mxu0 0.0
    %3936 = vmatpush2.msra.mxu0 0.0
    %3937 = vmatprep.subr.mxu0 0.0
    %3938 = vmatpush2.msra.mxu0 0.0
    %3939 = vmatprep.subr.mxu0 0.0
    %3940 = vmatpush2.msra.mxu0 0.0
    %3941 = vmatprep.subr.mxu0 0.0
    %3942 = vmatpush2.msra.mxu0 0.0
    %3943 = vmatprep.subr.mxu0 0.0
    %3944 = vmatpush2.msra.mxu0 0.0
    %3945 = vmatprep.mubr.f32.mxu0 0.0
    %3946 = vmatmul.mubr.f32.gmra.mxu0 %v3835
    %v3947 = vpop.f32.mrf.mxu0
    %v3948 = vadd.f32 %v3874, %v3947
    %v3949 = vpop.f32.mrf.mxu0
    %v3950 = vadd.f32 %v3878, %v3949
    %3951 = vmatprep.mubr.f32.mxu0 0.0
    %3952 = vmatmul.mubr.f32.gmra.mxu0 %v3836
    %v3953 = vpop.f32.mrf.mxu0
    %v3954 = vadd.f32 %v3874, %v3953
    %v3955 = vpop.f32.mrf.mxu0
    %v3956 = vadd.f32 %v3878, %v3955
    %3957 = vdwg.mxu0
    %v3958 = vmax.f32 %v3948, 0.0
    %v3959 = vmax.f32 %v3950, 0.0
    %v3960 = vmax.f32 %v3954, 0.0
    %v3961 = vmax.f32 %v3956, 0.0
    %v3962 = vld [vmem:[%s15] sm:$0xff]
    %v3963 = vld [vmem:[%s15 + $0x8] sm:$0xff]
    %v3964 = vld [vmem:[%s15 + $0x10] sm:$0xff]
    %v3965 = vld [vmem:[%s15 + $0x18] sm:$0xff]
    %v3966 = vld [vmem:[%s15 + $0x20] sm:$0xff]
    %v3967 = vld [vmem:[%s15 + $0x28] sm:$0xff]
    %v3968 = vld [vmem:[%s15 + $0x30] sm:$0xff]
    %v3969 = vld [vmem:[%s15 + $0x38] sm:$0xff]
    %v3970 = vld [vmem:[%s15 + $0x40] sm:$0xff]
    %v3971 = vld [vmem:[%s15 + $0x48] sm:$0xff]
    %v3972 = vld [vmem:[%s15 + $0x50] sm:$0xff]
    %v3973 = vld [vmem:[%s15 + $0x58] sm:$0xff]
    %v3974 = vld [vmem:[%s15 + $0x60] sm:$0xff]
    %v3975 = vld [vmem:[%s15 + $0x68] sm:$0xff]
    %v3976 = vld [vmem:[%s15 + $0x70] sm:$0xff]
    %v3977 = vld [vmem:[%s15 + $0x78] sm:$0xff]
    %v3978 = vld [vmem:[%s15 + $0x80] sm:$0xff]
    %v3979 = vld [vmem:[%s15 + $0x88] sm:$0xff]
    %v3980 = vld [vmem:[%s15 + $0x90] sm:$0xff]
    %v3981 = vld [vmem:[%s15 + $0x98] sm:$0xff]
    %v3982 = vld [vmem:[%s15 + $0xa0] sm:$0xff]
    %v3983 = vld [vmem:[%s15 + $0xa8] sm:$0xff]
    %v3984 = vld [vmem:[%s15 + $0xb0] sm:$0xff]
    %v3985 = vld [vmem:[%s15 + $0xb8] sm:$0xff]
    %v3986 = vld [vmem:[%s15 + $0xc0] sm:$0xff]
    %v3987 = vld [vmem:[%s15 + $0xc8] sm:$0xff]
    %v3988 = vld [vmem:[%s15 + $0xd0] sm:$0xff]
    %v3989 = vld [vmem:[%s15 + $0xd8] sm:$0xff]
    %v3990 = vld [vmem:[%s15 + $0xe0] sm:$0xff]
    %v3991 = vld [vmem:[%s15 + $0xe8] sm:$0xff]
    %v3992 = vld [vmem:[%s15 + $0xf0] sm:$0xff]
    %v3993 = vld [vmem:[%s15 + $0xf8] sm:$0xff]
    %v3994 = vld [vmem:[%s16] sm:$0x1]
    %v3996 = vlaneseq
    %v3997 = vshrl.u32 %v3996, 7
    %v3998 = vsub.s32 0, %v3997
    %v3999 = vrot.slane %v3994, %v3998
    %4001 = vmatprep.subr.mxu0 0.0
    %4002 = vmatpush1.msra.mxu0 %v3977
    %4003 = vmatprep.subr.mxu0 0.0
    %4004 = vmatpush1.msra.mxu0 %v3976
    %4005 = vmatprep.subr.mxu0 0.0
    %4006 = vmatpush1.msra.mxu0 %v3975
    %4007 = vmatprep.subr.mxu0 0.0
    %4008 = vmatpush1.msra.mxu0 %v3974
    %4009 = vmatprep.subr.mxu0 0.0
    %4010 = vmatpush1.msra.mxu0 %v3973
    %4011 = vmatprep.subr.mxu0 0.0
    %4012 = vmatpush1.msra.mxu0 %v3972
    %4013 = vmatprep.subr.mxu0 0.0
    %4014 = vmatpush1.msra.mxu0 %v3971
    %4015 = vmatprep.subr.mxu0 0.0
    %4016 = vmatpush1.msra.mxu0 %v3970
    %4017 = vmatprep.subr.mxu0 0.0
    %4018 = vmatpush1.msra.mxu0 %v3969
    %4019 = vmatprep.subr.mxu0 0.0
    %4020 = vmatpush1.msra.mxu0 %v3968
    %4021 = vmatprep.subr.mxu0 0.0
    %4022 = vmatpush1.msra.mxu0 %v3967
    %4023 = vmatprep.subr.mxu0 0.0
    %4024 = vmatpush1.msra.mxu0 %v3966
    %4025 = vmatprep.subr.mxu0 0.0
    %4026 = vmatpush1.msra.mxu0 %v3965
    %4027 = vmatprep.subr.mxu0 0.0
    %4028 = vmatpush1.msra.mxu0 %v3964
    %4029 = vmatprep.subr.mxu0 0.0
    %4030 = vmatpush1.msra.mxu0 %v3963
    %4031 = vmatprep.subr.mxu0 0.0
    %4032 = vmatpush1.msra.mxu0 %v3962
    %4033 = vmatprep.subr.mxu0 0.0
    %4034 = vmatpush2.msra.mxu0 %v3993
    %4035 = vmatprep.subr.mxu0 0.0
    %4036 = vmatpush2.msra.mxu0 %v3992
    %4037 = vmatprep.subr.mxu0 0.0
    %4038 = vmatpush2.msra.mxu0 %v3991
    %4039 = vmatprep.subr.mxu0 0.0
    %4040 = vmatpush2.msra.mxu0 %v3990
    %4041 = vmatprep.subr.mxu0 0.0
    %4042 = vmatpush2.msra.mxu0 %v3989
    %4043 = vmatprep.subr.mxu0 0.0
    %4044 = vmatpush2.msra.mxu0 %v3988
    %4045 = vmatprep.subr.mxu0 0.0
    %4046 = vmatpush2.msra.mxu0 %v3987
    %4047 = vmatprep.subr.mxu0 0.0
    %4048 = vmatpush2.msra.mxu0 %v3986
    %4049 = vmatprep.subr.mxu0 0.0
    %4050 = vmatpush2.msra.mxu0 %v3985
    %4051 = vmatprep.subr.mxu0 0.0
    %4052 = vmatpush2.msra.mxu0 %v3984
    %4053 = vmatprep.subr.mxu0 0.0
    %4054 = vmatpush2.msra.mxu0 %v3983
    %4055 = vmatprep.subr.mxu0 0.0
    %4056 = vmatpush2.msra.mxu0 %v3982
    %4057 = vmatprep.subr.mxu0 0.0
    %4058 = vmatpush2.msra.mxu0 %v3981
    %4059 = vmatprep.subr.mxu0 0.0
    %4060 = vmatpush2.msra.mxu0 %v3980
    %4061 = vmatprep.subr.mxu0 0.0
    %4062 = vmatpush2.msra.mxu0 %v3979
    %4063 = vmatprep.subr.mxu0 0.0
    %4064 = vmatpush2.msra.mxu0 %v3978
    %4065 = vmatprep.mubr.f32.mxu0 %v3959
    %4066 = vmatmul.mubr.f32.gmra.mxu0 %v3958
    %v4067 = vpop.f32.mrf.mxu0
    %v4068 = vadd.f32 %v3999, %v4067
    %v4069 = vpop.f32.mrf.mxu0
    %4070 = vmatprep.mubr.f32.mxu0 %v3961
    %4071 = vmatmul.mubr.f32.gmra.mxu0 %v3960
    %v4072 = vpop.f32.mrf.mxu0
    %v4073 = vadd.f32 %v3999, %v4072
    %v4074 = vpop.f32.mrf.mxu0
    %4075 = vdwg.mxu0
    %v4076 = vadd.f32 %v4068, %v3835
    %v4077 = vadd.f32 %v4073, %v3836
    %v4078 = vld [vmem:[%s17] sm:$0x1]
    %v4079 = vld [vmem:[%s18] sm:$0x1]
    %4080 = vadd.xlane.f32.xlu0 %v4076
    %v4081 = vpop.xlane.xlu0 %4080
    %4082 = vadd.xlane.f32.xlu0 %v4077
    %v4083 = vpop.xlane.xlu0 %4082
    %v4084 = vmul.f32 %v4081, %v3802
    %v4085 = vmul.f32 %v4083, %v3802
    %v4086 = vsub.f32 %v4076, %v4084
    %v4087 = vsub.f32 %v4077, %v4085
    %v4088 = vmul.f32 %v4086, %v4086
    %v4089 = vmul.f32 %v4087, %v4087
    %4090 = vadd.xlane.f32.xlu0 %v4088
    %v4091 = vpop.xlane.xlu0 %4090
    %4092 = vadd.xlane.f32.xlu0 %v4089
    %v4093 = vpop.xlane.xlu0 %4092
    %v4094 = vmul.f32 %v4091, %v3802
    %v4095 = vmul.f32 %v4093, %v3802
    %v4096 = vadd.f32 %v4094, 1e-05
    %v4097 = vadd.f32 %v4095, 1e-05
    %v4098 = vrsqrt.pop %v4096
    %v4099 = vrsqrt.pop %v4097
    %v4100 = vmul.f32 %v4086, %v4098
    %v4101 = vmul.f32 %v4087, %v4099
    %v4103 = vlaneseq
    %v4104 = vshrl.u32 %v4103, 7
    %v4105 = vsub.s32 0, %v4104
    %v4106 = vrot.slane %v4078, %v4105
    %v4108 = vmul.f32 %v4106, %v4100
    %v4109 = vmul.f32 %v4106, %v4101
    %v4111 = vlaneseq
    %v4112 = vshrl.u32 %v4111, 7
    %v4113 = vsub.s32 0, %v4112
    %v4114 = vrot.slane %v4079, %v4113
    %v4116 = vadd.f32 %v4108, %v4114
    %v4117 = vadd.f32 %v4109, %v4114
    %4118 = vst [vmem:[#allocation2] sm:$0xff] %v4116
    %4119 = vst [vmem:[#allocation2 + $0x8] sm:$0xff] %v4117
    // Predicated region
    $region78: #{_encoder_layer_impl.1} parent=1 // pred_check
      _
    $region79: #{_encoder_layer_impl.1} parent=1 // pred_check_branch
      %4121 = sbr.rel (0) target = $region81
    $region80: #{_encoder_layer_impl.1} parent=1 // pred_region
      %s4123 = ssub.s32 256, 256
      %4124 = vsyncadd [#allocation3], %s4123
      %s4125 = sshll.u32 [#allocation2], 4
      %s4126 = int_to_ptr.vmem [resolvable:$true] %s4125
      %4131 = dma.vmem_to_hbm [thread:$0]  %s4126, 256, %s19, [#allocation3], 128, 128, 8
    $region81: #{_encoder_layer_impl.1} parent=1 // pred_fallthru
      _
    // Predicated region
    $region82: #{_encoder_layer_impl.1} parent=1 // pred_check
      _
    $region83: #{_encoder_layer_impl.1} parent=1 // pred_check_branch
      %4133 = sbr.rel (0) target = $region85
    $region84: #{_encoder_layer_impl.1} parent=1 // pred_region
      %4134 = dma.done [#allocation3], 256
    $region85: #{_encoder_layer_impl.1} parent=1 // pred_fallthru
      _
    %4135 = vsyncpa [#allocation3], 1

</llo_original>
